<compile_context>
chip_gen: v7x
topology: tpu7x:2x2x1
jax: 0.10.0
libtpu: 0.0.40
codegen_flags: <defaults>
</compile_context>

<pallas_src>
import functools

import jax
import jax.numpy as jnp
from jax.experimental import pallas as pl
from jax.experimental.pallas import tpu as pltpu


def cross_attention_kernel(q_in_ref, k_in_ref, v_in_ref,
                           wq_ref, wk_ref, wv_ref, wo_ref,
                           gamma_ref, beta_ref,
                           out_ref, *, num_heads):
    h = num_heads

    x_q = q_in_ref[0]                      # (Sq, D) f32 (kept for the residual)
    x_k = k_in_ref[0]                      # (Sk, D) f32
    x_v = v_in_ref[0]                      # (Sk, D) f32
    sq, d = x_q.shape
    sk = x_k.shape[0]

    # bf16 copies broadcast along a leading head axis: every matmul below is a
    # clean head-batched MXU contraction with f32 accumulation.
    xq_b = jnp.broadcast_to(x_q.astype(jnp.bfloat16), (h, sq, d))
    xk_b = jnp.broadcast_to(x_k.astype(jnp.bfloat16), (h, sk, d))
    xv_b = jnp.broadcast_to(x_v.astype(jnp.bfloat16), (h, sk, d))

    # Per-head projections (Wq already carries the 1/sqrt(Dh) scale).
    q = jnp.einsum('hsd,hdf->hsf', xq_b, wq_ref[...],
                   preferred_element_type=jnp.float32).astype(jnp.bfloat16)
    k = jnp.einsum('hsd,hdf->hsf', xk_b, wk_ref[...],
                   preferred_element_type=jnp.float32).astype(jnp.bfloat16)
    v = jnp.einsum('hsd,hdf->hsf', xv_b, wv_ref[...],
                   preferred_element_type=jnp.float32).astype(jnp.bfloat16)

    # Scaled dot-product attention, all heads at once (no kh.T materialised).
    s = jnp.einsum('hqd,hkd->hqk', q, k,
                   preferred_element_type=jnp.float32)            # (H, Sq, Sk) f32
    m = jnp.max(s, axis=-1, keepdims=True)
    p = jnp.exp(s - m)                                            # unnormalised probs
    l = jnp.sum(p, axis=-1, keepdims=True)
    inv_l = pl.reciprocal(l, approx=True)                         # EUP, off the VALU path

    ctx = jnp.einsum('hqk,hkd->hqd', p.astype(jnp.bfloat16), v,
                     preferred_element_type=jnp.float32)          # (H, Sq, Dh)
    ctx = ctx * inv_l                                             # normalise the small tensor

    # Output projection: per-head (Dh -> D) matmuls, summed over heads
    # (algebraically identical to concat-over-heads followed by linear_final).
    out = jnp.einsum('hqd,hdf->hqf', ctx.astype(jnp.bfloat16), wo_ref[...],
                     preferred_element_type=jnp.float32).sum(axis=0)   # (Sq, D)

    # Residual + LayerNorm (f32, matches nn.LayerNorm eps=1e-5, biased variance).
    res = x_q + out
    mean = jnp.mean(res, axis=-1, keepdims=True)
    var = jnp.mean((res - mean) ** 2, axis=-1, keepdims=True)
    normed = (res - mean) * jax.lax.rsqrt(var + 1e-5)
    out_ref[0] = normed * gamma_ref[...] + beta_ref[...]


def cross_attention(query, key, value, wq, wk, wv, wo, gamma, beta, *, num_heads):
    b, sq, d = query.shape
    sk = key.shape[1]
    assert d % num_heads == 0, "model_dim must be divisible by num_heads"
    dh = d // num_heads
    scale = dh ** (-0.5)

    # Fold the softmax scale into Wq and pre-split all weights per head so the
    # kernel never reshapes / transposes:  (D, D) -> (H, D, Dh)  and  (H, Dh, D).
    wq_h = (wq * scale).reshape(d, num_heads, dh).transpose(1, 0, 2).astype(jnp.bfloat16)
    wk_h = wk.reshape(d, num_heads, dh).transpose(1, 0, 2).astype(jnp.bfloat16)
    wv_h = wv.reshape(d, num_heads, dh).transpose(1, 0, 2).astype(jnp.bfloat16)
    wo_h = wo.reshape(num_heads, dh, d).astype(jnp.bfloat16)

    kernel = functools.partial(cross_attention_kernel, num_heads=num_heads)
    # Invariant operands: fully resident in VMEM, single copy (no double-buffering).
    vmem_resident = pl.BlockSpec(memory_space=pltpu.MemorySpace.VMEM)

    return pl.pallas_call(
        kernel,
        out_shape=jax.ShapeDtypeStruct((b, sq, d), jnp.float32),
        grid=(b,),
        in_specs=[
            pl.BlockSpec((1, sq, d), lambda i: (i, 0, 0)),   # query
            pl.BlockSpec((1, sk, d), lambda i: (i, 0, 0)),   # key
            pl.BlockSpec((1, sk, d), lambda i: (i, 0, 0)),   # value
            vmem_resident,                                   # Wq (H, D, Dh), pre-scaled
            vmem_resident,                                   # Wk (H, D, Dh)
            vmem_resident,                                   # Wv (H, D, Dh)
            vmem_resident,                                   # Wo (H, Dh, D)
            vmem_resident,                                   # gamma (1, D)
            vmem_resident,                                   # beta  (1, D)
        ],
        out_specs=pl.BlockSpec((1, sq, d), lambda i: (i, 0, 0)),
        compiler_params=pltpu.CompilerParams(
            dimension_semantics=("parallel",),               # batch splits across TCs (v7x)
            vmem_limit_bytes=32 * 1024 * 1024,
        ),
    )(query, key, value, wq_h, wk_h, wv_h, wo_h, gamma, beta)


def cross_attention_ref(query, key, value, wq, wk, wv, wo, gamma, beta, *, num_heads):
    """Pure-JAX f32 reference mirroring the PyTorch forward (eval mode)."""
    b, sq, d = query.shape
    sk = key.shape[1]
    dh = d // num_heads
    q = (query @ wq).reshape(b, sq, num_heads, dh).transpose(0, 2, 1, 3)
    k = (key @ wk).reshape(b, sk, num_heads, dh).transpose(0, 2, 1, 3)
    v = (value @ wv).reshape(b, sk, num_heads, dh).transpose(0, 2, 1, 3)
    attn = jnp.einsum('bhqd,bhkd->bhqk', q, k) * (dh ** -0.5)
    attn = jax.nn.softmax(attn, axis=-1)
    ctx = jnp.einsum('bhqk,bhkd->bhqd', attn, v)
    ctx = ctx.transpose(0, 2, 1, 3).reshape(b, sq, d)
    out = ctx @ wo
    res = query + out
    mean = jnp.mean(res, axis=-1, keepdims=True)
    var = jnp.mean((res - mean) ** 2, axis=-1, keepdims=True)
    return (res - mean) * jax.lax.rsqrt(var + 1e-5) * gamma[0] + beta[0]


if __name__ == "__main__":
    # Small shapes consistent with the module (model_dim divisible by num_heads).
    # D=128 keeps the lane dimension full and gives a sublane-friendly Dh=16.
    B, SQ, SK, D, H = 2, 16, 16, 128, 8

    key0 = jax.random.PRNGKey(0)
    k_q, k_k, k_v, k_wq, k_wk, k_wv, k_wo = jax.random.split(key0, 7)

    query = jax.random.normal(k_q, (B, SQ, D), dtype=jnp.float32)
    key_in = jax.random.normal(k_k, (B, SK, D), dtype=jnp.float32)
    value = jax.random.normal(k_v, (B, SK, D), dtype=jnp.float32)

    wq = jax.random.normal(k_wq, (D, D), dtype=jnp.float32) * 0.05
    wk = jax.random.normal(k_wk, (D, D), dtype=jnp.float32) * 0.05
    wv = jax.random.normal(k_wv, (D, D), dtype=jnp.float32) * 0.05
    wo = jax.random.normal(k_wo, (D, D), dtype=jnp.float32) * 0.05
    gamma = jnp.ones((1, D), dtype=jnp.float32)   # nn.LayerNorm default weight
    beta = jnp.zeros((1, D), dtype=jnp.float32)   # nn.LayerNorm default bias

    out = cross_attention(query, key_in, value, wq, wk, wv, wo, gamma, beta,
                          num_heads=H)
    out = jax.block_until_ready(out)

    ref = cross_attention_ref(query, key_in, value, wq, wk, wv, wo, gamma, beta,
                              num_heads=H)
    assert out.shape == (B, SQ, D)
    max_err = float(jnp.max(jnp.abs(out - ref)))
    # bf16 matmul operands (f32 accumulation) + approx reciprocal => relaxed tolerance.
    assert jnp.allclose(out, ref, atol=3e-2, rtol=3e-2), \
        f"mismatch vs reference (max abs err {max_err})"

    print("KERNEL_OK")
</pallas_src>

<mosaic_0001>
module attributes {stable_mosaic.version = 11 : i64} {
  func.func @cross_attention_kernel(%arg0: i32, %arg1: memref<1x16x128xf32, #tpu.memory_space<vmem>>, %arg2: memref<1x16x128xf32, #tpu.memory_space<vmem>>, %arg3: memref<1x16x128xf32, #tpu.memory_space<vmem>>, %arg4: memref<8x128x16xbf16, #tpu.memory_space<vmem>>, %arg5: memref<8x128x16xbf16, #tpu.memory_space<vmem>>, %arg6: memref<8x128x16xbf16, #tpu.memory_space<vmem>>, %arg7: memref<8x16x128xbf16, #tpu.memory_space<vmem>>, %arg8: memref<1x128xf32, #tpu.memory_space<vmem>>, %arg9: memref<1x128xf32, #tpu.memory_space<vmem>>, %arg10: memref<1x16x128xf32, #tpu.memory_space<vmem>>) attributes {dimension_semantics = [#tpu.dimension_semantics<parallel>], iteration_bounds = array<i64: 2>, scalar_prefetch = 0 : i64, scratch_operands = 0 : i64, tpu.core_type = #tpu.core_type<tc>, window_params = [{transform_indices = @transform_0, window_bounds = array<i64: 1, 16, 128>}, {transform_indices = @transform_1, window_bounds = array<i64: 1, 16, 128>}, {transform_indices = @transform_2, window_bounds = array<i64: 1, 16, 128>}, {pipeline_mode = #tpu.pipeline_mode<synchronous>, transform_indices = @transform_3, window_bounds = array<i64: 8, 128, 16>}, {pipeline_mode = #tpu.pipeline_mode<synchronous>, transform_indices = @transform_4, window_bounds = array<i64: 8, 128, 16>}, {pipeline_mode = #tpu.pipeline_mode<synchronous>, transform_indices = @transform_5, window_bounds = array<i64: 8, 128, 16>}, {pipeline_mode = #tpu.pipeline_mode<synchronous>, transform_indices = @transform_6, window_bounds = array<i64: 8, 16, 128>}, {pipeline_mode = #tpu.pipeline_mode<synchronous>, transform_indices = @transform_7, window_bounds = array<i64: 1, 128>}, {pipeline_mode = #tpu.pipeline_mode<synchronous>, transform_indices = @transform_8, window_bounds = array<i64: 1, 128>}, {transform_indices = @transform_9, window_bounds = array<i64: 1, 16, 128>}]} {
    %c0 = arith.constant 0 : index
    %c0_0 = arith.constant 0 : index
    %c0_1 = arith.constant 0 : index
    %0 = vector.load %arg1[%c0, %c0_0, %c0_1] : memref<1x16x128xf32, #tpu.memory_space<vmem>>, vector<1x16x128xf32>
    %1 = vector.shape_cast %0 : vector<1x16x128xf32> to vector<16x128xf32>
    %c0_2 = arith.constant 0 : index
    %c0_3 = arith.constant 0 : index
    %c0_4 = arith.constant 0 : index
    %2 = vector.load %arg2[%c0_2, %c0_3, %c0_4] : memref<1x16x128xf32, #tpu.memory_space<vmem>>, vector<1x16x128xf32>
    %3 = vector.shape_cast %2 : vector<1x16x128xf32> to vector<16x128xf32>
    %c0_5 = arith.constant 0 : index
    %c0_6 = arith.constant 0 : index
    %c0_7 = arith.constant 0 : index
    %4 = vector.load %arg3[%c0_5, %c0_6, %c0_7] : memref<1x16x128xf32, #tpu.memory_space<vmem>>, vector<1x16x128xf32>
    %5 = vector.shape_cast %4 : vector<1x16x128xf32> to vector<16x128xf32>
    %6 = arith.truncf %1 : vector<16x128xf32> to vector<16x128xbf16>
    %7 = vector.shape_cast %6 : vector<16x128xbf16> to vector<1x16x128xbf16>
    %8 = vector.broadcast %7 : vector<1x16x128xbf16> to vector<8x16x128xbf16>
    %9 = arith.truncf %3 : vector<16x128xf32> to vector<16x128xbf16>
    %10 = vector.shape_cast %9 : vector<16x128xbf16> to vector<1x16x128xbf16>
    %11 = vector.broadcast %10 : vector<1x16x128xbf16> to vector<8x16x128xbf16>
    %12 = arith.truncf %5 : vector<16x128xf32> to vector<16x128xbf16>
    %13 = vector.shape_cast %12 : vector<16x128xbf16> to vector<1x16x128xbf16>
    %14 = vector.broadcast %13 : vector<1x16x128xbf16> to vector<8x16x128xbf16>
    %c0_8 = arith.constant 0 : index
    %c0_9 = arith.constant 0 : index
    %c0_10 = arith.constant 0 : index
    %15 = vector.load %arg4[%c0_8, %c0_9, %c0_10] : memref<8x128x16xbf16, #tpu.memory_space<vmem>>, vector<8x128x16xbf16>
    "tpu.trace_start"() <{level = 10 : i32, message = "hsd,hdf->hsf"}> : () -> ()
    %cst = arith.constant dense<0.000000e+00> : vector<8x16x16xf32>
    %16 = tpu.matmul %8, %15, %cst {dimension_numbers = #tpu.dot_dimension_numbers<[2], [1], [1], [2], [0, 0, 0, 1, 1, 2], [0], [0]>} : vector<8x16x128xbf16>, vector<8x128x16xbf16>, vector<8x16x16xf32> -> vector<8x16x16xf32>
    "tpu.trace_stop"() : () -> ()
    %17 = arith.truncf %16 : vector<8x16x16xf32> to vector<8x16x16xbf16>
    %c0_11 = arith.constant 0 : index
    %c0_12 = arith.constant 0 : index
    %c0_13 = arith.constant 0 : index
    %18 = vector.load %arg5[%c0_11, %c0_12, %c0_13] : memref<8x128x16xbf16, #tpu.memory_space<vmem>>, vector<8x128x16xbf16>
    "tpu.trace_start"() <{level = 10 : i32, message = "hsd,hdf->hsf"}> : () -> ()
    %cst_14 = arith.constant dense<0.000000e+00> : vector<8x16x16xf32>
    %19 = tpu.matmul %11, %18, %cst_14 {dimension_numbers = #tpu.dot_dimension_numbers<[2], [1], [1], [2], [0, 0, 0, 1, 1, 2], [0], [0]>} : vector<8x16x128xbf16>, vector<8x128x16xbf16>, vector<8x16x16xf32> -> vector<8x16x16xf32>
    "tpu.trace_stop"() : () -> ()
    %20 = arith.truncf %19 : vector<8x16x16xf32> to vector<8x16x16xbf16>
    %c0_15 = arith.constant 0 : index
    %c0_16 = arith.constant 0 : index
    %c0_17 = arith.constant 0 : index
    %21 = vector.load %arg6[%c0_15, %c0_16, %c0_17] : memref<8x128x16xbf16, #tpu.memory_space<vmem>>, vector<8x128x16xbf16>
    "tpu.trace_start"() <{level = 10 : i32, message = "hsd,hdf->hsf"}> : () -> ()
    %cst_18 = arith.constant dense<0.000000e+00> : vector<8x16x16xf32>
    %22 = tpu.matmul %14, %21, %cst_18 {dimension_numbers = #tpu.dot_dimension_numbers<[2], [1], [1], [2], [0, 0, 0, 1, 1, 2], [0], [0]>} : vector<8x16x128xbf16>, vector<8x128x16xbf16>, vector<8x16x16xf32> -> vector<8x16x16xf32>
    "tpu.trace_stop"() : () -> ()
    %23 = arith.truncf %22 : vector<8x16x16xf32> to vector<8x16x16xbf16>
    "tpu.trace_start"() <{level = 10 : i32, message = "hqd,hkd->hqk"}> : () -> ()
    %cst_19 = arith.constant dense<0.000000e+00> : vector<8x16x16xf32>
    %24 = tpu.matmul %17, %20, %cst_19 {dimension_numbers = #tpu.dot_dimension_numbers<[2], [2], [1], [1], [0, 0, 0, 1, 1, 1], [0], [0]>} : vector<8x16x16xbf16>, vector<8x16x16xbf16>, vector<8x16x16xf32> -> vector<8x16x16xf32>
    "tpu.trace_stop"() : () -> ()
    %cst_20 = arith.constant dense<0xFF800000> : vector<8x16xf32>
    %25 = vector.multi_reduction <maximumf>, %24, %cst_20 [2] : vector<8x16x16xf32> to vector<8x16xf32>
    %26 = vector.shape_cast %25 : vector<8x16xf32> to vector<8x16x1xf32>
    %27 = vector.broadcast %26 : vector<8x16x1xf32> to vector<8x16x16xf32>
    %28 = arith.subf %24, %27 : vector<8x16x16xf32>
    %29 = math.exp %28 : vector<8x16x16xf32>
    %cst_21 = arith.constant dense<0.000000e+00> : vector<8x16xf32>
    %30 = vector.multi_reduction <add>, %29, %cst_21 [2] : vector<8x16x16xf32> to vector<8x16xf32>
    %31 = vector.shape_cast %30 : vector<8x16xf32> to vector<8x16x1xf32>
    %32 = tpu.reciprocal %31 {approx = true} : vector<8x16x1xf32> -> vector<8x16x1xf32>
    %33 = arith.truncf %29 : vector<8x16x16xf32> to vector<8x16x16xbf16>
    "tpu.trace_start"() <{level = 10 : i32, message = "hqk,hkd->hqd"}> : () -> ()
    %cst_22 = arith.constant dense<0.000000e+00> : vector<8x16x16xf32>
    %34 = tpu.matmul %33, %23, %cst_22 {dimension_numbers = #tpu.dot_dimension_numbers<[2], [1], [1], [2], [0, 0, 0, 1, 1, 2], [0], [0]>} : vector<8x16x16xbf16>, vector<8x16x16xbf16>, vector<8x16x16xf32> -> vector<8x16x16xf32>
    "tpu.trace_stop"() : () -> ()
    %35 = vector.broadcast %32 : vector<8x16x1xf32> to vector<8x16x16xf32>
    %36 = arith.mulf %34, %35 : vector<8x16x16xf32>
    %37 = arith.truncf %36 : vector<8x16x16xf32> to vector<8x16x16xbf16>
    %c0_23 = arith.constant 0 : index
    %c0_24 = arith.constant 0 : index
    %c0_25 = arith.constant 0 : index
    %38 = vector.load %arg7[%c0_23, %c0_24, %c0_25] : memref<8x16x128xbf16, #tpu.memory_space<vmem>>, vector<8x16x128xbf16>
    "tpu.trace_start"() <{level = 10 : i32, message = "hqd,hdf->hqf"}> : () -> ()
    %cst_26 = arith.constant dense<0.000000e+00> : vector<8x16x128xf32>
    %39 = tpu.matmul %37, %38, %cst_26 {dimension_numbers = #tpu.dot_dimension_numbers<[2], [1], [1], [2], [0, 0, 0, 1, 1, 2], [0], [0]>} : vector<8x16x16xbf16>, vector<8x16x128xbf16>, vector<8x16x128xf32> -> vector<8x16x128xf32>
    "tpu.trace_stop"() : () -> ()
    %cst_27 = arith.constant dense<0.000000e+00> : vector<16x128xf32>
    %40 = vector.multi_reduction <add>, %39, %cst_27 [0] : vector<8x16x128xf32> to vector<16x128xf32>
    %41 = arith.addf %1, %40 : vector<16x128xf32>
    %cst_28 = arith.constant dense<0.000000e+00> : vector<16xf32>
    %42 = vector.multi_reduction <add>, %41, %cst_28 [1] : vector<16x128xf32> to vector<16xf32>
    %43 = vector.shape_cast %42 : vector<16xf32> to vector<16x1xf32>
    %cst_29 = arith.constant 1.280000e+02 : f32
    %44 = vector.broadcast %cst_29 : f32 to vector<16x1xf32>
    %45 = arith.divf %43, %44 : vector<16x1xf32>
    %46 = vector.broadcast %45 : vector<16x1xf32> to vector<16x128xf32>
    %47 = arith.subf %41, %46 : vector<16x128xf32>
    %48 = arith.mulf %47, %47 : vector<16x128xf32>
    %cst_30 = arith.constant dense<0.000000e+00> : vector<16xf32>
    %49 = vector.multi_reduction <add>, %48, %cst_30 [1] : vector<16x128xf32> to vector<16xf32>
    %50 = vector.shape_cast %49 : vector<16xf32> to vector<16x1xf32>
    %cst_31 = arith.constant 1.280000e+02 : f32
    %51 = vector.broadcast %cst_31 : f32 to vector<16x1xf32>
    %52 = arith.divf %50, %51 : vector<16x1xf32>
    %53 = vector.broadcast %45 : vector<16x1xf32> to vector<16x128xf32>
    %54 = arith.subf %41, %53 : vector<16x128xf32>
    %cst_32 = arith.constant 9.99999974E-6 : f32
    %55 = vector.broadcast %cst_32 : f32 to vector<16x1xf32>
    %56 = arith.addf %52, %55 : vector<16x1xf32>
    %57 = math.rsqrt %56 : vector<16x1xf32>
    %58 = vector.broadcast %57 : vector<16x1xf32> to vector<16x128xf32>
    %59 = arith.mulf %54, %58 : vector<16x128xf32>
    %c0_33 = arith.constant 0 : index
    %c0_34 = arith.constant 0 : index
    %60 = vector.load %arg8[%c0_33, %c0_34] : memref<1x128xf32, #tpu.memory_space<vmem>>, vector<1x128xf32>
    %61 = vector.broadcast %60 : vector<1x128xf32> to vector<16x128xf32>
    %62 = arith.mulf %59, %61 : vector<16x128xf32>
    %c0_35 = arith.constant 0 : index
    %c0_36 = arith.constant 0 : index
    %63 = vector.load %arg9[%c0_35, %c0_36] : memref<1x128xf32, #tpu.memory_space<vmem>>, vector<1x128xf32>
    %64 = vector.broadcast %63 : vector<1x128xf32> to vector<16x128xf32>
    %65 = arith.addf %62, %64 : vector<16x128xf32>
    %c0_37 = arith.constant 0 : index
    %c0_38 = arith.constant 0 : index
    %c0_39 = arith.constant 0 : index
    %66 = vector.load %arg10[%c0_37, %c0_38, %c0_39] : memref<1x16x128xf32, #tpu.memory_space<vmem>>, vector<1x16x128xf32>
    %67 = vector.shape_cast %66 : vector<1x16x128xf32> to vector<16x128xf32>
    %68 = vector.shape_cast %65 : vector<16x128xf32> to vector<1x16x128xf32>
    tpu.vector_store %arg10[%c0_37, %c0_38, %c0_39], %68 {strides = array<i32>} : memref<1x16x128xf32, #tpu.memory_space<vmem>>, vector<1x16x128xf32>,
    return
  }
  func.func @transform_0(%arg0: i32) -> (i32, i32, i32) {
    %c0_i32 = arith.constant 0 : i32
    %c0_i32_0 = arith.constant 0 : i32
    %c0_i32_1 = arith.constant 0 : i32
    return %arg0, %c0_i32, %c0_i32_0 : i32, i32, i32
  }
  func.func @transform_1(%arg0: i32) -> (i32, i32, i32) {
    %c0_i32 = arith.constant 0 : i32
    %c0_i32_0 = arith.constant 0 : i32
    %c0_i32_1 = arith.constant 0 : i32
    return %arg0, %c0_i32, %c0_i32_0 : i32, i32, i32
  }
  func.func @transform_2(%arg0: i32) -> (i32, i32, i32) {
    %c0_i32 = arith.constant 0 : i32
    %c0_i32_0 = arith.constant 0 : i32
    %c0_i32_1 = arith.constant 0 : i32
    return %arg0, %c0_i32, %c0_i32_0 : i32, i32, i32
  }
  func.func @transform_3(%arg0: i32) -> (i32, i32, i32) {
    %c0_i32 = arith.constant 0 : i32
    %c0_i32_0 = arith.constant 0 : i32
    %c0_i32_1 = arith.constant 0 : i32
    %c0_i32_2 = arith.constant 0 : i32
    return %c0_i32, %c0_i32_0, %c0_i32_1 : i32, i32, i32
  }
  func.func @transform_4(%arg0: i32) -> (i32, i32, i32) {
    %c0_i32 = arith.constant 0 : i32
    %c0_i32_0 = arith.constant 0 : i32
    %c0_i32_1 = arith.constant 0 : i32
    %c0_i32_2 = arith.constant 0 : i32
    return %c0_i32, %c0_i32_0, %c0_i32_1 : i32, i32, i32
  }
  func.func @transform_5(%arg0: i32) -> (i32, i32, i32) {
    %c0_i32 = arith.constant 0 : i32
    %c0_i32_0 = arith.constant 0 : i32
    %c0_i32_1 = arith.constant 0 : i32
    %c0_i32_2 = arith.constant 0 : i32
    return %c0_i32, %c0_i32_0, %c0_i32_1 : i32, i32, i32
  }
  func.func @transform_6(%arg0: i32) -> (i32, i32, i32) {
    %c0_i32 = arith.constant 0 : i32
    %c0_i32_0 = arith.constant 0 : i32
    %c0_i32_1 = arith.constant 0 : i32
    %c0_i32_2 = arith.constant 0 : i32
    return %c0_i32, %c0_i32_0, %c0_i32_1 : i32, i32, i32
  }
  func.func @transform_7(%arg0: i32) -> (i32, i32) {
    %c0_i32 = arith.constant 0 : i32
    %c0_i32_0 = arith.constant 0 : i32
    %c0_i32_1 = arith.constant 0 : i32
    return %c0_i32, %c0_i32_0 : i32, i32
  }
  func.func @transform_8(%arg0: i32) -> (i32, i32) {
    %c0_i32 = arith.constant 0 : i32
    %c0_i32_0 = arith.constant 0 : i32
    %c0_i32_1 = arith.constant 0 : i32
    return %c0_i32, %c0_i32_0 : i32, i32
  }
  func.func @transform_9(%arg0: i32) -> (i32, i32, i32) {
    %c0_i32 = arith.constant 0 : i32
    %c0_i32_0 = arith.constant 0 : i32
    %c0_i32_1 = arith.constant 0 : i32
    return %arg0, %c0_i32, %c0_i32_0 : i32, i32, i32
  }
}

</mosaic_0001>

<llo_original>
// kernel: tpu_custom_call.1
$region0: #{tpu_custom_call.1}
  #allocation0 [shape = 'u32[]', space=smem, size = 0x4, offset = 0x4, fixed_abs, tag = 'smem constant byte address 0x4 - core index']
  #allocation1 [shape = 'u32[144,128]{1,0:T(1,128)}', space=vmem, size = 0x12000, scoped, tag = 'internal scratch']
  %s0 = inlined_call_operand.vmem [shape: f32[2,16,128], index: 0, kind: input, shape index: {}]
  %s1 = inlined_call_operand.vmem [shape: f32[2,16,128], index: 1, kind: input, shape index: {}]
  %s2 = inlined_call_operand.vmem [shape: f32[2,16,128], index: 2, kind: input, shape index: {}]
  %s3 = inlined_call_operand.vmem [shape: bf16[8,128,16], index: 3, kind: input, shape index: {}]
  %s4 = inlined_call_operand.vmem [shape: bf16[8,128,16], index: 4, kind: input, shape index: {}]
  %s5 = inlined_call_operand.vmem [shape: bf16[8,128,16], index: 5, kind: input, shape index: {}]
  %s6 = inlined_call_operand.vmem [shape: bf16[8,16,128], index: 6, kind: input, shape index: {}]
  %s7 = inlined_call_operand.vmem [shape: f32[1,128], index: 7, kind: input, shape index: {}]
  %s8 = inlined_call_operand.vmem [shape: f32[1,128], index: 8, kind: input, shape index: {}]
  %s9 = inlined_call_operand.hbm [shape: f32[2,16,128], index: 9, kind: output, shape index: {}]
  %s10 = sld [smem:[#allocation0]]
  $region69: #{tpu_custom_call.1} parent=0
    _
  %s12 = ssub.s32 1, %s10
  %s13 = scalar_select 0, %s12, %s10
  $region1: #{tpu_custom_call.1} parent=0
    #allocation2 [shape = 'u8[16384]{0}', space=vmem, size = 0x4000, scoped, tag = 'output window, operand 0']
    #allocation3 [shape = 's32[2]{0}', space=sflag, size = 0x8, scoped, tag = 'scoped memory for tpu_custom_call.1']
    %14 = vsyncpa [#allocation3], 0
    %s15 = scalar_lea.sflag [#allocation3], 1
    %16 = vsyncpa %s15, 0
    loop: start=0, step=1, limit=4
    $region2: #{tpu_custom_call.1} parent=1 // loop_pre_header
      _
    $region3: #{tpu_custom_call.1} parent=1 // loop_header
      %s18 = sphi 0, %s22
      %p19 = scmp.ge.s32.totalorder %s18, 4
      %s28 = sphi 0, %s30
      %s31 = sphi 0, %s28
      %s32 = sphi 0, %s31
      %s48 = sphi 0, %s32
      %s54 = sphi 0, %s56
      %s57 = sphi 0, %s54
      %s58 = sphi 0, %s57
      %s74 = sphi 0, %s58
      %s80 = sphi 0, %s82
      %s83 = sphi 0, %s80
      %s84 = sphi 0, %s83
      %s100 = sphi 0, %s84
      %s104 = sphi 0, %s104
      %s106 = sphi 0, %s104
      %s107 = sphi 0, %s106
      %s121 = sphi 0, %s107
      %s125 = sphi 0, %s125
      %s127 = sphi 0, %s125
      %s128 = sphi 0, %s127
      %s142 = sphi 0, %s128
      %s146 = sphi 0, %s146
      %s148 = sphi 0, %s146
      %s149 = sphi 0, %s148
      %s163 = sphi 0, %s149
      %s167 = sphi 0, %s167
      %s169 = sphi 0, %s167
      %s170 = sphi 0, %s169
      %s184 = sphi 0, %s170
      %s188 = sphi 0, %s188
      %s190 = sphi 0, %s188
      %s191 = sphi 0, %s190
      %s205 = sphi 0, %s191
      %s209 = sphi 0, %s209
      %s211 = sphi 0, %s209
      %s212 = sphi 0, %s211
      %s226 = sphi 0, %s212
      %s232 = sphi 0, %s234
      %s235 = sphi 0, %s232
      %s236 = sphi 0, %s235
      %s252 = sphi 0, %s236
    $region4: #{tpu_custom_call.1} parent=1 // loop_header_branch
      %21 = sbr.rel (%p19) target = $region8
    $region5: #{tpu_custom_call.1} parent=1 // loop_body
      %s23 = ssub.s32 %s18, 1
      %s24 = ssub.s32 %s18, 2
      %s25 = sadd.s32 %s18, 1
      %s26 = ssub.s32 %s18, %s25
      %p27 = scmp.eq.s32.totalorder %s26, 0
      %s29 = sadd.s32 %s28, 1
      %s30 = scalar_select %p27, %s28, %s29
      %p33 = pneg %p27
      %p34 = scmp.eq.s32.totalorder %s18, 1
      %p35 = por %p33, %p34
      %p36 = scmp.ne.s32.totalorder %s28, %s31
      %p37 = scmp.eq.s32.totalorder %s18, 0
      %p38 = por %p36, %p37
      %p39 = scmp.ne.s32.totalorder %s28, %s31
      %p40 = scmp.eq.s32.totalorder %s23, 1
      %p41 = por %p39, %p40
      %p42 = scmp.ne.s32.totalorder %s31, %s32
      %p43 = scmp.eq.s32.totalorder %s23, 0
      %p44 = por %p42, %p43
      %p45 = scmp.ne.s32.totalorder %s31, %s32
      %p46 = scmp.eq.s32.totalorder %s24, 1
      %p47 = por %p45, %p46
      %p49 = scmp.ne.s32.totalorder %s32, %s48
      %p50 = scmp.eq.s32.totalorder %s24, 0
      %p51 = por %p49, %p50
      %s52 = ssub.s32 %s18, %s25
      %p53 = scmp.eq.s32.totalorder %s52, 0
      %s55 = sadd.s32 %s54, 1
      %s56 = scalar_select %p53, %s54, %s55
      %p59 = pneg %p53
      %p60 = scmp.eq.s32.totalorder %s18, 1
      %p61 = por %p59, %p60
      %p62 = scmp.ne.s32.totalorder %s54, %s57
      %p63 = scmp.eq.s32.totalorder %s18, 0
      %p64 = por %p62, %p63
      %p65 = scmp.ne.s32.totalorder %s54, %s57
      %p66 = scmp.eq.s32.totalorder %s23, 1
      %p67 = por %p65, %p66
      %p68 = scmp.ne.s32.totalorder %s57, %s58
      %p69 = scmp.eq.s32.totalorder %s23, 0
      %p70 = por %p68, %p69
      %p71 = scmp.ne.s32.totalorder %s57, %s58
      %p72 = scmp.eq.s32.totalorder %s24, 1
      %p73 = por %p71, %p72
      %p75 = scmp.ne.s32.totalorder %s58, %s74
      %p76 = scmp.eq.s32.totalorder %s24, 0
      %p77 = por %p75, %p76
      %s78 = ssub.s32 %s18, %s25
      %p79 = scmp.eq.s32.totalorder %s78, 0
      %s81 = sadd.s32 %s80, 1
      %s82 = scalar_select %p79, %s80, %s81
      %p85 = pneg %p79
      %p86 = scmp.eq.s32.totalorder %s18, 1
      %p87 = por %p85, %p86
      %p88 = scmp.ne.s32.totalorder %s80, %s83
      %p89 = scmp.eq.s32.totalorder %s18, 0
      %p90 = por %p88, %p89
      %p91 = scmp.ne.s32.totalorder %s80, %s83
      %p92 = scmp.eq.s32.totalorder %s23, 1
      %p93 = por %p91, %p92
      %p94 = scmp.ne.s32.totalorder %s83, %s84
      %p95 = scmp.eq.s32.totalorder %s23, 0
      %p96 = por %p94, %p95
      %p97 = scmp.ne.s32.totalorder %s83, %s84
      %p98 = scmp.eq.s32.totalorder %s24, 1
      %p99 = por %p97, %p98
      %p101 = scmp.ne.s32.totalorder %s84, %s100
      %p102 = scmp.eq.s32.totalorder %s24, 0
      %p103 = por %p101, %p102
      %s105 = sadd.s32 %s104, 1
      %p108 = scmp.eq.s32.totalorder %s18, 1
      %p109 = scmp.ne.s32.totalorder %s104, %s106
      %p110 = scmp.eq.s32.totalorder %s18, 0
      %p111 = por %p109, %p110
      %p112 = scmp.ne.s32.totalorder %s104, %s106
      %p113 = scmp.eq.s32.totalorder %s23, 1
      %p114 = por %p112, %p113
      %p115 = scmp.ne.s32.totalorder %s106, %s107
      %p116 = scmp.eq.s32.totalorder %s23, 0
      %p117 = por %p115, %p116
      %p118 = scmp.ne.s32.totalorder %s106, %s107
      %p119 = scmp.eq.s32.totalorder %s24, 1
      %p120 = por %p118, %p119
      %p122 = scmp.ne.s32.totalorder %s107, %s121
      %p123 = scmp.eq.s32.totalorder %s24, 0
      %p124 = por %p122, %p123
      %s126 = sadd.s32 %s125, 1
      %p129 = scmp.eq.s32.totalorder %s18, 1
      %p130 = scmp.ne.s32.totalorder %s125, %s127
      %p131 = scmp.eq.s32.totalorder %s18, 0
      %p132 = por %p130, %p131
      %p133 = scmp.ne.s32.totalorder %s125, %s127
      %p134 = scmp.eq.s32.totalorder %s23, 1
      %p135 = por %p133, %p134
      %p136 = scmp.ne.s32.totalorder %s127, %s128
      %p137 = scmp.eq.s32.totalorder %s23, 0
      %p138 = por %p136, %p137
      %p139 = scmp.ne.s32.totalorder %s127, %s128
      %p140 = scmp.eq.s32.totalorder %s24, 1
      %p141 = por %p139, %p140
      %p143 = scmp.ne.s32.totalorder %s128, %s142
      %p144 = scmp.eq.s32.totalorder %s24, 0
      %p145 = por %p143, %p144
      %s147 = sadd.s32 %s146, 1
      %p150 = scmp.eq.s32.totalorder %s18, 1
      %p151 = scmp.ne.s32.totalorder %s146, %s148
      %p152 = scmp.eq.s32.totalorder %s18, 0
      %p153 = por %p151, %p152
      %p154 = scmp.ne.s32.totalorder %s146, %s148
      %p155 = scmp.eq.s32.totalorder %s23, 1
      %p156 = por %p154, %p155
      %p157 = scmp.ne.s32.totalorder %s148, %s149
      %p158 = scmp.eq.s32.totalorder %s23, 0
      %p159 = por %p157, %p158
      %p160 = scmp.ne.s32.totalorder %s148, %s149
      %p161 = scmp.eq.s32.totalorder %s24, 1
      %p162 = por %p160, %p161
      %p164 = scmp.ne.s32.totalorder %s149, %s163
      %p165 = scmp.eq.s32.totalorder %s24, 0
      %p166 = por %p164, %p165
      %s168 = sadd.s32 %s167, 1
      %p171 = scmp.eq.s32.totalorder %s18, 1
      %p172 = scmp.ne.s32.totalorder %s167, %s169
      %p173 = scmp.eq.s32.totalorder %s18, 0
      %p174 = por %p172, %p173
      %p175 = scmp.ne.s32.totalorder %s167, %s169
      %p176 = scmp.eq.s32.totalorder %s23, 1
      %p177 = por %p175, %p176
      %p178 = scmp.ne.s32.totalorder %s169, %s170
      %p179 = scmp.eq.s32.totalorder %s23, 0
      %p180 = por %p178, %p179
      %p181 = scmp.ne.s32.totalorder %s169, %s170
      %p182 = scmp.eq.s32.totalorder %s24, 1
      %p183 = por %p181, %p182
      %p185 = scmp.ne.s32.totalorder %s170, %s184
      %p186 = scmp.eq.s32.totalorder %s24, 0
      %p187 = por %p185, %p186
      %s189 = sadd.s32 %s188, 1
      %p192 = scmp.eq.s32.totalorder %s18, 1
      %p193 = scmp.ne.s32.totalorder %s188, %s190
      %p194 = scmp.eq.s32.totalorder %s18, 0
      %p195 = por %p193, %p194
      %p196 = scmp.ne.s32.totalorder %s188, %s190
      %p197 = scmp.eq.s32.totalorder %s23, 1
      %p198 = por %p196, %p197
      %p199 = scmp.ne.s32.totalorder %s190, %s191
      %p200 = scmp.eq.s32.totalorder %s23, 0
      %p201 = por %p199, %p200
      %p202 = scmp.ne.s32.totalorder %s190, %s191
      %p203 = scmp.eq.s32.totalorder %s24, 1
      %p204 = por %p202, %p203
      %p206 = scmp.ne.s32.totalorder %s191, %s205
      %p207 = scmp.eq.s32.totalorder %s24, 0
      %p208 = por %p206, %p207
      %s210 = sadd.s32 %s209, 1
      %p213 = scmp.eq.s32.totalorder %s18, 1
      %p214 = scmp.ne.s32.totalorder %s209, %s211
      %p215 = scmp.eq.s32.totalorder %s18, 0
      %p216 = por %p214, %p215
      %p217 = scmp.ne.s32.totalorder %s209, %s211
      %p218 = scmp.eq.s32.totalorder %s23, 1
      %p219 = por %p217, %p218
      %p220 = scmp.ne.s32.totalorder %s211, %s212
      %p221 = scmp.eq.s32.totalorder %s23, 0
      %p222 = por %p220, %p221
      %p223 = scmp.ne.s32.totalorder %s211, %s212
      %p224 = scmp.eq.s32.totalorder %s24, 1
      %p225 = por %p223, %p224
      %p227 = scmp.ne.s32.totalorder %s212, %s226
      %p228 = scmp.eq.s32.totalorder %s24, 0
      %p229 = por %p227, %p228
      %s230 = ssub.s32 %s18, %s25
      %p231 = scmp.eq.s32.totalorder %s230, 0
      %s233 = sadd.s32 %s232, 1
      %s234 = scalar_select %p231, %s232, %s233
      %p237 = pneg %p231
      %p238 = scmp.eq.s32.totalorder %s18, 1
      %p239 = por %p237, %p238
      %p240 = scmp.ne.s32.totalorder %s232, %s235
      %p241 = scmp.eq.s32.totalorder %s18, 0
      %p242 = por %p240, %p241
      %p243 = scmp.ne.s32.totalorder %s232, %s235
      %p244 = scmp.eq.s32.totalorder %s23, 1
      %p245 = por %p243, %p244
      %p246 = scmp.ne.s32.totalorder %s235, %s236
      %p247 = scmp.eq.s32.totalorder %s23, 0
      %p248 = por %p246, %p247
      %p249 = scmp.ne.s32.totalorder %s235, %s236
      %p250 = scmp.eq.s32.totalorder %s24, 1
      %p251 = por %p249, %p250
      %p253 = scmp.ne.s32.totalorder %s236, %s252
      %p254 = scmp.eq.s32.totalorder %s24, 0
      %p255 = por %p253, %p254
      %p256 = scmp.le.s32.totalorder 1, %s18
      %p257 = scmp.lt.s32.totalorder %s18, 3
      %p258 = pnand %p256, %p257
      %p259 = pneg %p258
      // Predicated region
      $region9: #{tpu_custom_call.1} parent=5 // pred_check
        _
      $region10: #{tpu_custom_call.1} parent=5 // pred_check_branch
        %261 = sbr.rel (%p258) target = $region12
      $region11: #{tpu_custom_call.1} parent=5 // pred_region
        %s262 = ssub.s32 %s18, 1
        // Predicated region
        $region13: #{tpu_custom_call.1} parent=11 // pred_check
          %p263 = pneg %p117
        $region14: #{tpu_custom_call.1} parent=11 // pred_check_branch
          %265 = sbr.rel (%p263) target = $region16
        $region15: #{tpu_custom_call.1} parent=11 // pred_region
          _
        $region16: #{tpu_custom_call.1} parent=11 // pred_fallthru
          _
        // Predicated region
        $region17: #{tpu_custom_call.1} parent=11 // pred_check
          %p266 = pneg %p138
        $region18: #{tpu_custom_call.1} parent=11 // pred_check_branch
          %268 = sbr.rel (%p266) target = $region20
        $region19: #{tpu_custom_call.1} parent=11 // pred_region
          _
        $region20: #{tpu_custom_call.1} parent=11 // pred_fallthru
          _
        // Predicated region
        $region21: #{tpu_custom_call.1} parent=11 // pred_check
          %p269 = pneg %p159
        $region22: #{tpu_custom_call.1} parent=11 // pred_check_branch
          %271 = sbr.rel (%p269) target = $region24
        $region23: #{tpu_custom_call.1} parent=11 // pred_region
          _
        $region24: #{tpu_custom_call.1} parent=11 // pred_fallthru
          _
        // Predicated region
        $region25: #{tpu_custom_call.1} parent=11 // pred_check
          %p272 = pneg %p180
        $region26: #{tpu_custom_call.1} parent=11 // pred_check_branch
          %274 = sbr.rel (%p272) target = $region28
        $region27: #{tpu_custom_call.1} parent=11 // pred_region
          _
        $region28: #{tpu_custom_call.1} parent=11 // pred_fallthru
          _
        // Predicated region
        $region29: #{tpu_custom_call.1} parent=11 // pred_check
          %p275 = pneg %p201
        $region30: #{tpu_custom_call.1} parent=11 // pred_check_branch
          %277 = sbr.rel (%p275) target = $region32
        $region31: #{tpu_custom_call.1} parent=11 // pred_region
          _
        $region32: #{tpu_custom_call.1} parent=11 // pred_fallthru
          _
        // Predicated region
        $region33: #{tpu_custom_call.1} parent=11 // pred_check
          %p278 = pneg %p222
        $region34: #{tpu_custom_call.1} parent=11 // pred_check_branch
          %280 = sbr.rel (%p278) target = $region36
        $region35: #{tpu_custom_call.1} parent=11 // pred_region
          _
        $region36: #{tpu_custom_call.1} parent=11 // pred_fallthru
          _
      $region12: #{tpu_custom_call.1} parent=5 // pred_fallthru
        _
      %p281 = scmp.lt.s32.totalorder %s18, 2
      // Predicated region
      $region37: #{tpu_custom_call.1} parent=5 // pred_check
        %p282 = pneg %p281
      $region38: #{tpu_custom_call.1} parent=5 // pred_check_branch
        %284 = sbr.rel (%p282) target = $region40
      $region39: #{tpu_custom_call.1} parent=5 // pred_region
        // Predicated region
        $region41: #{tpu_custom_call.1} parent=39 // pred_check
          %p285 = pneg %p38
        $region42: #{tpu_custom_call.1} parent=39 // pred_check_branch
          %287 = sbr.rel (%p285) target = $region44
        $region43: #{tpu_custom_call.1} parent=39 // pred_region
          %p288 = scmp.lt.s32.totalorder %s18, 1
          %s289 = scalar_select %p288, %s18, 1
          %s290 = smul.addr %s289, 2
          %s291 = smul.addr %s290, 8
          %s292 = scalar_lea.vmem %s0, %s291
        $region44: #{tpu_custom_call.1} parent=39 // pred_fallthru
          _
        // Predicated region
        $region45: #{tpu_custom_call.1} parent=39 // pred_check
          %p293 = pneg %p64
        $region46: #{tpu_custom_call.1} parent=39 // pred_check_branch
          %295 = sbr.rel (%p293) target = $region48
        $region47: #{tpu_custom_call.1} parent=39 // pred_region
          %p296 = scmp.lt.s32.totalorder %s18, 1
          %s297 = scalar_select %p296, %s18, 1
          %s298 = smul.addr %s297, 2
          %s299 = smul.addr %s298, 8
          %s300 = scalar_lea.vmem %s1, %s299
        $region48: #{tpu_custom_call.1} parent=39 // pred_fallthru
          _
        // Predicated region
        $region49: #{tpu_custom_call.1} parent=39 // pred_check
          %p301 = pneg %p90
        $region50: #{tpu_custom_call.1} parent=39 // pred_check_branch
          %303 = sbr.rel (%p301) target = $region52
        $region51: #{tpu_custom_call.1} parent=39 // pred_region
          %p304 = scmp.lt.s32.totalorder %s18, 1
          %s305 = scalar_select %p304, %s18, 1
          %s306 = smul.addr %s305, 2
          %s307 = smul.addr %s306, 8
          %s308 = scalar_lea.vmem %s2, %s307
        $region52: #{tpu_custom_call.1} parent=39 // pred_fallthru
          _
      $region40: #{tpu_custom_call.1} parent=5 // pred_fallthru
        _
      %p309 = scmp.le.s32.totalorder 1, %s18
      %p310 = scmp.lt.s32.totalorder %s18, 3
      %p311 = pnand %p309, %p310
      %p312 = pneg %p311
      // Predicated region
      $region53: #{tpu_custom_call.1} parent=5 // pred_check
        _
      $region54: #{tpu_custom_call.1} parent=5 // pred_check_branch
        %314 = sbr.rel (%p311) target = $region56
      $region55: #{tpu_custom_call.1} parent=5 // pred_region
        %s315 = ssub.s32 %s18, 1
        %p316 = scmp.lt.s32.totalorder %s23, 1
        %s317 = scalar_select %p316, %s23, 1
        %s318 = smul.addr %s317, 2
        %s319 = smul.addr %s318, 8
        %s320 = scalar_lea.vmem %s0, %s319
        %p321 = pneg %p44
        %p322 = pneg %p41
        %p323 = scmp.lt.s32.totalorder %s23, 1
        %s324 = scalar_select %p323, %s23, 1
        %s325 = smul.addr %s324, 2
        %s326 = smul.addr %s325, 8
        %s327 = scalar_lea.vmem %s1, %s326
        %p328 = pneg %p70
        %p329 = pneg %p67
        %p330 = scmp.lt.s32.totalorder %s23, 1
        %s331 = scalar_select %p330, %s23, 1
        %s332 = smul.addr %s331, 2
        %s333 = smul.addr %s332, 8
        %s334 = scalar_lea.vmem %s2, %s333
        %p335 = pneg %p96
        %p336 = pneg %p93
        %p337 = pneg %p117
        %p338 = pneg %p114
        %p339 = pneg %p138
        %p340 = pneg %p135
        %p341 = pneg %p159
        %p342 = pneg %p156
        %p343 = pneg %p180
        %p344 = pneg %p177
        %p345 = pneg %p201
        %p346 = pneg %p198
        %p347 = pneg %p222
        %p348 = pneg %p219
        %p349 = pneg %p248
        %p350 = pneg %p245
        %s351 = sand.u32 %s235, 1
        %s352 = scalar_lea.sflag [#allocation3], %s351
        %s353 = sand.u32 %s235, 1
        %s354 = smul.addr %s353, 16
        %s355 = scalar_lea.vmem [#allocation2], %s354
        %p356 = scmp.lt.s32.totalorder %s23, 1
        %s357 = scalar_select %p356, %s23, 1
        %s358 = smul.addr %s357, 2
        %s359 = smul.addr %s358, 8
        %s360 = scalar_lea.vmem %s0, %s359
        %p361 = scmp.lt.s32.totalorder %s23, 1
        %s362 = scalar_select %p361, %s23, 1
        %s363 = smul.addr %s362, 2
        %s364 = smul.addr %s363, 8
        %s365 = scalar_lea.vmem %s1, %s364
        %p366 = scmp.lt.s32.totalorder %s23, 1
        %s367 = scalar_select %p366, %s23, 1
        %s368 = smul.addr %s367, 2
        %s369 = smul.addr %s368, 8
        %s370 = scalar_lea.vmem %s2, %s369
        %v372 = vld [vmem:[%s360] sm:$0xff]
        %v373 = vld [vmem:[%s360 + $0x8] sm:$0xff]
        %v374 = vld [vmem:[%s365] sm:$0xff]
        %v375 = vld [vmem:[%s365 + $0x8] sm:$0xff]
        %v376 = vld [vmem:[%s370] sm:$0xff]
        %v377 = vld [vmem:[%s370 + $0x8] sm:$0xff]
        %v378 = vpack.c.bf16 %v373, %v372
        %v379 = vpack.c.bf16 %v375, %v374
        %v380 = vpack.c.bf16 %v377, %v376
        %v381 = vld [vmem:[%s3] sm:$0xf]
        %v382 = vld [vmem:[%s3 + $0x4] sm:$0xf]
        %v383 = vld [vmem:[%s3 + $0x8] sm:$0xf]
        %v384 = vld [vmem:[%s3 + $0xc] sm:$0xf]
        %v385 = vld [vmem:[%s3 + $0x10] sm:$0xf]
        %v386 = vld [vmem:[%s3 + $0x14] sm:$0xf]
        %v387 = vld [vmem:[%s3 + $0x18] sm:$0xf]
        %v388 = vld [vmem:[%s3 + $0x1c] sm:$0xf]
        %v389 = vld [vmem:[%s3 + $0x20] sm:$0xf]
        %v390 = vld [vmem:[%s3 + $0x24] sm:$0xf]
        %v391 = vld [vmem:[%s3 + $0x28] sm:$0xf]
        %v392 = vld [vmem:[%s3 + $0x2c] sm:$0xf]
        %v393 = vld [vmem:[%s3 + $0x30] sm:$0xf]
        %v394 = vld [vmem:[%s3 + $0x34] sm:$0xf]
        %v395 = vld [vmem:[%s3 + $0x38] sm:$0xf]
        %v396 = vld [vmem:[%s3 + $0x3c] sm:$0xf]
        %v397 = vld [vmem:[%s3 + $0x40] sm:$0xf]
        %v398 = vld [vmem:[%s3 + $0x44] sm:$0xf]
        %v399 = vld [vmem:[%s3 + $0x48] sm:$0xf]
        %v400 = vld [vmem:[%s3 + $0x4c] sm:$0xf]
        %v401 = vld [vmem:[%s3 + $0x50] sm:$0xf]
        %v402 = vld [vmem:[%s3 + $0x54] sm:$0xf]
        %v403 = vld [vmem:[%s3 + $0x58] sm:$0xf]
        %v404 = vld [vmem:[%s3 + $0x5c] sm:$0xf]
        %v405 = vld [vmem:[%s3 + $0x60] sm:$0xf]
        %v406 = vld [vmem:[%s3 + $0x64] sm:$0xf]
        %v407 = vld [vmem:[%s3 + $0x68] sm:$0xf]
        %v408 = vld [vmem:[%s3 + $0x6c] sm:$0xf]
        %v409 = vld [vmem:[%s3 + $0x70] sm:$0xf]
        %v410 = vld [vmem:[%s3 + $0x74] sm:$0xf]
        %v411 = vld [vmem:[%s3 + $0x78] sm:$0xf]
        %v412 = vld [vmem:[%s3 + $0x7c] sm:$0xf]
        %v413 = vld [vmem:[%s3 + $0x80] sm:$0xf]
        %v414 = vld [vmem:[%s3 + $0x84] sm:$0xf]
        %v415 = vld [vmem:[%s3 + $0x88] sm:$0xf]
        %v416 = vld [vmem:[%s3 + $0x8c] sm:$0xf]
        %v417 = vld [vmem:[%s3 + $0x90] sm:$0xf]
        %v418 = vld [vmem:[%s3 + $0x94] sm:$0xf]
        %v419 = vld [vmem:[%s3 + $0x98] sm:$0xf]
        %v420 = vld [vmem:[%s3 + $0x9c] sm:$0xf]
        %v421 = vld [vmem:[%s3 + $0xa0] sm:$0xf]
        %v422 = vld [vmem:[%s3 + $0xa4] sm:$0xf]
        %v423 = vld [vmem:[%s3 + $0xa8] sm:$0xf]
        %v424 = vld [vmem:[%s3 + $0xac] sm:$0xf]
        %v425 = vld [vmem:[%s3 + $0xb0] sm:$0xf]
        %v426 = vld [vmem:[%s3 + $0xb4] sm:$0xf]
        %v427 = vld [vmem:[%s3 + $0xb8] sm:$0xf]
        %v428 = vld [vmem:[%s3 + $0xbc] sm:$0xf]
        %v429 = vld [vmem:[%s3 + $0xc0] sm:$0xf]
        %v430 = vld [vmem:[%s3 + $0xc4] sm:$0xf]
        %v431 = vld [vmem:[%s3 + $0xc8] sm:$0xf]
        %v432 = vld [vmem:[%s3 + $0xcc] sm:$0xf]
        %v433 = vld [vmem:[%s3 + $0xd0] sm:$0xf]
        %v434 = vld [vmem:[%s3 + $0xd4] sm:$0xf]
        %v435 = vld [vmem:[%s3 + $0xd8] sm:$0xf]
        %v436 = vld [vmem:[%s3 + $0xdc] sm:$0xf]
        %v437 = vld [vmem:[%s3 + $0xe0] sm:$0xf]
        %v438 = vld [vmem:[%s3 + $0xe4] sm:$0xf]
        %v439 = vld [vmem:[%s3 + $0xe8] sm:$0xf]
        %v440 = vld [vmem:[%s3 + $0xec] sm:$0xf]
        %v441 = vld [vmem:[%s3 + $0xf0] sm:$0xf]
        %v442 = vld [vmem:[%s3 + $0xf4] sm:$0xf]
        %v443 = vld [vmem:[%s3 + $0xf8] sm:$0xf]
        %v444 = vld [vmem:[%s3 + $0xfc] sm:$0xf]
        %v445 = vld [vmem:[%s3 + $0x100] sm:$0xf]
        %v446 = vld [vmem:[%s3 + $0x104] sm:$0xf]
        %v447 = vld [vmem:[%s3 + $0x108] sm:$0xf]
        %v448 = vld [vmem:[%s3 + $0x10c] sm:$0xf]
        %v449 = vld [vmem:[%s3 + $0x110] sm:$0xf]
        %v450 = vld [vmem:[%s3 + $0x114] sm:$0xf]
        %v451 = vld [vmem:[%s3 + $0x118] sm:$0xf]
        %v452 = vld [vmem:[%s3 + $0x11c] sm:$0xf]
        %v453 = vld [vmem:[%s3 + $0x120] sm:$0xf]
        %v454 = vld [vmem:[%s3 + $0x124] sm:$0xf]
        %v455 = vld [vmem:[%s3 + $0x128] sm:$0xf]
        %v456 = vld [vmem:[%s3 + $0x12c] sm:$0xf]
        %v457 = vld [vmem:[%s3 + $0x130] sm:$0xf]
        %v458 = vld [vmem:[%s3 + $0x134] sm:$0xf]
        %v459 = vld [vmem:[%s3 + $0x138] sm:$0xf]
        %v460 = vld [vmem:[%s3 + $0x13c] sm:$0xf]
        %v461 = vld [vmem:[%s3 + $0x140] sm:$0xf]
        %v462 = vld [vmem:[%s3 + $0x144] sm:$0xf]
        %v463 = vld [vmem:[%s3 + $0x148] sm:$0xf]
        %v464 = vld [vmem:[%s3 + $0x14c] sm:$0xf]
        %v465 = vld [vmem:[%s3 + $0x150] sm:$0xf]
        %v466 = vld [vmem:[%s3 + $0x154] sm:$0xf]
        %v467 = vld [vmem:[%s3 + $0x158] sm:$0xf]
        %v468 = vld [vmem:[%s3 + $0x15c] sm:$0xf]
        %v469 = vld [vmem:[%s3 + $0x160] sm:$0xf]
        %v470 = vld [vmem:[%s3 + $0x164] sm:$0xf]
        %v471 = vld [vmem:[%s3 + $0x168] sm:$0xf]
        %v472 = vld [vmem:[%s3 + $0x16c] sm:$0xf]
        %v473 = vld [vmem:[%s3 + $0x170] sm:$0xf]
        %v474 = vld [vmem:[%s3 + $0x174] sm:$0xf]
        %v475 = vld [vmem:[%s3 + $0x178] sm:$0xf]
        %v476 = vld [vmem:[%s3 + $0x17c] sm:$0xf]
        %v477 = vld [vmem:[%s3 + $0x180] sm:$0xf]
        %v478 = vld [vmem:[%s3 + $0x184] sm:$0xf]
        %v479 = vld [vmem:[%s3 + $0x188] sm:$0xf]
        %v480 = vld [vmem:[%s3 + $0x18c] sm:$0xf]
        %v481 = vld [vmem:[%s3 + $0x190] sm:$0xf]
        %v482 = vld [vmem:[%s3 + $0x194] sm:$0xf]
        %v483 = vld [vmem:[%s3 + $0x198] sm:$0xf]
        %v484 = vld [vmem:[%s3 + $0x19c] sm:$0xf]
        %v485 = vld [vmem:[%s3 + $0x1a0] sm:$0xf]
        %v486 = vld [vmem:[%s3 + $0x1a4] sm:$0xf]
        %v487 = vld [vmem:[%s3 + $0x1a8] sm:$0xf]
        %v488 = vld [vmem:[%s3 + $0x1ac] sm:$0xf]
        %v489 = vld [vmem:[%s3 + $0x1b0] sm:$0xf]
        %v490 = vld [vmem:[%s3 + $0x1b4] sm:$0xf]
        %v491 = vld [vmem:[%s3 + $0x1b8] sm:$0xf]
        %v492 = vld [vmem:[%s3 + $0x1bc] sm:$0xf]
        %v493 = vld [vmem:[%s3 + $0x1c0] sm:$0xf]
        %v494 = vld [vmem:[%s3 + $0x1c4] sm:$0xf]
        %v495 = vld [vmem:[%s3 + $0x1c8] sm:$0xf]
        %v496 = vld [vmem:[%s3 + $0x1cc] sm:$0xf]
        %v497 = vld [vmem:[%s3 + $0x1d0] sm:$0xf]
        %v498 = vld [vmem:[%s3 + $0x1d4] sm:$0xf]
        %v499 = vld [vmem:[%s3 + $0x1d8] sm:$0xf]
        %v500 = vld [vmem:[%s3 + $0x1dc] sm:$0xf]
        %v501 = vld [vmem:[%s3 + $0x1e0] sm:$0xf]
        %v502 = vld [vmem:[%s3 + $0x1e4] sm:$0xf]
        %v503 = vld [vmem:[%s3 + $0x1e8] sm:$0xf]
        %v504 = vld [vmem:[%s3 + $0x1ec] sm:$0xf]
        %v505 = vld [vmem:[%s3 + $0x1f0] sm:$0xf]
        %v506 = vld [vmem:[%s3 + $0x1f4] sm:$0xf]
        %v507 = vld [vmem:[%s3 + $0x1f8] sm:$0xf]
        %v508 = vld [vmem:[%s3 + $0x1fc] sm:$0xf]
        %v525 = vunpack.c.l.b16 %v381
        %v526 = vunpack.c.l.b16 %v382
        %v527 = vunpack.c.l.b16 %v383
        %v528 = vunpack.c.l.b16 %v384
        %v529 = vunpack.c.l.b16 %v385
        %v530 = vunpack.c.l.b16 %v386
        %v531 = vunpack.c.l.b16 %v387
        %v532 = vunpack.c.l.b16 %v388
        %v533 = vunpack.c.l.b16 %v389
        %v534 = vunpack.c.l.b16 %v390
        %v535 = vunpack.c.l.b16 %v391
        %v536 = vunpack.c.l.b16 %v392
        %v537 = vunpack.c.l.b16 %v393
        %v538 = vunpack.c.l.b16 %v394
        %v539 = vunpack.c.l.b16 %v395
        %v540 = vunpack.c.l.b16 %v396
        %v541 = vpack.c.b16 %v526, %v525
        %v542 = vpack.c.b16 %v528, %v527
        %v543 = vpack.c.b16 %v530, %v529
        %v544 = vpack.c.b16 %v532, %v531
        %v545 = vpack.c.b16 %v534, %v533
        %v546 = vpack.c.b16 %v536, %v535
        %v547 = vpack.c.b16 %v538, %v537
        %v548 = vpack.c.b16 %v540, %v539
        %557 = vmatprep.subr.bf16.mxu0 0
        %558 = vmatpush1.bf16.msra.mxu0 %v541
        %559 = vmatprep.subr.bf16.mxu0 0
        %560 = vmatpush1.bf16.msra.mxu0 %v542
        %561 = vmatprep.subr.bf16.mxu0 0
        %562 = vmatpush1.bf16.msra.mxu0 %v543
        %563 = vmatprep.subr.bf16.mxu0 0
        %564 = vmatpush1.bf16.msra.mxu0 %v544
        %565 = vmatprep.subr.bf16.mxu0 0
        %566 = vmatpush1.bf16.msra.mxu0 %v545
        %567 = vmatprep.subr.bf16.mxu0 0
        %568 = vmatpush1.bf16.msra.mxu0 %v546
        %569 = vmatprep.subr.bf16.mxu0 0
        %570 = vmatpush1.bf16.msra.mxu0 %v547
        %571 = vmatprep.subr.bf16.mxu0 0
        %572 = vmatpush1.bf16.msra.mxu0 %v548
        %573 = vmatprep.subr.bf16.mxu0 0
        %574 = vmatpush1.bf16.msra.mxu0 0
        %575 = vmatprep.subr.bf16.mxu0 0
        %576 = vmatpush1.bf16.msra.mxu0 0
        %577 = vmatprep.subr.bf16.mxu0 0
        %578 = vmatpush1.bf16.msra.mxu0 0
        %579 = vmatprep.subr.bf16.mxu0 0
        %580 = vmatpush1.bf16.msra.mxu0 0
        %581 = vmatprep.subr.bf16.mxu0 0
        %582 = vmatpush1.bf16.msra.mxu0 0
        %583 = vmatprep.subr.bf16.mxu0 0
        %584 = vmatpush1.bf16.msra.mxu0 0
        %585 = vmatprep.subr.bf16.mxu0 0
        %586 = vmatpush1.bf16.msra.mxu0 0
        %587 = vmatprep.subr.bf16.mxu0 0
        %588 = vmatpush1.bf16.msra.mxu0 0
        %589 = vmatprep.mubr.bf16.mxu0 0
        %590 = vmatmul.mubr.bf16.gmra.mrb[0].mxu0 %v378
        %v591 = vpop.f32.mrb[0].mxu0
        %v592 = vadd.f32 0.0, %v591
        %v593 = vpop.f32.mrb[0].mxu0
        %v594 = vpop.f32.mrb[0].mxu0
        %v595 = vadd.f32 0.0, %v594
        %v596 = vpop.f32.mrb[0].mxu0
        %597 = vdwg.mxu0
        %v614 = vunpack.c.l.b16 %v397
        %v615 = vunpack.c.l.b16 %v398
        %v616 = vunpack.c.l.b16 %v399
        %v617 = vunpack.c.l.b16 %v400
        %v618 = vunpack.c.l.b16 %v401
        %v619 = vunpack.c.l.b16 %v402
        %v620 = vunpack.c.l.b16 %v403
        %v621 = vunpack.c.l.b16 %v404
        %v622 = vunpack.c.l.b16 %v405
        %v623 = vunpack.c.l.b16 %v406
        %v624 = vunpack.c.l.b16 %v407
        %v625 = vunpack.c.l.b16 %v408
        %v626 = vunpack.c.l.b16 %v409
        %v627 = vunpack.c.l.b16 %v410
        %v628 = vunpack.c.l.b16 %v411
        %v629 = vunpack.c.l.b16 %v412
        %v630 = vpack.c.b16 %v615, %v614
        %v631 = vpack.c.b16 %v617, %v616
        %v632 = vpack.c.b16 %v619, %v618
        %v633 = vpack.c.b16 %v621, %v620
        %v634 = vpack.c.b16 %v623, %v622
        %v635 = vpack.c.b16 %v625, %v624
        %v636 = vpack.c.b16 %v627, %v626
        %v637 = vpack.c.b16 %v629, %v628
        %646 = vmatprep.subr.bf16.mxu0 0
        %647 = vmatpush1.bf16.msra.mxu0 %v630
        %648 = vmatprep.subr.bf16.mxu0 0
        %649 = vmatpush1.bf16.msra.mxu0 %v631
        %650 = vmatprep.subr.bf16.mxu0 0
        %651 = vmatpush1.bf16.msra.mxu0 %v632
        %652 = vmatprep.subr.bf16.mxu0 0
        %653 = vmatpush1.bf16.msra.mxu0 %v633
        %654 = vmatprep.subr.bf16.mxu0 0
        %655 = vmatpush1.bf16.msra.mxu0 %v634
        %656 = vmatprep.subr.bf16.mxu0 0
        %657 = vmatpush1.bf16.msra.mxu0 %v635
        %658 = vmatprep.subr.bf16.mxu0 0
        %659 = vmatpush1.bf16.msra.mxu0 %v636
        %660 = vmatprep.subr.bf16.mxu0 0
        %661 = vmatpush1.bf16.msra.mxu0 %v637
        %662 = vmatprep.subr.bf16.mxu0 0
        %663 = vmatpush1.bf16.msra.mxu0 0
        %664 = vmatprep.subr.bf16.mxu0 0
        %665 = vmatpush1.bf16.msra.mxu0 0
        %666 = vmatprep.subr.bf16.mxu0 0
        %667 = vmatpush1.bf16.msra.mxu0 0
        %668 = vmatprep.subr.bf16.mxu0 0
        %669 = vmatpush1.bf16.msra.mxu0 0
        %670 = vmatprep.subr.bf16.mxu0 0
        %671 = vmatpush1.bf16.msra.mxu0 0
        %672 = vmatprep.subr.bf16.mxu0 0
        %673 = vmatpush1.bf16.msra.mxu0 0
        %674 = vmatprep.subr.bf16.mxu0 0
        %675 = vmatpush1.bf16.msra.mxu0 0
        %676 = vmatprep.subr.bf16.mxu0 0
        %677 = vmatpush1.bf16.msra.mxu0 0
        %678 = vmatprep.mubr.bf16.mxu0 0
        %679 = vmatmul.mubr.bf16.gmra.mrb[0].mxu0 %v378
        %v680 = vpop.f32.mrb[0].mxu0
        %v681 = vadd.f32 0.0, %v680
        %v682 = vpop.f32.mrb[0].mxu0
        %v683 = vpop.f32.mrb[0].mxu0
        %v684 = vadd.f32 0.0, %v683
        %v685 = vpop.f32.mrb[0].mxu0
        %686 = vdwg.mxu0
        %v703 = vunpack.c.l.b16 %v413
        %v704 = vunpack.c.l.b16 %v414
        %v705 = vunpack.c.l.b16 %v415
        %v706 = vunpack.c.l.b16 %v416
        %v707 = vunpack.c.l.b16 %v417
        %v708 = vunpack.c.l.b16 %v418
        %v709 = vunpack.c.l.b16 %v419
        %v710 = vunpack.c.l.b16 %v420
        %v711 = vunpack.c.l.b16 %v421
        %v712 = vunpack.c.l.b16 %v422
        %v713 = vunpack.c.l.b16 %v423
        %v714 = vunpack.c.l.b16 %v424
        %v715 = vunpack.c.l.b16 %v425
        %v716 = vunpack.c.l.b16 %v426
        %v717 = vunpack.c.l.b16 %v427
        %v718 = vunpack.c.l.b16 %v428
        %v719 = vpack.c.b16 %v704, %v703
        %v720 = vpack.c.b16 %v706, %v705
        %v721 = vpack.c.b16 %v708, %v707
        %v722 = vpack.c.b16 %v710, %v709
        %v723 = vpack.c.b16 %v712, %v711
        %v724 = vpack.c.b16 %v714, %v713
        %v725 = vpack.c.b16 %v716, %v715
        %v726 = vpack.c.b16 %v718, %v717
        %735 = vmatprep.subr.bf16.mxu0 0
        %736 = vmatpush1.bf16.msra.mxu0 %v719
        %737 = vmatprep.subr.bf16.mxu0 0
        %738 = vmatpush1.bf16.msra.mxu0 %v720
        %739 = vmatprep.subr.bf16.mxu0 0
        %740 = vmatpush1.bf16.msra.mxu0 %v721
        %741 = vmatprep.subr.bf16.mxu0 0
        %742 = vmatpush1.bf16.msra.mxu0 %v722
        %743 = vmatprep.subr.bf16.mxu0 0
        %744 = vmatpush1.bf16.msra.mxu0 %v723
        %745 = vmatprep.subr.bf16.mxu0 0
        %746 = vmatpush1.bf16.msra.mxu0 %v724
        %747 = vmatprep.subr.bf16.mxu0 0
        %748 = vmatpush1.bf16.msra.mxu0 %v725
        %749 = vmatprep.subr.bf16.mxu0 0
        %750 = vmatpush1.bf16.msra.mxu0 %v726
        %751 = vmatprep.subr.bf16.mxu0 0
        %752 = vmatpush1.bf16.msra.mxu0 0
        %753 = vmatprep.subr.bf16.mxu0 0
        %754 = vmatpush1.bf16.msra.mxu0 0
        %755 = vmatprep.subr.bf16.mxu0 0
        %756 = vmatpush1.bf16.msra.mxu0 0
        %757 = vmatprep.subr.bf16.mxu0 0
        %758 = vmatpush1.bf16.msra.mxu0 0
        %759 = vmatprep.subr.bf16.mxu0 0
        %760 = vmatpush1.bf16.msra.mxu0 0
        %761 = vmatprep.subr.bf16.mxu0 0
        %762 = vmatpush1.bf16.msra.mxu0 0
        %763 = vmatprep.subr.bf16.mxu0 0
        %764 = vmatpush1.bf16.msra.mxu0 0
        %765 = vmatprep.subr.bf16.mxu0 0
        %766 = vmatpush1.bf16.msra.mxu0 0
        %767 = vmatprep.mubr.bf16.mxu0 0
        %768 = vmatmul.mubr.bf16.gmra.mrb[0].mxu0 %v378
        %v769 = vpop.f32.mrb[0].mxu0
        %v770 = vadd.f32 0.0, %v769
        %v771 = vpop.f32.mrb[0].mxu0
        %v772 = vpop.f32.mrb[0].mxu0
        %v773 = vadd.f32 0.0, %v772
        %v774 = vpop.f32.mrb[0].mxu0
        %775 = vdwg.mxu0
        %v792 = vunpack.c.l.b16 %v429
        %v793 = vunpack.c.l.b16 %v430
        %v794 = vunpack.c.l.b16 %v431
        %v795 = vunpack.c.l.b16 %v432
        %v796 = vunpack.c.l.b16 %v433
        %v797 = vunpack.c.l.b16 %v434
        %v798 = vunpack.c.l.b16 %v435
        %v799 = vunpack.c.l.b16 %v436
        %v800 = vunpack.c.l.b16 %v437
        %v801 = vunpack.c.l.b16 %v438
        %v802 = vunpack.c.l.b16 %v439
        %v803 = vunpack.c.l.b16 %v440
        %v804 = vunpack.c.l.b16 %v441
        %v805 = vunpack.c.l.b16 %v442
        %v806 = vunpack.c.l.b16 %v443
        %v807 = vunpack.c.l.b16 %v444
        %v808 = vpack.c.b16 %v793, %v792
        %v809 = vpack.c.b16 %v795, %v794
        %v810 = vpack.c.b16 %v797, %v796
        %v811 = vpack.c.b16 %v799, %v798
        %v812 = vpack.c.b16 %v801, %v800
        %v813 = vpack.c.b16 %v803, %v802
        %v814 = vpack.c.b16 %v805, %v804
        %v815 = vpack.c.b16 %v807, %v806
        %824 = vmatprep.subr.bf16.mxu0 0
        %825 = vmatpush1.bf16.msra.mxu0 %v808
        %826 = vmatprep.subr.bf16.mxu0 0
        %827 = vmatpush1.bf16.msra.mxu0 %v809
        %828 = vmatprep.subr.bf16.mxu0 0
        %829 = vmatpush1.bf16.msra.mxu0 %v810
        %830 = vmatprep.subr.bf16.mxu0 0
        %831 = vmatpush1.bf16.msra.mxu0 %v811
        %832 = vmatprep.subr.bf16.mxu0 0
        %833 = vmatpush1.bf16.msra.mxu0 %v812
        %834 = vmatprep.subr.bf16.mxu0 0
        %835 = vmatpush1.bf16.msra.mxu0 %v813
        %836 = vmatprep.subr.bf16.mxu0 0
        %837 = vmatpush1.bf16.msra.mxu0 %v814
        %838 = vmatprep.subr.bf16.mxu0 0
        %839 = vmatpush1.bf16.msra.mxu0 %v815
        %840 = vmatprep.subr.bf16.mxu0 0
        %841 = vmatpush1.bf16.msra.mxu0 0
        %842 = vmatprep.subr.bf16.mxu0 0
        %843 = vmatpush1.bf16.msra.mxu0 0
        %844 = vmatprep.subr.bf16.mxu0 0
        %845 = vmatpush1.bf16.msra.mxu0 0
        %846 = vmatprep.subr.bf16.mxu0 0
        %847 = vmatpush1.bf16.msra.mxu0 0
        %848 = vmatprep.subr.bf16.mxu0 0
        %849 = vmatpush1.bf16.msra.mxu0 0
        %850 = vmatprep.subr.bf16.mxu0 0
        %851 = vmatpush1.bf16.msra.mxu0 0
        %852 = vmatprep.subr.bf16.mxu0 0
        %853 = vmatpush1.bf16.msra.mxu0 0
        %854 = vmatprep.subr.bf16.mxu0 0
        %855 = vmatpush1.bf16.msra.mxu0 0
        %856 = vmatprep.mubr.bf16.mxu0 0
        %857 = vmatmul.mubr.bf16.gmra.mrb[0].mxu0 %v378
        %v858 = vpop.f32.mrb[0].mxu0
        %v859 = vadd.f32 0.0, %v858
        %v860 = vpop.f32.mrb[0].mxu0
        %v861 = vpop.f32.mrb[0].mxu0
        %v862 = vadd.f32 0.0, %v861
        %v863 = vpop.f32.mrb[0].mxu0
        %864 = vdwg.mxu0
        %v881 = vunpack.c.l.b16 %v445
        %v882 = vunpack.c.l.b16 %v446
        %v883 = vunpack.c.l.b16 %v447
        %v884 = vunpack.c.l.b16 %v448
        %v885 = vunpack.c.l.b16 %v449
        %v886 = vunpack.c.l.b16 %v450
        %v887 = vunpack.c.l.b16 %v451
        %v888 = vunpack.c.l.b16 %v452
        %v889 = vunpack.c.l.b16 %v453
        %v890 = vunpack.c.l.b16 %v454
        %v891 = vunpack.c.l.b16 %v455
        %v892 = vunpack.c.l.b16 %v456
        %v893 = vunpack.c.l.b16 %v457
        %v894 = vunpack.c.l.b16 %v458
        %v895 = vunpack.c.l.b16 %v459
        %v896 = vunpack.c.l.b16 %v460
        %v897 = vpack.c.b16 %v882, %v881
        %v898 = vpack.c.b16 %v884, %v883
        %v899 = vpack.c.b16 %v886, %v885
        %v900 = vpack.c.b16 %v888, %v887
        %v901 = vpack.c.b16 %v890, %v889
        %v902 = vpack.c.b16 %v892, %v891
        %v903 = vpack.c.b16 %v894, %v893
        %v904 = vpack.c.b16 %v896, %v895
        %913 = vmatprep.subr.bf16.mxu0 0
        %914 = vmatpush1.bf16.msra.mxu0 %v897
        %915 = vmatprep.subr.bf16.mxu0 0
        %916 = vmatpush1.bf16.msra.mxu0 %v898
        %917 = vmatprep.subr.bf16.mxu0 0
        %918 = vmatpush1.bf16.msra.mxu0 %v899
        %919 = vmatprep.subr.bf16.mxu0 0
        %920 = vmatpush1.bf16.msra.mxu0 %v900
        %921 = vmatprep.subr.bf16.mxu0 0
        %922 = vmatpush1.bf16.msra.mxu0 %v901
        %923 = vmatprep.subr.bf16.mxu0 0
        %924 = vmatpush1.bf16.msra.mxu0 %v902
        %925 = vmatprep.subr.bf16.mxu0 0
        %926 = vmatpush1.bf16.msra.mxu0 %v903
        %927 = vmatprep.subr.bf16.mxu0 0
        %928 = vmatpush1.bf16.msra.mxu0 %v904
        %929 = vmatprep.subr.bf16.mxu0 0
        %930 = vmatpush1.bf16.msra.mxu0 0
        %931 = vmatprep.subr.bf16.mxu0 0
        %932 = vmatpush1.bf16.msra.mxu0 0
        %933 = vmatprep.subr.bf16.mxu0 0
        %934 = vmatpush1.bf16.msra.mxu0 0
        %935 = vmatprep.subr.bf16.mxu0 0
        %936 = vmatpush1.bf16.msra.mxu0 0
        %937 = vmatprep.subr.bf16.mxu0 0
        %938 = vmatpush1.bf16.msra.mxu0 0
        %939 = vmatprep.subr.bf16.mxu0 0
        %940 = vmatpush1.bf16.msra.mxu0 0
        %941 = vmatprep.subr.bf16.mxu0 0
        %942 = vmatpush1.bf16.msra.mxu0 0
        %943 = vmatprep.subr.bf16.mxu0 0
        %944 = vmatpush1.bf16.msra.mxu0 0
        %945 = vmatprep.mubr.bf16.mxu0 0
        %946 = vmatmul.mubr.bf16.gmra.mrb[0].mxu0 %v378
        %v947 = vpop.f32.mrb[0].mxu0
        %v948 = vadd.f32 0.0, %v947
        %v949 = vpop.f32.mrb[0].mxu0
        %v950 = vpop.f32.mrb[0].mxu0
        %v951 = vadd.f32 0.0, %v950
        %v952 = vpop.f32.mrb[0].mxu0
        %953 = vdwg.mxu0
        %v970 = vunpack.c.l.b16 %v461
        %v971 = vunpack.c.l.b16 %v462
        %v972 = vunpack.c.l.b16 %v463
        %v973 = vunpack.c.l.b16 %v464
        %v974 = vunpack.c.l.b16 %v465
        %v975 = vunpack.c.l.b16 %v466
        %v976 = vunpack.c.l.b16 %v467
        %v977 = vunpack.c.l.b16 %v468
        %v978 = vunpack.c.l.b16 %v469
        %v979 = vunpack.c.l.b16 %v470
        %v980 = vunpack.c.l.b16 %v471
        %v981 = vunpack.c.l.b16 %v472
        %v982 = vunpack.c.l.b16 %v473
        %v983 = vunpack.c.l.b16 %v474
        %v984 = vunpack.c.l.b16 %v475
        %v985 = vunpack.c.l.b16 %v476
        %v986 = vpack.c.b16 %v971, %v970
        %v987 = vpack.c.b16 %v973, %v972
        %v988 = vpack.c.b16 %v975, %v974
        %v989 = vpack.c.b16 %v977, %v976
        %v990 = vpack.c.b16 %v979, %v978
        %v991 = vpack.c.b16 %v981, %v980
        %v992 = vpack.c.b16 %v983, %v982
        %v993 = vpack.c.b16 %v985, %v984
        %1002 = vmatprep.subr.bf16.mxu0 0
        %1003 = vmatpush1.bf16.msra.mxu0 %v986
        %1004 = vmatprep.subr.bf16.mxu0 0
        %1005 = vmatpush1.bf16.msra.mxu0 %v987
        %1006 = vmatprep.subr.bf16.mxu0 0
        %1007 = vmatpush1.bf16.msra.mxu0 %v988
        %1008 = vmatprep.subr.bf16.mxu0 0
        %1009 = vmatpush1.bf16.msra.mxu0 %v989
        %1010 = vmatprep.subr.bf16.mxu0 0
        %1011 = vmatpush1.bf16.msra.mxu0 %v990
        %1012 = vmatprep.subr.bf16.mxu0 0
        %1013 = vmatpush1.bf16.msra.mxu0 %v991
        %1014 = vmatprep.subr.bf16.mxu0 0
        %1015 = vmatpush1.bf16.msra.mxu0 %v992
        %1016 = vmatprep.subr.bf16.mxu0 0
        %1017 = vmatpush1.bf16.msra.mxu0 %v993
        %1018 = vmatprep.subr.bf16.mxu0 0
        %1019 = vmatpush1.bf16.msra.mxu0 0
        %1020 = vmatprep.subr.bf16.mxu0 0
        %1021 = vmatpush1.bf16.msra.mxu0 0
        %1022 = vmatprep.subr.bf16.mxu0 0
        %1023 = vmatpush1.bf16.msra.mxu0 0
        %1024 = vmatprep.subr.bf16.mxu0 0
        %1025 = vmatpush1.bf16.msra.mxu0 0
        %1026 = vmatprep.subr.bf16.mxu0 0
        %1027 = vmatpush1.bf16.msra.mxu0 0
        %1028 = vmatprep.subr.bf16.mxu0 0
        %1029 = vmatpush1.bf16.msra.mxu0 0
        %1030 = vmatprep.subr.bf16.mxu0 0
        %1031 = vmatpush1.bf16.msra.mxu0 0
        %1032 = vmatprep.subr.bf16.mxu0 0
        %1033 = vmatpush1.bf16.msra.mxu0 0
        %1034 = vmatprep.mubr.bf16.mxu0 0
        %1035 = vmatmul.mubr.bf16.gmra.mrb[0].mxu0 %v378
        %v1036 = vpop.f32.mrb[0].mxu0
        %v1037 = vadd.f32 0.0, %v1036
        %v1038 = vpop.f32.mrb[0].mxu0
        %v1039 = vpop.f32.mrb[0].mxu0
        %v1040 = vadd.f32 0.0, %v1039
        %v1041 = vpop.f32.mrb[0].mxu0
        %1042 = vdwg.mxu0
        %v1059 = vunpack.c.l.b16 %v477
        %v1060 = vunpack.c.l.b16 %v478
        %v1061 = vunpack.c.l.b16 %v479
        %v1062 = vunpack.c.l.b16 %v480
        %v1063 = vunpack.c.l.b16 %v481
        %v1064 = vunpack.c.l.b16 %v482
        %v1065 = vunpack.c.l.b16 %v483
        %v1066 = vunpack.c.l.b16 %v484
        %v1067 = vunpack.c.l.b16 %v485
        %v1068 = vunpack.c.l.b16 %v486
        %v1069 = vunpack.c.l.b16 %v487
        %v1070 = vunpack.c.l.b16 %v488
        %v1071 = vunpack.c.l.b16 %v489
        %v1072 = vunpack.c.l.b16 %v490
        %v1073 = vunpack.c.l.b16 %v491
        %v1074 = vunpack.c.l.b16 %v492
        %v1075 = vpack.c.b16 %v1060, %v1059
        %v1076 = vpack.c.b16 %v1062, %v1061
        %v1077 = vpack.c.b16 %v1064, %v1063
        %v1078 = vpack.c.b16 %v1066, %v1065
        %v1079 = vpack.c.b16 %v1068, %v1067
        %v1080 = vpack.c.b16 %v1070, %v1069
        %v1081 = vpack.c.b16 %v1072, %v1071
        %v1082 = vpack.c.b16 %v1074, %v1073
        %1091 = vmatprep.subr.bf16.mxu0 0
        %1092 = vmatpush1.bf16.msra.mxu0 %v1075
        %1093 = vmatprep.subr.bf16.mxu0 0
        %1094 = vmatpush1.bf16.msra.mxu0 %v1076
        %1095 = vmatprep.subr.bf16.mxu0 0
        %1096 = vmatpush1.bf16.msra.mxu0 %v1077
        %1097 = vmatprep.subr.bf16.mxu0 0
        %1098 = vmatpush1.bf16.msra.mxu0 %v1078
        %1099 = vmatprep.subr.bf16.mxu0 0
        %1100 = vmatpush1.bf16.msra.mxu0 %v1079
        %1101 = vmatprep.subr.bf16.mxu0 0
        %1102 = vmatpush1.bf16.msra.mxu0 %v1080
        %1103 = vmatprep.subr.bf16.mxu0 0
        %1104 = vmatpush1.bf16.msra.mxu0 %v1081
        %1105 = vmatprep.subr.bf16.mxu0 0
        %1106 = vmatpush1.bf16.msra.mxu0 %v1082
        %1107 = vmatprep.subr.bf16.mxu0 0
        %1108 = vmatpush1.bf16.msra.mxu0 0
        %1109 = vmatprep.subr.bf16.mxu0 0
        %1110 = vmatpush1.bf16.msra.mxu0 0
        %1111 = vmatprep.subr.bf16.mxu0 0
        %1112 = vmatpush1.bf16.msra.mxu0 0
        %1113 = vmatprep.subr.bf16.mxu0 0
        %1114 = vmatpush1.bf16.msra.mxu0 0
        %1115 = vmatprep.subr.bf16.mxu0 0
        %1116 = vmatpush1.bf16.msra.mxu0 0
        %1117 = vmatprep.subr.bf16.mxu0 0
        %1118 = vmatpush1.bf16.msra.mxu0 0
        %1119 = vmatprep.subr.bf16.mxu0 0
        %1120 = vmatpush1.bf16.msra.mxu0 0
        %1121 = vmatprep.subr.bf16.mxu0 0
        %1122 = vmatpush1.bf16.msra.mxu0 0
        %1123 = vmatprep.mubr.bf16.mxu0 0
        %1124 = vmatmul.mubr.bf16.gmra.mrb[0].mxu0 %v378
        %v1125 = vpop.f32.mrb[0].mxu0
        %v1126 = vadd.f32 0.0, %v1125
        %v1127 = vpop.f32.mrb[0].mxu0
        %v1128 = vpop.f32.mrb[0].mxu0
        %v1129 = vadd.f32 0.0, %v1128
        %v1130 = vpop.f32.mrb[0].mxu0
        %1131 = vdwg.mxu0
        %v1148 = vunpack.c.l.b16 %v493
        %v1149 = vunpack.c.l.b16 %v494
        %v1150 = vunpack.c.l.b16 %v495
        %v1151 = vunpack.c.l.b16 %v496
        %v1152 = vunpack.c.l.b16 %v497
        %v1153 = vunpack.c.l.b16 %v498
        %v1154 = vunpack.c.l.b16 %v499
        %v1155 = vunpack.c.l.b16 %v500
        %v1156 = vunpack.c.l.b16 %v501
        %v1157 = vunpack.c.l.b16 %v502
        %v1158 = vunpack.c.l.b16 %v503
        %v1159 = vunpack.c.l.b16 %v504
        %v1160 = vunpack.c.l.b16 %v505
        %v1161 = vunpack.c.l.b16 %v506
        %v1162 = vunpack.c.l.b16 %v507
        %v1163 = vunpack.c.l.b16 %v508
        %v1164 = vpack.c.b16 %v1149, %v1148
        %v1165 = vpack.c.b16 %v1151, %v1150
        %v1166 = vpack.c.b16 %v1153, %v1152
        %v1167 = vpack.c.b16 %v1155, %v1154
        %v1168 = vpack.c.b16 %v1157, %v1156
        %v1169 = vpack.c.b16 %v1159, %v1158
        %v1170 = vpack.c.b16 %v1161, %v1160
        %v1171 = vpack.c.b16 %v1163, %v1162
        %1180 = vmatprep.subr.bf16.mxu0 0
        %1181 = vmatpush1.bf16.msra.mxu0 %v1164
        %1182 = vmatprep.subr.bf16.mxu0 0
        %1183 = vmatpush1.bf16.msra.mxu0 %v1165
        %1184 = vmatprep.subr.bf16.mxu0 0
        %1185 = vmatpush1.bf16.msra.mxu0 %v1166
        %1186 = vmatprep.subr.bf16.mxu0 0
        %1187 = vmatpush1.bf16.msra.mxu0 %v1167
        %1188 = vmatprep.subr.bf16.mxu0 0
        %1189 = vmatpush1.bf16.msra.mxu0 %v1168
        %1190 = vmatprep.subr.bf16.mxu0 0
        %1191 = vmatpush1.bf16.msra.mxu0 %v1169
        %1192 = vmatprep.subr.bf16.mxu0 0
        %1193 = vmatpush1.bf16.msra.mxu0 %v1170
        %1194 = vmatprep.subr.bf16.mxu0 0
        %1195 = vmatpush1.bf16.msra.mxu0 %v1171
        %1196 = vmatprep.subr.bf16.mxu0 0
        %1197 = vmatpush1.bf16.msra.mxu0 0
        %1198 = vmatprep.subr.bf16.mxu0 0
        %1199 = vmatpush1.bf16.msra.mxu0 0
        %1200 = vmatprep.subr.bf16.mxu0 0
        %1201 = vmatpush1.bf16.msra.mxu0 0
        %1202 = vmatprep.subr.bf16.mxu0 0
        %1203 = vmatpush1.bf16.msra.mxu0 0
        %1204 = vmatprep.subr.bf16.mxu0 0
        %1205 = vmatpush1.bf16.msra.mxu0 0
        %1206 = vmatprep.subr.bf16.mxu0 0
        %1207 = vmatpush1.bf16.msra.mxu0 0
        %1208 = vmatprep.subr.bf16.mxu0 0
        %1209 = vmatpush1.bf16.msra.mxu0 0
        %1210 = vmatprep.subr.bf16.mxu0 0
        %1211 = vmatpush1.bf16.msra.mxu0 0
        %1212 = vmatprep.mubr.bf16.mxu0 0
        %1213 = vmatmul.mubr.bf16.gmra.mrb[0].mxu0 %v378
        %v1214 = vpop.f32.mrb[0].mxu0
        %v1215 = vadd.f32 0.0, %v1214
        %v1216 = vpop.f32.mrb[0].mxu0
        %v1217 = vpop.f32.mrb[0].mxu0
        %v1218 = vadd.f32 0.0, %v1217
        %v1219 = vpop.f32.mrb[0].mxu0
        %1220 = vdwg.mxu0
        %v1221 = vpack.c.bf16 %v595, %v592
        %v1222 = vpack.c.bf16 %v684, %v681
        %v1223 = vpack.c.bf16 %v773, %v770
        %v1224 = vpack.c.bf16 %v862, %v859
        %v1225 = vpack.c.bf16 %v951, %v948
        %v1226 = vpack.c.bf16 %v1040, %v1037
        %v1227 = vpack.c.bf16 %v1129, %v1126
        %v1228 = vpack.c.bf16 %v1218, %v1215
        %v1229 = vld [vmem:[%s4] sm:$0xf]
        %v1230 = vld [vmem:[%s4 + $0x4] sm:$0xf]
        %v1231 = vld [vmem:[%s4 + $0x8] sm:$0xf]
        %v1232 = vld [vmem:[%s4 + $0xc] sm:$0xf]
        %v1233 = vld [vmem:[%s4 + $0x10] sm:$0xf]
        %v1234 = vld [vmem:[%s4 + $0x14] sm:$0xf]
        %v1235 = vld [vmem:[%s4 + $0x18] sm:$0xf]
        %v1236 = vld [vmem:[%s4 + $0x1c] sm:$0xf]
        %v1237 = vld [vmem:[%s4 + $0x20] sm:$0xf]
        %v1238 = vld [vmem:[%s4 + $0x24] sm:$0xf]
        %v1239 = vld [vmem:[%s4 + $0x28] sm:$0xf]
        %v1240 = vld [vmem:[%s4 + $0x2c] sm:$0xf]
        %v1241 = vld [vmem:[%s4 + $0x30] sm:$0xf]
        %v1242 = vld [vmem:[%s4 + $0x34] sm:$0xf]
        %v1243 = vld [vmem:[%s4 + $0x38] sm:$0xf]
        %v1244 = vld [vmem:[%s4 + $0x3c] sm:$0xf]
        %v1245 = vld [vmem:[%s4 + $0x40] sm:$0xf]
        %v1246 = vld [vmem:[%s4 + $0x44] sm:$0xf]
        %v1247 = vld [vmem:[%s4 + $0x48] sm:$0xf]
        %v1248 = vld [vmem:[%s4 + $0x4c] sm:$0xf]
        %v1249 = vld [vmem:[%s4 + $0x50] sm:$0xf]
        %v1250 = vld [vmem:[%s4 + $0x54] sm:$0xf]
        %v1251 = vld [vmem:[%s4 + $0x58] sm:$0xf]
        %v1252 = vld [vmem:[%s4 + $0x5c] sm:$0xf]
        %v1253 = vld [vmem:[%s4 + $0x60] sm:$0xf]
        %v1254 = vld [vmem:[%s4 + $0x64] sm:$0xf]
        %v1255 = vld [vmem:[%s4 + $0x68] sm:$0xf]
        %v1256 = vld [vmem:[%s4 + $0x6c] sm:$0xf]
        %v1257 = vld [vmem:[%s4 + $0x70] sm:$0xf]
        %v1258 = vld [vmem:[%s4 + $0x74] sm:$0xf]
        %v1259 = vld [vmem:[%s4 + $0x78] sm:$0xf]
        %v1260 = vld [vmem:[%s4 + $0x7c] sm:$0xf]
        %v1261 = vld [vmem:[%s4 + $0x80] sm:$0xf]
        %v1262 = vld [vmem:[%s4 + $0x84] sm:$0xf]
        %v1263 = vld [vmem:[%s4 + $0x88] sm:$0xf]
        %v1264 = vld [vmem:[%s4 + $0x8c] sm:$0xf]
        %v1265 = vld [vmem:[%s4 + $0x90] sm:$0xf]
        %v1266 = vld [vmem:[%s4 + $0x94] sm:$0xf]
        %v1267 = vld [vmem:[%s4 + $0x98] sm:$0xf]
        %v1268 = vld [vmem:[%s4 + $0x9c] sm:$0xf]
        %v1269 = vld [vmem:[%s4 + $0xa0] sm:$0xf]
        %v1270 = vld [vmem:[%s4 + $0xa4] sm:$0xf]
        %v1271 = vld [vmem:[%s4 + $0xa8] sm:$0xf]
        %v1272 = vld [vmem:[%s4 + $0xac] sm:$0xf]
        %v1273 = vld [vmem:[%s4 + $0xb0] sm:$0xf]
        %v1274 = vld [vmem:[%s4 + $0xb4] sm:$0xf]
        %v1275 = vld [vmem:[%s4 + $0xb8] sm:$0xf]
        %v1276 = vld [vmem:[%s4 + $0xbc] sm:$0xf]
        %v1277 = vld [vmem:[%s4 + $0xc0] sm:$0xf]
        %v1278 = vld [vmem:[%s4 + $0xc4] sm:$0xf]
        %v1279 = vld [vmem:[%s4 + $0xc8] sm:$0xf]
        %v1280 = vld [vmem:[%s4 + $0xcc] sm:$0xf]
        %v1281 = vld [vmem:[%s4 + $0xd0] sm:$0xf]
        %v1282 = vld [vmem:[%s4 + $0xd4] sm:$0xf]
        %v1283 = vld [vmem:[%s4 + $0xd8] sm:$0xf]
        %v1284 = vld [vmem:[%s4 + $0xdc] sm:$0xf]
        %v1285 = vld [vmem:[%s4 + $0xe0] sm:$0xf]
        %v1286 = vld [vmem:[%s4 + $0xe4] sm:$0xf]
        %v1287 = vld [vmem:[%s4 + $0xe8] sm:$0xf]
        %v1288 = vld [vmem:[%s4 + $0xec] sm:$0xf]
        %v1289 = vld [vmem:[%s4 + $0xf0] sm:$0xf]
        %v1290 = vld [vmem:[%s4 + $0xf4] sm:$0xf]
        %v1291 = vld [vmem:[%s4 + $0xf8] sm:$0xf]
        %v1292 = vld [vmem:[%s4 + $0xfc] sm:$0xf]
        %v1293 = vld [vmem:[%s4 + $0x100] sm:$0xf]
        %v1294 = vld [vmem:[%s4 + $0x104] sm:$0xf]
        %v1295 = vld [vmem:[%s4 + $0x108] sm:$0xf]
        %v1296 = vld [vmem:[%s4 + $0x10c] sm:$0xf]
        %v1297 = vld [vmem:[%s4 + $0x110] sm:$0xf]
        %v1298 = vld [vmem:[%s4 + $0x114] sm:$0xf]
        %v1299 = vld [vmem:[%s4 + $0x118] sm:$0xf]
        %v1300 = vld [vmem:[%s4 + $0x11c] sm:$0xf]
        %v1301 = vld [vmem:[%s4 + $0x120] sm:$0xf]
        %v1302 = vld [vmem:[%s4 + $0x124] sm:$0xf]
        %v1303 = vld [vmem:[%s4 + $0x128] sm:$0xf]
        %v1304 = vld [vmem:[%s4 + $0x12c] sm:$0xf]
        %v1305 = vld [vmem:[%s4 + $0x130] sm:$0xf]
        %v1306 = vld [vmem:[%s4 + $0x134] sm:$0xf]
        %v1307 = vld [vmem:[%s4 + $0x138] sm:$0xf]
        %v1308 = vld [vmem:[%s4 + $0x13c] sm:$0xf]
        %v1309 = vld [vmem:[%s4 + $0x140] sm:$0xf]
        %v1310 = vld [vmem:[%s4 + $0x144] sm:$0xf]
        %v1311 = vld [vmem:[%s4 + $0x148] sm:$0xf]
        %v1312 = vld [vmem:[%s4 + $0x14c] sm:$0xf]
        %v1313 = vld [vmem:[%s4 + $0x150] sm:$0xf]
        %v1314 = vld [vmem:[%s4 + $0x154] sm:$0xf]
        %v1315 = vld [vmem:[%s4 + $0x158] sm:$0xf]
        %v1316 = vld [vmem:[%s4 + $0x15c] sm:$0xf]
        %v1317 = vld [vmem:[%s4 + $0x160] sm:$0xf]
        %v1318 = vld [vmem:[%s4 + $0x164] sm:$0xf]
        %v1319 = vld [vmem:[%s4 + $0x168] sm:$0xf]
        %v1320 = vld [vmem:[%s4 + $0x16c] sm:$0xf]
        %v1321 = vld [vmem:[%s4 + $0x170] sm:$0xf]
        %v1322 = vld [vmem:[%s4 + $0x174] sm:$0xf]
        %v1323 = vld [vmem:[%s4 + $0x178] sm:$0xf]
        %v1324 = vld [vmem:[%s4 + $0x17c] sm:$0xf]
        %v1325 = vld [vmem:[%s4 + $0x180] sm:$0xf]
        %v1326 = vld [vmem:[%s4 + $0x184] sm:$0xf]
        %v1327 = vld [vmem:[%s4 + $0x188] sm:$0xf]
        %v1328 = vld [vmem:[%s4 + $0x18c] sm:$0xf]
        %v1329 = vld [vmem:[%s4 + $0x190] sm:$0xf]
        %v1330 = vld [vmem:[%s4 + $0x194] sm:$0xf]
        %v1331 = vld [vmem:[%s4 + $0x198] sm:$0xf]
        %v1332 = vld [vmem:[%s4 + $0x19c] sm:$0xf]
        %v1333 = vld [vmem:[%s4 + $0x1a0] sm:$0xf]
        %v1334 = vld [vmem:[%s4 + $0x1a4] sm:$0xf]
        %v1335 = vld [vmem:[%s4 + $0x1a8] sm:$0xf]
        %v1336 = vld [vmem:[%s4 + $0x1ac] sm:$0xf]
        %v1337 = vld [vmem:[%s4 + $0x1b0] sm:$0xf]
        %v1338 = vld [vmem:[%s4 + $0x1b4] sm:$0xf]
        %v1339 = vld [vmem:[%s4 + $0x1b8] sm:$0xf]
        %v1340 = vld [vmem:[%s4 + $0x1bc] sm:$0xf]
        %v1341 = vld [vmem:[%s4 + $0x1c0] sm:$0xf]
        %v1342 = vld [vmem:[%s4 + $0x1c4] sm:$0xf]
        %v1343 = vld [vmem:[%s4 + $0x1c8] sm:$0xf]
        %v1344 = vld [vmem:[%s4 + $0x1cc] sm:$0xf]
        %v1345 = vld [vmem:[%s4 + $0x1d0] sm:$0xf]
        %v1346 = vld [vmem:[%s4 + $0x1d4] sm:$0xf]
        %v1347 = vld [vmem:[%s4 + $0x1d8] sm:$0xf]
        %v1348 = vld [vmem:[%s4 + $0x1dc] sm:$0xf]
        %v1349 = vld [vmem:[%s4 + $0x1e0] sm:$0xf]
        %v1350 = vld [vmem:[%s4 + $0x1e4] sm:$0xf]
        %v1351 = vld [vmem:[%s4 + $0x1e8] sm:$0xf]
        %v1352 = vld [vmem:[%s4 + $0x1ec] sm:$0xf]
        %v1353 = vld [vmem:[%s4 + $0x1f0] sm:$0xf]
        %v1354 = vld [vmem:[%s4 + $0x1f4] sm:$0xf]
        %v1355 = vld [vmem:[%s4 + $0x1f8] sm:$0xf]
        %v1356 = vld [vmem:[%s4 + $0x1fc] sm:$0xf]
        %v1373 = vunpack.c.l.b16 %v1229
        %v1374 = vunpack.c.l.b16 %v1230
        %v1375 = vunpack.c.l.b16 %v1231
        %v1376 = vunpack.c.l.b16 %v1232
        %v1377 = vunpack.c.l.b16 %v1233
        %v1378 = vunpack.c.l.b16 %v1234
        %v1379 = vunpack.c.l.b16 %v1235
        %v1380 = vunpack.c.l.b16 %v1236
        %v1381 = vunpack.c.l.b16 %v1237
        %v1382 = vunpack.c.l.b16 %v1238
        %v1383 = vunpack.c.l.b16 %v1239
        %v1384 = vunpack.c.l.b16 %v1240
        %v1385 = vunpack.c.l.b16 %v1241
        %v1386 = vunpack.c.l.b16 %v1242
        %v1387 = vunpack.c.l.b16 %v1243
        %v1388 = vunpack.c.l.b16 %v1244
        %v1389 = vpack.c.b16 %v1374, %v1373
        %v1390 = vpack.c.b16 %v1376, %v1375
        %v1391 = vpack.c.b16 %v1378, %v1377
        %v1392 = vpack.c.b16 %v1380, %v1379
        %v1393 = vpack.c.b16 %v1382, %v1381
        %v1394 = vpack.c.b16 %v1384, %v1383
        %v1395 = vpack.c.b16 %v1386, %v1385
        %v1396 = vpack.c.b16 %v1388, %v1387
        %1405 = vmatprep.subr.bf16.mxu0 0
        %1406 = vmatpush1.bf16.msra.mxu0 %v1389
        %1407 = vmatprep.subr.bf16.mxu0 0
        %1408 = vmatpush1.bf16.msra.mxu0 %v1390
        %1409 = vmatprep.subr.bf16.mxu0 0
        %1410 = vmatpush1.bf16.msra.mxu0 %v1391
        %1411 = vmatprep.subr.bf16.mxu0 0
        %1412 = vmatpush1.bf16.msra.mxu0 %v1392
        %1413 = vmatprep.subr.bf16.mxu0 0
        %1414 = vmatpush1.bf16.msra.mxu0 %v1393
        %1415 = vmatprep.subr.bf16.mxu0 0
        %1416 = vmatpush1.bf16.msra.mxu0 %v1394
        %1417 = vmatprep.subr.bf16.mxu0 0
        %1418 = vmatpush1.bf16.msra.mxu0 %v1395
        %1419 = vmatprep.subr.bf16.mxu0 0
        %1420 = vmatpush1.bf16.msra.mxu0 %v1396
        %1421 = vmatprep.subr.bf16.mxu0 0
        %1422 = vmatpush1.bf16.msra.mxu0 0
        %1423 = vmatprep.subr.bf16.mxu0 0
        %1424 = vmatpush1.bf16.msra.mxu0 0
        %1425 = vmatprep.subr.bf16.mxu0 0
        %1426 = vmatpush1.bf16.msra.mxu0 0
        %1427 = vmatprep.subr.bf16.mxu0 0
        %1428 = vmatpush1.bf16.msra.mxu0 0
        %1429 = vmatprep.subr.bf16.mxu0 0
        %1430 = vmatpush1.bf16.msra.mxu0 0
        %1431 = vmatprep.subr.bf16.mxu0 0
        %1432 = vmatpush1.bf16.msra.mxu0 0
        %1433 = vmatprep.subr.bf16.mxu0 0
        %1434 = vmatpush1.bf16.msra.mxu0 0
        %1435 = vmatprep.subr.bf16.mxu0 0
        %1436 = vmatpush1.bf16.msra.mxu0 0
        %1437 = vmatprep.mubr.bf16.mxu0 0
        %1438 = vmatmul.mubr.bf16.gmra.mrb[0].mxu0 %v379
        %v1439 = vpop.f32.mrb[0].mxu0
        %v1440 = vadd.f32 0.0, %v1439
        %v1441 = vpop.f32.mrb[0].mxu0
        %v1442 = vpop.f32.mrb[0].mxu0
        %v1443 = vadd.f32 0.0, %v1442
        %v1444 = vpop.f32.mrb[0].mxu0
        %1445 = vdwg.mxu0
        %v1462 = vunpack.c.l.b16 %v1245
        %v1463 = vunpack.c.l.b16 %v1246
        %v1464 = vunpack.c.l.b16 %v1247
        %v1465 = vunpack.c.l.b16 %v1248
        %v1466 = vunpack.c.l.b16 %v1249
        %v1467 = vunpack.c.l.b16 %v1250
        %v1468 = vunpack.c.l.b16 %v1251
        %v1469 = vunpack.c.l.b16 %v1252
        %v1470 = vunpack.c.l.b16 %v1253
        %v1471 = vunpack.c.l.b16 %v1254
        %v1472 = vunpack.c.l.b16 %v1255
        %v1473 = vunpack.c.l.b16 %v1256
        %v1474 = vunpack.c.l.b16 %v1257
        %v1475 = vunpack.c.l.b16 %v1258
        %v1476 = vunpack.c.l.b16 %v1259
        %v1477 = vunpack.c.l.b16 %v1260
        %v1478 = vpack.c.b16 %v1463, %v1462
        %v1479 = vpack.c.b16 %v1465, %v1464
        %v1480 = vpack.c.b16 %v1467, %v1466
        %v1481 = vpack.c.b16 %v1469, %v1468
        %v1482 = vpack.c.b16 %v1471, %v1470
        %v1483 = vpack.c.b16 %v1473, %v1472
        %v1484 = vpack.c.b16 %v1475, %v1474
        %v1485 = vpack.c.b16 %v1477, %v1476
        %1494 = vmatprep.subr.bf16.mxu0 0
        %1495 = vmatpush1.bf16.msra.mxu0 %v1478
        %1496 = vmatprep.subr.bf16.mxu0 0
        %1497 = vmatpush1.bf16.msra.mxu0 %v1479
        %1498 = vmatprep.subr.bf16.mxu0 0
        %1499 = vmatpush1.bf16.msra.mxu0 %v1480
        %1500 = vmatprep.subr.bf16.mxu0 0
        %1501 = vmatpush1.bf16.msra.mxu0 %v1481
        %1502 = vmatprep.subr.bf16.mxu0 0
        %1503 = vmatpush1.bf16.msra.mxu0 %v1482
        %1504 = vmatprep.subr.bf16.mxu0 0
        %1505 = vmatpush1.bf16.msra.mxu0 %v1483
        %1506 = vmatprep.subr.bf16.mxu0 0
        %1507 = vmatpush1.bf16.msra.mxu0 %v1484
        %1508 = vmatprep.subr.bf16.mxu0 0
        %1509 = vmatpush1.bf16.msra.mxu0 %v1485
        %1510 = vmatprep.subr.bf16.mxu0 0
        %1511 = vmatpush1.bf16.msra.mxu0 0
        %1512 = vmatprep.subr.bf16.mxu0 0
        %1513 = vmatpush1.bf16.msra.mxu0 0
        %1514 = vmatprep.subr.bf16.mxu0 0
        %1515 = vmatpush1.bf16.msra.mxu0 0
        %1516 = vmatprep.subr.bf16.mxu0 0
        %1517 = vmatpush1.bf16.msra.mxu0 0
        %1518 = vmatprep.subr.bf16.mxu0 0
        %1519 = vmatpush1.bf16.msra.mxu0 0
        %1520 = vmatprep.subr.bf16.mxu0 0
        %1521 = vmatpush1.bf16.msra.mxu0 0
        %1522 = vmatprep.subr.bf16.mxu0 0
        %1523 = vmatpush1.bf16.msra.mxu0 0
        %1524 = vmatprep.subr.bf16.mxu0 0
        %1525 = vmatpush1.bf16.msra.mxu0 0
        %1526 = vmatprep.mubr.bf16.mxu0 0
        %1527 = vmatmul.mubr.bf16.gmra.mrb[0].mxu0 %v379
        %v1528 = vpop.f32.mrb[0].mxu0
        %v1529 = vadd.f32 0.0, %v1528
        %v1530 = vpop.f32.mrb[0].mxu0
        %v1531 = vpop.f32.mrb[0].mxu0
        %v1532 = vadd.f32 0.0, %v1531
        %v1533 = vpop.f32.mrb[0].mxu0
        %1534 = vdwg.mxu0
        %v1551 = vunpack.c.l.b16 %v1261
        %v1552 = vunpack.c.l.b16 %v1262
        %v1553 = vunpack.c.l.b16 %v1263
        %v1554 = vunpack.c.l.b16 %v1264
        %v1555 = vunpack.c.l.b16 %v1265
        %v1556 = vunpack.c.l.b16 %v1266
        %v1557 = vunpack.c.l.b16 %v1267
        %v1558 = vunpack.c.l.b16 %v1268
        %v1559 = vunpack.c.l.b16 %v1269
        %v1560 = vunpack.c.l.b16 %v1270
        %v1561 = vunpack.c.l.b16 %v1271
        %v1562 = vunpack.c.l.b16 %v1272
        %v1563 = vunpack.c.l.b16 %v1273
        %v1564 = vunpack.c.l.b16 %v1274
        %v1565 = vunpack.c.l.b16 %v1275
        %v1566 = vunpack.c.l.b16 %v1276
        %v1567 = vpack.c.b16 %v1552, %v1551
        %v1568 = vpack.c.b16 %v1554, %v1553
        %v1569 = vpack.c.b16 %v1556, %v1555
        %v1570 = vpack.c.b16 %v1558, %v1557
        %v1571 = vpack.c.b16 %v1560, %v1559
        %v1572 = vpack.c.b16 %v1562, %v1561
        %v1573 = vpack.c.b16 %v1564, %v1563
        %v1574 = vpack.c.b16 %v1566, %v1565
        %1583 = vmatprep.subr.bf16.mxu0 0
        %1584 = vmatpush1.bf16.msra.mxu0 %v1567
        %1585 = vmatprep.subr.bf16.mxu0 0
        %1586 = vmatpush1.bf16.msra.mxu0 %v1568
        %1587 = vmatprep.subr.bf16.mxu0 0
        %1588 = vmatpush1.bf16.msra.mxu0 %v1569
        %1589 = vmatprep.subr.bf16.mxu0 0
        %1590 = vmatpush1.bf16.msra.mxu0 %v1570
        %1591 = vmatprep.subr.bf16.mxu0 0
        %1592 = vmatpush1.bf16.msra.mxu0 %v1571
        %1593 = vmatprep.subr.bf16.mxu0 0
        %1594 = vmatpush1.bf16.msra.mxu0 %v1572
        %1595 = vmatprep.subr.bf16.mxu0 0
        %1596 = vmatpush1.bf16.msra.mxu0 %v1573
        %1597 = vmatprep.subr.bf16.mxu0 0
        %1598 = vmatpush1.bf16.msra.mxu0 %v1574
        %1599 = vmatprep.subr.bf16.mxu0 0
        %1600 = vmatpush1.bf16.msra.mxu0 0
        %1601 = vmatprep.subr.bf16.mxu0 0
        %1602 = vmatpush1.bf16.msra.mxu0 0
        %1603 = vmatprep.subr.bf16.mxu0 0
        %1604 = vmatpush1.bf16.msra.mxu0 0
        %1605 = vmatprep.subr.bf16.mxu0 0
        %1606 = vmatpush1.bf16.msra.mxu0 0
        %1607 = vmatprep.subr.bf16.mxu0 0
        %1608 = vmatpush1.bf16.msra.mxu0 0
        %1609 = vmatprep.subr.bf16.mxu0 0
        %1610 = vmatpush1.bf16.msra.mxu0 0
        %1611 = vmatprep.subr.bf16.mxu0 0
        %1612 = vmatpush1.bf16.msra.mxu0 0
        %1613 = vmatprep.subr.bf16.mxu0 0
        %1614 = vmatpush1.bf16.msra.mxu0 0
        %1615 = vmatprep.mubr.bf16.mxu0 0
        %1616 = vmatmul.mubr.bf16.gmra.mrb[0].mxu0 %v379
        %v1617 = vpop.f32.mrb[0].mxu0
        %v1618 = vadd.f32 0.0, %v1617
        %v1619 = vpop.f32.mrb[0].mxu0
        %v1620 = vpop.f32.mrb[0].mxu0
        %v1621 = vadd.f32 0.0, %v1620
        %v1622 = vpop.f32.mrb[0].mxu0
        %1623 = vdwg.mxu0
        %v1640 = vunpack.c.l.b16 %v1277
        %v1641 = vunpack.c.l.b16 %v1278
        %v1642 = vunpack.c.l.b16 %v1279
        %v1643 = vunpack.c.l.b16 %v1280
        %v1644 = vunpack.c.l.b16 %v1281
        %v1645 = vunpack.c.l.b16 %v1282
        %v1646 = vunpack.c.l.b16 %v1283
        %v1647 = vunpack.c.l.b16 %v1284
        %v1648 = vunpack.c.l.b16 %v1285
        %v1649 = vunpack.c.l.b16 %v1286
        %v1650 = vunpack.c.l.b16 %v1287
        %v1651 = vunpack.c.l.b16 %v1288
        %v1652 = vunpack.c.l.b16 %v1289
        %v1653 = vunpack.c.l.b16 %v1290
        %v1654 = vunpack.c.l.b16 %v1291
        %v1655 = vunpack.c.l.b16 %v1292
        %v1656 = vpack.c.b16 %v1641, %v1640
        %v1657 = vpack.c.b16 %v1643, %v1642
        %v1658 = vpack.c.b16 %v1645, %v1644
        %v1659 = vpack.c.b16 %v1647, %v1646
        %v1660 = vpack.c.b16 %v1649, %v1648
        %v1661 = vpack.c.b16 %v1651, %v1650
        %v1662 = vpack.c.b16 %v1653, %v1652
        %v1663 = vpack.c.b16 %v1655, %v1654
        %1672 = vmatprep.subr.bf16.mxu0 0
        %1673 = vmatpush1.bf16.msra.mxu0 %v1656
        %1674 = vmatprep.subr.bf16.mxu0 0
        %1675 = vmatpush1.bf16.msra.mxu0 %v1657
        %1676 = vmatprep.subr.bf16.mxu0 0
        %1677 = vmatpush1.bf16.msra.mxu0 %v1658
        %1678 = vmatprep.subr.bf16.mxu0 0
        %1679 = vmatpush1.bf16.msra.mxu0 %v1659
        %1680 = vmatprep.subr.bf16.mxu0 0
        %1681 = vmatpush1.bf16.msra.mxu0 %v1660
        %1682 = vmatprep.subr.bf16.mxu0 0
        %1683 = vmatpush1.bf16.msra.mxu0 %v1661
        %1684 = vmatprep.subr.bf16.mxu0 0
        %1685 = vmatpush1.bf16.msra.mxu0 %v1662
        %1686 = vmatprep.subr.bf16.mxu0 0
        %1687 = vmatpush1.bf16.msra.mxu0 %v1663
        %1688 = vmatprep.subr.bf16.mxu0 0
        %1689 = vmatpush1.bf16.msra.mxu0 0
        %1690 = vmatprep.subr.bf16.mxu0 0
        %1691 = vmatpush1.bf16.msra.mxu0 0
        %1692 = vmatprep.subr.bf16.mxu0 0
        %1693 = vmatpush1.bf16.msra.mxu0 0
        %1694 = vmatprep.subr.bf16.mxu0 0
        %1695 = vmatpush1.bf16.msra.mxu0 0
        %1696 = vmatprep.subr.bf16.mxu0 0
        %1697 = vmatpush1.bf16.msra.mxu0 0
        %1698 = vmatprep.subr.bf16.mxu0 0
        %1699 = vmatpush1.bf16.msra.mxu0 0
        %1700 = vmatprep.subr.bf16.mxu0 0
        %1701 = vmatpush1.bf16.msra.mxu0 0
        %1702 = vmatprep.subr.bf16.mxu0 0
        %1703 = vmatpush1.bf16.msra.mxu0 0
        %1704 = vmatprep.mubr.bf16.mxu0 0
        %1705 = vmatmul.mubr.bf16.gmra.mrb[0].mxu0 %v379
        %v1706 = vpop.f32.mrb[0].mxu0
        %v1707 = vadd.f32 0.0, %v1706
        %v1708 = vpop.f32.mrb[0].mxu0
        %v1709 = vpop.f32.mrb[0].mxu0
        %v1710 = vadd.f32 0.0, %v1709
        %v1711 = vpop.f32.mrb[0].mxu0
        %1712 = vdwg.mxu0
        %v1729 = vunpack.c.l.b16 %v1293
        %v1730 = vunpack.c.l.b16 %v1294
        %v1731 = vunpack.c.l.b16 %v1295
        %v1732 = vunpack.c.l.b16 %v1296
        %v1733 = vunpack.c.l.b16 %v1297
        %v1734 = vunpack.c.l.b16 %v1298
        %v1735 = vunpack.c.l.b16 %v1299
        %v1736 = vunpack.c.l.b16 %v1300
        %v1737 = vunpack.c.l.b16 %v1301
        %v1738 = vunpack.c.l.b16 %v1302
        %v1739 = vunpack.c.l.b16 %v1303
        %v1740 = vunpack.c.l.b16 %v1304
        %v1741 = vunpack.c.l.b16 %v1305
        %v1742 = vunpack.c.l.b16 %v1306
        %v1743 = vunpack.c.l.b16 %v1307
        %v1744 = vunpack.c.l.b16 %v1308
        %v1745 = vpack.c.b16 %v1730, %v1729
        %v1746 = vpack.c.b16 %v1732, %v1731
        %v1747 = vpack.c.b16 %v1734, %v1733
        %v1748 = vpack.c.b16 %v1736, %v1735
        %v1749 = vpack.c.b16 %v1738, %v1737
        %v1750 = vpack.c.b16 %v1740, %v1739
        %v1751 = vpack.c.b16 %v1742, %v1741
        %v1752 = vpack.c.b16 %v1744, %v1743
        %1761 = vmatprep.subr.bf16.mxu0 0
        %1762 = vmatpush1.bf16.msra.mxu0 %v1745
        %1763 = vmatprep.subr.bf16.mxu0 0
        %1764 = vmatpush1.bf16.msra.mxu0 %v1746
        %1765 = vmatprep.subr.bf16.mxu0 0
        %1766 = vmatpush1.bf16.msra.mxu0 %v1747
        %1767 = vmatprep.subr.bf16.mxu0 0
        %1768 = vmatpush1.bf16.msra.mxu0 %v1748
        %1769 = vmatprep.subr.bf16.mxu0 0
        %1770 = vmatpush1.bf16.msra.mxu0 %v1749
        %1771 = vmatprep.subr.bf16.mxu0 0
        %1772 = vmatpush1.bf16.msra.mxu0 %v1750
        %1773 = vmatprep.subr.bf16.mxu0 0
        %1774 = vmatpush1.bf16.msra.mxu0 %v1751
        %1775 = vmatprep.subr.bf16.mxu0 0
        %1776 = vmatpush1.bf16.msra.mxu0 %v1752
        %1777 = vmatprep.subr.bf16.mxu0 0
        %1778 = vmatpush1.bf16.msra.mxu0 0
        %1779 = vmatprep.subr.bf16.mxu0 0
        %1780 = vmatpush1.bf16.msra.mxu0 0
        %1781 = vmatprep.subr.bf16.mxu0 0
        %1782 = vmatpush1.bf16.msra.mxu0 0
        %1783 = vmatprep.subr.bf16.mxu0 0
        %1784 = vmatpush1.bf16.msra.mxu0 0
        %1785 = vmatprep.subr.bf16.mxu0 0
        %1786 = vmatpush1.bf16.msra.mxu0 0
        %1787 = vmatprep.subr.bf16.mxu0 0
        %1788 = vmatpush1.bf16.msra.mxu0 0
        %1789 = vmatprep.subr.bf16.mxu0 0
        %1790 = vmatpush1.bf16.msra.mxu0 0
        %1791 = vmatprep.subr.bf16.mxu0 0
        %1792 = vmatpush1.bf16.msra.mxu0 0
        %1793 = vmatprep.mubr.bf16.mxu0 0
        %1794 = vmatmul.mubr.bf16.gmra.mrb[0].mxu0 %v379
        %v1795 = vpop.f32.mrb[0].mxu0
        %v1796 = vadd.f32 0.0, %v1795
        %v1797 = vpop.f32.mrb[0].mxu0
        %v1798 = vpop.f32.mrb[0].mxu0
        %v1799 = vadd.f32 0.0, %v1798
        %v1800 = vpop.f32.mrb[0].mxu0
        %1801 = vdwg.mxu0
        %v1818 = vunpack.c.l.b16 %v1309
        %v1819 = vunpack.c.l.b16 %v1310
        %v1820 = vunpack.c.l.b16 %v1311
        %v1821 = vunpack.c.l.b16 %v1312
        %v1822 = vunpack.c.l.b16 %v1313
        %v1823 = vunpack.c.l.b16 %v1314
        %v1824 = vunpack.c.l.b16 %v1315
        %v1825 = vunpack.c.l.b16 %v1316
        %v1826 = vunpack.c.l.b16 %v1317
        %v1827 = vunpack.c.l.b16 %v1318
        %v1828 = vunpack.c.l.b16 %v1319
        %v1829 = vunpack.c.l.b16 %v1320
        %v1830 = vunpack.c.l.b16 %v1321
        %v1831 = vunpack.c.l.b16 %v1322
        %v1832 = vunpack.c.l.b16 %v1323
        %v1833 = vunpack.c.l.b16 %v1324
        %v1834 = vpack.c.b16 %v1819, %v1818
        %v1835 = vpack.c.b16 %v1821, %v1820
        %v1836 = vpack.c.b16 %v1823, %v1822
        %v1837 = vpack.c.b16 %v1825, %v1824
        %v1838 = vpack.c.b16 %v1827, %v1826
        %v1839 = vpack.c.b16 %v1829, %v1828
        %v1840 = vpack.c.b16 %v1831, %v1830
        %v1841 = vpack.c.b16 %v1833, %v1832
        %1850 = vmatprep.subr.bf16.mxu0 0
        %1851 = vmatpush1.bf16.msra.mxu0 %v1834
        %1852 = vmatprep.subr.bf16.mxu0 0
        %1853 = vmatpush1.bf16.msra.mxu0 %v1835
        %1854 = vmatprep.subr.bf16.mxu0 0
        %1855 = vmatpush1.bf16.msra.mxu0 %v1836
        %1856 = vmatprep.subr.bf16.mxu0 0
        %1857 = vmatpush1.bf16.msra.mxu0 %v1837
        %1858 = vmatprep.subr.bf16.mxu0 0
        %1859 = vmatpush1.bf16.msra.mxu0 %v1838
        %1860 = vmatprep.subr.bf16.mxu0 0
        %1861 = vmatpush1.bf16.msra.mxu0 %v1839
        %1862 = vmatprep.subr.bf16.mxu0 0
        %1863 = vmatpush1.bf16.msra.mxu0 %v1840
        %1864 = vmatprep.subr.bf16.mxu0 0
        %1865 = vmatpush1.bf16.msra.mxu0 %v1841
        %1866 = vmatprep.subr.bf16.mxu0 0
        %1867 = vmatpush1.bf16.msra.mxu0 0
        %1868 = vmatprep.subr.bf16.mxu0 0
        %1869 = vmatpush1.bf16.msra.mxu0 0
        %1870 = vmatprep.subr.bf16.mxu0 0
        %1871 = vmatpush1.bf16.msra.mxu0 0
        %1872 = vmatprep.subr.bf16.mxu0 0
        %1873 = vmatpush1.bf16.msra.mxu0 0
        %1874 = vmatprep.subr.bf16.mxu0 0
        %1875 = vmatpush1.bf16.msra.mxu0 0
        %1876 = vmatprep.subr.bf16.mxu0 0
        %1877 = vmatpush1.bf16.msra.mxu0 0
        %1878 = vmatprep.subr.bf16.mxu0 0
        %1879 = vmatpush1.bf16.msra.mxu0 0
        %1880 = vmatprep.subr.bf16.mxu0 0
        %1881 = vmatpush1.bf16.msra.mxu0 0
        %1882 = vmatprep.mubr.bf16.mxu0 0
        %1883 = vmatmul.mubr.bf16.gmra.mrb[0].mxu0 %v379
        %v1884 = vpop.f32.mrb[0].mxu0
        %v1885 = vadd.f32 0.0, %v1884
        %v1886 = vpop.f32.mrb[0].mxu0
        %v1887 = vpop.f32.mrb[0].mxu0
        %v1888 = vadd.f32 0.0, %v1887
        %v1889 = vpop.f32.mrb[0].mxu0
        %1890 = vdwg.mxu0
        %v1907 = vunpack.c.l.b16 %v1325
        %v1908 = vunpack.c.l.b16 %v1326
        %v1909 = vunpack.c.l.b16 %v1327
        %v1910 = vunpack.c.l.b16 %v1328
        %v1911 = vunpack.c.l.b16 %v1329
        %v1912 = vunpack.c.l.b16 %v1330
        %v1913 = vunpack.c.l.b16 %v1331
        %v1914 = vunpack.c.l.b16 %v1332
        %v1915 = vunpack.c.l.b16 %v1333
        %v1916 = vunpack.c.l.b16 %v1334
        %v1917 = vunpack.c.l.b16 %v1335
        %v1918 = vunpack.c.l.b16 %v1336
        %v1919 = vunpack.c.l.b16 %v1337
        %v1920 = vunpack.c.l.b16 %v1338
        %v1921 = vunpack.c.l.b16 %v1339
        %v1922 = vunpack.c.l.b16 %v1340
        %v1923 = vpack.c.b16 %v1908, %v1907
        %v1924 = vpack.c.b16 %v1910, %v1909
        %v1925 = vpack.c.b16 %v1912, %v1911
        %v1926 = vpack.c.b16 %v1914, %v1913
        %v1927 = vpack.c.b16 %v1916, %v1915
        %v1928 = vpack.c.b16 %v1918, %v1917
        %v1929 = vpack.c.b16 %v1920, %v1919
        %v1930 = vpack.c.b16 %v1922, %v1921
        %1939 = vmatprep.subr.bf16.mxu0 0
        %1940 = vmatpush1.bf16.msra.mxu0 %v1923
        %1941 = vmatprep.subr.bf16.mxu0 0
        %1942 = vmatpush1.bf16.msra.mxu0 %v1924
        %1943 = vmatprep.subr.bf16.mxu0 0
        %1944 = vmatpush1.bf16.msra.mxu0 %v1925
        %1945 = vmatprep.subr.bf16.mxu0 0
        %1946 = vmatpush1.bf16.msra.mxu0 %v1926
        %1947 = vmatprep.subr.bf16.mxu0 0
        %1948 = vmatpush1.bf16.msra.mxu0 %v1927
        %1949 = vmatprep.subr.bf16.mxu0 0
        %1950 = vmatpush1.bf16.msra.mxu0 %v1928
        %1951 = vmatprep.subr.bf16.mxu0 0
        %1952 = vmatpush1.bf16.msra.mxu0 %v1929
        %1953 = vmatprep.subr.bf16.mxu0 0
        %1954 = vmatpush1.bf16.msra.mxu0 %v1930
        %1955 = vmatprep.subr.bf16.mxu0 0
        %1956 = vmatpush1.bf16.msra.mxu0 0
        %1957 = vmatprep.subr.bf16.mxu0 0
        %1958 = vmatpush1.bf16.msra.mxu0 0
        %1959 = vmatprep.subr.bf16.mxu0 0
        %1960 = vmatpush1.bf16.msra.mxu0 0
        %1961 = vmatprep.subr.bf16.mxu0 0
        %1962 = vmatpush1.bf16.msra.mxu0 0
        %1963 = vmatprep.subr.bf16.mxu0 0
        %1964 = vmatpush1.bf16.msra.mxu0 0
        %1965 = vmatprep.subr.bf16.mxu0 0
        %1966 = vmatpush1.bf16.msra.mxu0 0
        %1967 = vmatprep.subr.bf16.mxu0 0
        %1968 = vmatpush1.bf16.msra.mxu0 0
        %1969 = vmatprep.subr.bf16.mxu0 0
        %1970 = vmatpush1.bf16.msra.mxu0 0
        %1971 = vmatprep.mubr.bf16.mxu0 0
        %1972 = vmatmul.mubr.bf16.gmra.mrb[0].mxu0 %v379
        %v1973 = vpop.f32.mrb[0].mxu0
        %v1974 = vadd.f32 0.0, %v1973
        %v1975 = vpop.f32.mrb[0].mxu0
        %v1976 = vpop.f32.mrb[0].mxu0
        %v1977 = vadd.f32 0.0, %v1976
        %v1978 = vpop.f32.mrb[0].mxu0
        %1979 = vdwg.mxu0
        %v1996 = vunpack.c.l.b16 %v1341
        %v1997 = vunpack.c.l.b16 %v1342
        %v1998 = vunpack.c.l.b16 %v1343
        %v1999 = vunpack.c.l.b16 %v1344
        %v2000 = vunpack.c.l.b16 %v1345
        %v2001 = vunpack.c.l.b16 %v1346
        %v2002 = vunpack.c.l.b16 %v1347
        %v2003 = vunpack.c.l.b16 %v1348
        %v2004 = vunpack.c.l.b16 %v1349
        %v2005 = vunpack.c.l.b16 %v1350
        %v2006 = vunpack.c.l.b16 %v1351
        %v2007 = vunpack.c.l.b16 %v1352
        %v2008 = vunpack.c.l.b16 %v1353
        %v2009 = vunpack.c.l.b16 %v1354
        %v2010 = vunpack.c.l.b16 %v1355
        %v2011 = vunpack.c.l.b16 %v1356
        %v2012 = vpack.c.b16 %v1997, %v1996
        %v2013 = vpack.c.b16 %v1999, %v1998
        %v2014 = vpack.c.b16 %v2001, %v2000
        %v2015 = vpack.c.b16 %v2003, %v2002
        %v2016 = vpack.c.b16 %v2005, %v2004
        %v2017 = vpack.c.b16 %v2007, %v2006
        %v2018 = vpack.c.b16 %v2009, %v2008
        %v2019 = vpack.c.b16 %v2011, %v2010
        %2028 = vmatprep.subr.bf16.mxu0 0
        %2029 = vmatpush1.bf16.msra.mxu0 %v2012
        %2030 = vmatprep.subr.bf16.mxu0 0
        %2031 = vmatpush1.bf16.msra.mxu0 %v2013
        %2032 = vmatprep.subr.bf16.mxu0 0
        %2033 = vmatpush1.bf16.msra.mxu0 %v2014
        %2034 = vmatprep.subr.bf16.mxu0 0
        %2035 = vmatpush1.bf16.msra.mxu0 %v2015
        %2036 = vmatprep.subr.bf16.mxu0 0
        %2037 = vmatpush1.bf16.msra.mxu0 %v2016
        %2038 = vmatprep.subr.bf16.mxu0 0
        %2039 = vmatpush1.bf16.msra.mxu0 %v2017
        %2040 = vmatprep.subr.bf16.mxu0 0
        %2041 = vmatpush1.bf16.msra.mxu0 %v2018
        %2042 = vmatprep.subr.bf16.mxu0 0
        %2043 = vmatpush1.bf16.msra.mxu0 %v2019
        %2044 = vmatprep.subr.bf16.mxu0 0
        %2045 = vmatpush1.bf16.msra.mxu0 0
        %2046 = vmatprep.subr.bf16.mxu0 0
        %2047 = vmatpush1.bf16.msra.mxu0 0
        %2048 = vmatprep.subr.bf16.mxu0 0
        %2049 = vmatpush1.bf16.msra.mxu0 0
        %2050 = vmatprep.subr.bf16.mxu0 0
        %2051 = vmatpush1.bf16.msra.mxu0 0
        %2052 = vmatprep.subr.bf16.mxu0 0
        %2053 = vmatpush1.bf16.msra.mxu0 0
        %2054 = vmatprep.subr.bf16.mxu0 0
        %2055 = vmatpush1.bf16.msra.mxu0 0
        %2056 = vmatprep.subr.bf16.mxu0 0
        %2057 = vmatpush1.bf16.msra.mxu0 0
        %2058 = vmatprep.subr.bf16.mxu0 0
        %2059 = vmatpush1.bf16.msra.mxu0 0
        %2060 = vmatprep.mubr.bf16.mxu0 0
        %2061 = vmatmul.mubr.bf16.gmra.mrb[0].mxu0 %v379
        %v2062 = vpop.f32.mrb[0].mxu0
        %v2063 = vadd.f32 0.0, %v2062
        %v2064 = vpop.f32.mrb[0].mxu0
        %v2065 = vpop.f32.mrb[0].mxu0
        %v2066 = vadd.f32 0.0, %v2065
        %v2067 = vpop.f32.mrb[0].mxu0
        %2068 = vdwg.mxu0
        %v2069 = vpack.c.bf16 %v1443, %v1440
        %v2070 = vpack.c.bf16 %v1532, %v1529
        %v2071 = vpack.c.bf16 %v1621, %v1618
        %v2072 = vpack.c.bf16 %v1710, %v1707
        %v2073 = vpack.c.bf16 %v1799, %v1796
        %v2074 = vpack.c.bf16 %v1888, %v1885
        %v2075 = vpack.c.bf16 %v1977, %v1974
        %v2076 = vpack.c.bf16 %v2066, %v2063
        %v2077 = vld [vmem:[%s5] sm:$0xf]
        %v2078 = vld [vmem:[%s5 + $0x4] sm:$0xf]
        %v2079 = vld [vmem:[%s5 + $0x8] sm:$0xf]
        %v2080 = vld [vmem:[%s5 + $0xc] sm:$0xf]
        %v2081 = vld [vmem:[%s5 + $0x10] sm:$0xf]
        %v2082 = vld [vmem:[%s5 + $0x14] sm:$0xf]
        %v2083 = vld [vmem:[%s5 + $0x18] sm:$0xf]
        %v2084 = vld [vmem:[%s5 + $0x1c] sm:$0xf]
        %v2085 = vld [vmem:[%s5 + $0x20] sm:$0xf]
        %v2086 = vld [vmem:[%s5 + $0x24] sm:$0xf]
        %v2087 = vld [vmem:[%s5 + $0x28] sm:$0xf]
        %v2088 = vld [vmem:[%s5 + $0x2c] sm:$0xf]
        %v2089 = vld [vmem:[%s5 + $0x30] sm:$0xf]
        %v2090 = vld [vmem:[%s5 + $0x34] sm:$0xf]
        %v2091 = vld [vmem:[%s5 + $0x38] sm:$0xf]
        %v2092 = vld [vmem:[%s5 + $0x3c] sm:$0xf]
        %v2093 = vld [vmem:[%s5 + $0x40] sm:$0xf]
        %v2094 = vld [vmem:[%s5 + $0x44] sm:$0xf]
        %v2095 = vld [vmem:[%s5 + $0x48] sm:$0xf]
        %v2096 = vld [vmem:[%s5 + $0x4c] sm:$0xf]
        %v2097 = vld [vmem:[%s5 + $0x50] sm:$0xf]
        %v2098 = vld [vmem:[%s5 + $0x54] sm:$0xf]
        %v2099 = vld [vmem:[%s5 + $0x58] sm:$0xf]
        %v2100 = vld [vmem:[%s5 + $0x5c] sm:$0xf]
        %v2101 = vld [vmem:[%s5 + $0x60] sm:$0xf]
        %v2102 = vld [vmem:[%s5 + $0x64] sm:$0xf]
        %v2103 = vld [vmem:[%s5 + $0x68] sm:$0xf]
        %v2104 = vld [vmem:[%s5 + $0x6c] sm:$0xf]
        %v2105 = vld [vmem:[%s5 + $0x70] sm:$0xf]
        %v2106 = vld [vmem:[%s5 + $0x74] sm:$0xf]
        %v2107 = vld [vmem:[%s5 + $0x78] sm:$0xf]
        %v2108 = vld [vmem:[%s5 + $0x7c] sm:$0xf]
        %v2109 = vld [vmem:[%s5 + $0x80] sm:$0xf]
        %v2110 = vld [vmem:[%s5 + $0x84] sm:$0xf]
        %v2111 = vld [vmem:[%s5 + $0x88] sm:$0xf]
        %v2112 = vld [vmem:[%s5 + $0x8c] sm:$0xf]
        %v2113 = vld [vmem:[%s5 + $0x90] sm:$0xf]
        %v2114 = vld [vmem:[%s5 + $0x94] sm:$0xf]
        %v2115 = vld [vmem:[%s5 + $0x98] sm:$0xf]
        %v2116 = vld [vmem:[%s5 + $0x9c] sm:$0xf]
        %v2117 = vld [vmem:[%s5 + $0xa0] sm:$0xf]
        %v2118 = vld [vmem:[%s5 + $0xa4] sm:$0xf]
        %v2119 = vld [vmem:[%s5 + $0xa8] sm:$0xf]
        %v2120 = vld [vmem:[%s5 + $0xac] sm:$0xf]
        %v2121 = vld [vmem:[%s5 + $0xb0] sm:$0xf]
        %v2122 = vld [vmem:[%s5 + $0xb4] sm:$0xf]
        %v2123 = vld [vmem:[%s5 + $0xb8] sm:$0xf]
        %v2124 = vld [vmem:[%s5 + $0xbc] sm:$0xf]
        %v2125 = vld [vmem:[%s5 + $0xc0] sm:$0xf]
        %v2126 = vld [vmem:[%s5 + $0xc4] sm:$0xf]
        %v2127 = vld [vmem:[%s5 + $0xc8] sm:$0xf]
        %v2128 = vld [vmem:[%s5 + $0xcc] sm:$0xf]
        %v2129 = vld [vmem:[%s5 + $0xd0] sm:$0xf]
        %v2130 = vld [vmem:[%s5 + $0xd4] sm:$0xf]
        %v2131 = vld [vmem:[%s5 + $0xd8] sm:$0xf]
        %v2132 = vld [vmem:[%s5 + $0xdc] sm:$0xf]
        %v2133 = vld [vmem:[%s5 + $0xe0] sm:$0xf]
        %v2134 = vld [vmem:[%s5 + $0xe4] sm:$0xf]
        %v2135 = vld [vmem:[%s5 + $0xe8] sm:$0xf]
        %v2136 = vld [vmem:[%s5 + $0xec] sm:$0xf]
        %v2137 = vld [vmem:[%s5 + $0xf0] sm:$0xf]
        %v2138 = vld [vmem:[%s5 + $0xf4] sm:$0xf]
        %v2139 = vld [vmem:[%s5 + $0xf8] sm:$0xf]
        %v2140 = vld [vmem:[%s5 + $0xfc] sm:$0xf]
        %v2141 = vld [vmem:[%s5 + $0x100] sm:$0xf]
        %v2142 = vld [vmem:[%s5 + $0x104] sm:$0xf]
        %v2143 = vld [vmem:[%s5 + $0x108] sm:$0xf]
        %v2144 = vld [vmem:[%s5 + $0x10c] sm:$0xf]
        %v2145 = vld [vmem:[%s5 + $0x110] sm:$0xf]
        %v2146 = vld [vmem:[%s5 + $0x114] sm:$0xf]
        %v2147 = vld [vmem:[%s5 + $0x118] sm:$0xf]
        %v2148 = vld [vmem:[%s5 + $0x11c] sm:$0xf]
        %v2149 = vld [vmem:[%s5 + $0x120] sm:$0xf]
        %v2150 = vld [vmem:[%s5 + $0x124] sm:$0xf]
        %v2151 = vld [vmem:[%s5 + $0x128] sm:$0xf]
        %v2152 = vld [vmem:[%s5 + $0x12c] sm:$0xf]
        %v2153 = vld [vmem:[%s5 + $0x130] sm:$0xf]
        %v2154 = vld [vmem:[%s5 + $0x134] sm:$0xf]
        %v2155 = vld [vmem:[%s5 + $0x138] sm:$0xf]
        %v2156 = vld [vmem:[%s5 + $0x13c] sm:$0xf]
        %v2157 = vld [vmem:[%s5 + $0x140] sm:$0xf]
        %v2158 = vld [vmem:[%s5 + $0x144] sm:$0xf]
        %v2159 = vld [vmem:[%s5 + $0x148] sm:$0xf]
        %v2160 = vld [vmem:[%s5 + $0x14c] sm:$0xf]
        %v2161 = vld [vmem:[%s5 + $0x150] sm:$0xf]
        %v2162 = vld [vmem:[%s5 + $0x154] sm:$0xf]
        %v2163 = vld [vmem:[%s5 + $0x158] sm:$0xf]
        %v2164 = vld [vmem:[%s5 + $0x15c] sm:$0xf]
        %v2165 = vld [vmem:[%s5 + $0x160] sm:$0xf]
        %v2166 = vld [vmem:[%s5 + $0x164] sm:$0xf]
        %v2167 = vld [vmem:[%s5 + $0x168] sm:$0xf]
        %v2168 = vld [vmem:[%s5 + $0x16c] sm:$0xf]
        %v2169 = vld [vmem:[%s5 + $0x170] sm:$0xf]
        %v2170 = vld [vmem:[%s5 + $0x174] sm:$0xf]
        %v2171 = vld [vmem:[%s5 + $0x178] sm:$0xf]
        %v2172 = vld [vmem:[%s5 + $0x17c] sm:$0xf]
        %v2173 = vld [vmem:[%s5 + $0x180] sm:$0xf]
        %v2174 = vld [vmem:[%s5 + $0x184] sm:$0xf]
        %v2175 = vld [vmem:[%s5 + $0x188] sm:$0xf]
        %v2176 = vld [vmem:[%s5 + $0x18c] sm:$0xf]
        %v2177 = vld [vmem:[%s5 + $0x190] sm:$0xf]
        %v2178 = vld [vmem:[%s5 + $0x194] sm:$0xf]
        %v2179 = vld [vmem:[%s5 + $0x198] sm:$0xf]
        %v2180 = vld [vmem:[%s5 + $0x19c] sm:$0xf]
        %v2181 = vld [vmem:[%s5 + $0x1a0] sm:$0xf]
        %v2182 = vld [vmem:[%s5 + $0x1a4] sm:$0xf]
        %v2183 = vld [vmem:[%s5 + $0x1a8] sm:$0xf]
        %v2184 = vld [vmem:[%s5 + $0x1ac] sm:$0xf]
        %v2185 = vld [vmem:[%s5 + $0x1b0] sm:$0xf]
        %v2186 = vld [vmem:[%s5 + $0x1b4] sm:$0xf]
        %v2187 = vld [vmem:[%s5 + $0x1b8] sm:$0xf]
        %v2188 = vld [vmem:[%s5 + $0x1bc] sm:$0xf]
        %v2189 = vld [vmem:[%s5 + $0x1c0] sm:$0xf]
        %v2190 = vld [vmem:[%s5 + $0x1c4] sm:$0xf]
        %v2191 = vld [vmem:[%s5 + $0x1c8] sm:$0xf]
        %v2192 = vld [vmem:[%s5 + $0x1cc] sm:$0xf]
        %v2193 = vld [vmem:[%s5 + $0x1d0] sm:$0xf]
        %v2194 = vld [vmem:[%s5 + $0x1d4] sm:$0xf]
        %v2195 = vld [vmem:[%s5 + $0x1d8] sm:$0xf]
        %v2196 = vld [vmem:[%s5 + $0x1dc] sm:$0xf]
        %v2197 = vld [vmem:[%s5 + $0x1e0] sm:$0xf]
        %v2198 = vld [vmem:[%s5 + $0x1e4] sm:$0xf]
        %v2199 = vld [vmem:[%s5 + $0x1e8] sm:$0xf]
        %v2200 = vld [vmem:[%s5 + $0x1ec] sm:$0xf]
        %v2201 = vld [vmem:[%s5 + $0x1f0] sm:$0xf]
        %v2202 = vld [vmem:[%s5 + $0x1f4] sm:$0xf]
        %v2203 = vld [vmem:[%s5 + $0x1f8] sm:$0xf]
        %v2204 = vld [vmem:[%s5 + $0x1fc] sm:$0xf]
        %v2221 = vunpack.c.l.b16 %v2077
        %v2222 = vunpack.c.l.b16 %v2078
        %v2223 = vunpack.c.l.b16 %v2079
        %v2224 = vunpack.c.l.b16 %v2080
        %v2225 = vunpack.c.l.b16 %v2081
        %v2226 = vunpack.c.l.b16 %v2082
        %v2227 = vunpack.c.l.b16 %v2083
        %v2228 = vunpack.c.l.b16 %v2084
        %v2229 = vunpack.c.l.b16 %v2085
        %v2230 = vunpack.c.l.b16 %v2086
        %v2231 = vunpack.c.l.b16 %v2087
        %v2232 = vunpack.c.l.b16 %v2088
        %v2233 = vunpack.c.l.b16 %v2089
        %v2234 = vunpack.c.l.b16 %v2090
        %v2235 = vunpack.c.l.b16 %v2091
        %v2236 = vunpack.c.l.b16 %v2092
        %v2237 = vpack.c.b16 %v2222, %v2221
        %v2238 = vpack.c.b16 %v2224, %v2223
        %v2239 = vpack.c.b16 %v2226, %v2225
        %v2240 = vpack.c.b16 %v2228, %v2227
        %v2241 = vpack.c.b16 %v2230, %v2229
        %v2242 = vpack.c.b16 %v2232, %v2231
        %v2243 = vpack.c.b16 %v2234, %v2233
        %v2244 = vpack.c.b16 %v2236, %v2235
        %2253 = vmatprep.subr.bf16.mxu0 0
        %2254 = vmatpush1.bf16.msra.mxu0 %v2237
        %2255 = vmatprep.subr.bf16.mxu0 0
        %2256 = vmatpush1.bf16.msra.mxu0 %v2238
        %2257 = vmatprep.subr.bf16.mxu0 0
        %2258 = vmatpush1.bf16.msra.mxu0 %v2239
        %2259 = vmatprep.subr.bf16.mxu0 0
        %2260 = vmatpush1.bf16.msra.mxu0 %v2240
        %2261 = vmatprep.subr.bf16.mxu0 0
        %2262 = vmatpush1.bf16.msra.mxu0 %v2241
        %2263 = vmatprep.subr.bf16.mxu0 0
        %2264 = vmatpush1.bf16.msra.mxu0 %v2242
        %2265 = vmatprep.subr.bf16.mxu0 0
        %2266 = vmatpush1.bf16.msra.mxu0 %v2243
        %2267 = vmatprep.subr.bf16.mxu0 0
        %2268 = vmatpush1.bf16.msra.mxu0 %v2244
        %2269 = vmatprep.subr.bf16.mxu0 0
        %2270 = vmatpush1.bf16.msra.mxu0 0
        %2271 = vmatprep.subr.bf16.mxu0 0
        %2272 = vmatpush1.bf16.msra.mxu0 0
        %2273 = vmatprep.subr.bf16.mxu0 0
        %2274 = vmatpush1.bf16.msra.mxu0 0
        %2275 = vmatprep.subr.bf16.mxu0 0
        %2276 = vmatpush1.bf16.msra.mxu0 0
        %2277 = vmatprep.subr.bf16.mxu0 0
        %2278 = vmatpush1.bf16.msra.mxu0 0
        %2279 = vmatprep.subr.bf16.mxu0 0
        %2280 = vmatpush1.bf16.msra.mxu0 0
        %2281 = vmatprep.subr.bf16.mxu0 0
        %2282 = vmatpush1.bf16.msra.mxu0 0
        %2283 = vmatprep.subr.bf16.mxu0 0
        %2284 = vmatpush1.bf16.msra.mxu0 0
        %2285 = vmatprep.mubr.bf16.mxu0 0
        %2286 = vmatmul.mubr.bf16.gmra.mrb[0].mxu0 %v380
        %v2287 = vpop.f32.mrb[0].mxu0
        %v2288 = vadd.f32 0.0, %v2287
        %v2289 = vpop.f32.mrb[0].mxu0
        %v2290 = vpop.f32.mrb[0].mxu0
        %v2291 = vadd.f32 0.0, %v2290
        %v2292 = vpop.f32.mrb[0].mxu0
        %2293 = vdwg.mxu0
        %v2310 = vunpack.c.l.b16 %v2093
        %v2311 = vunpack.c.l.b16 %v2094
        %v2312 = vunpack.c.l.b16 %v2095
        %v2313 = vunpack.c.l.b16 %v2096
        %v2314 = vunpack.c.l.b16 %v2097
        %v2315 = vunpack.c.l.b16 %v2098
        %v2316 = vunpack.c.l.b16 %v2099
        %v2317 = vunpack.c.l.b16 %v2100
        %v2318 = vunpack.c.l.b16 %v2101
        %v2319 = vunpack.c.l.b16 %v2102
        %v2320 = vunpack.c.l.b16 %v2103
        %v2321 = vunpack.c.l.b16 %v2104
        %v2322 = vunpack.c.l.b16 %v2105
        %v2323 = vunpack.c.l.b16 %v2106
        %v2324 = vunpack.c.l.b16 %v2107
        %v2325 = vunpack.c.l.b16 %v2108
        %v2326 = vpack.c.b16 %v2311, %v2310
        %v2327 = vpack.c.b16 %v2313, %v2312
        %v2328 = vpack.c.b16 %v2315, %v2314
        %v2329 = vpack.c.b16 %v2317, %v2316
        %v2330 = vpack.c.b16 %v2319, %v2318
        %v2331 = vpack.c.b16 %v2321, %v2320
        %v2332 = vpack.c.b16 %v2323, %v2322
        %v2333 = vpack.c.b16 %v2325, %v2324
        %2342 = vmatprep.subr.bf16.mxu0 0
        %2343 = vmatpush1.bf16.msra.mxu0 %v2326
        %2344 = vmatprep.subr.bf16.mxu0 0
        %2345 = vmatpush1.bf16.msra.mxu0 %v2327
        %2346 = vmatprep.subr.bf16.mxu0 0
        %2347 = vmatpush1.bf16.msra.mxu0 %v2328
        %2348 = vmatprep.subr.bf16.mxu0 0
        %2349 = vmatpush1.bf16.msra.mxu0 %v2329
        %2350 = vmatprep.subr.bf16.mxu0 0
        %2351 = vmatpush1.bf16.msra.mxu0 %v2330
        %2352 = vmatprep.subr.bf16.mxu0 0
        %2353 = vmatpush1.bf16.msra.mxu0 %v2331
        %2354 = vmatprep.subr.bf16.mxu0 0
        %2355 = vmatpush1.bf16.msra.mxu0 %v2332
        %2356 = vmatprep.subr.bf16.mxu0 0
        %2357 = vmatpush1.bf16.msra.mxu0 %v2333
        %2358 = vmatprep.subr.bf16.mxu0 0
        %2359 = vmatpush1.bf16.msra.mxu0 0
        %2360 = vmatprep.subr.bf16.mxu0 0
        %2361 = vmatpush1.bf16.msra.mxu0 0
        %2362 = vmatprep.subr.bf16.mxu0 0
        %2363 = vmatpush1.bf16.msra.mxu0 0
        %2364 = vmatprep.subr.bf16.mxu0 0
        %2365 = vmatpush1.bf16.msra.mxu0 0
        %2366 = vmatprep.subr.bf16.mxu0 0
        %2367 = vmatpush1.bf16.msra.mxu0 0
        %2368 = vmatprep.subr.bf16.mxu0 0
        %2369 = vmatpush1.bf16.msra.mxu0 0
        %2370 = vmatprep.subr.bf16.mxu0 0
        %2371 = vmatpush1.bf16.msra.mxu0 0
        %2372 = vmatprep.subr.bf16.mxu0 0
        %2373 = vmatpush1.bf16.msra.mxu0 0
        %2374 = vmatprep.mubr.bf16.mxu0 0
        %2375 = vmatmul.mubr.bf16.gmra.mrb[0].mxu0 %v380
        %v2376 = vpop.f32.mrb[0].mxu0
        %v2377 = vadd.f32 0.0, %v2376
        %v2378 = vpop.f32.mrb[0].mxu0
        %v2379 = vpop.f32.mrb[0].mxu0
        %v2380 = vadd.f32 0.0, %v2379
        %v2381 = vpop.f32.mrb[0].mxu0
        %2382 = vdwg.mxu0
        %v2399 = vunpack.c.l.b16 %v2109
        %v2400 = vunpack.c.l.b16 %v2110
        %v2401 = vunpack.c.l.b16 %v2111
        %v2402 = vunpack.c.l.b16 %v2112
        %v2403 = vunpack.c.l.b16 %v2113
        %v2404 = vunpack.c.l.b16 %v2114
        %v2405 = vunpack.c.l.b16 %v2115
        %v2406 = vunpack.c.l.b16 %v2116
        %v2407 = vunpack.c.l.b16 %v2117
        %v2408 = vunpack.c.l.b16 %v2118
        %v2409 = vunpack.c.l.b16 %v2119
        %v2410 = vunpack.c.l.b16 %v2120
        %v2411 = vunpack.c.l.b16 %v2121
        %v2412 = vunpack.c.l.b16 %v2122
        %v2413 = vunpack.c.l.b16 %v2123
        %v2414 = vunpack.c.l.b16 %v2124
        %v2415 = vpack.c.b16 %v2400, %v2399
        %v2416 = vpack.c.b16 %v2402, %v2401
        %v2417 = vpack.c.b16 %v2404, %v2403
        %v2418 = vpack.c.b16 %v2406, %v2405
        %v2419 = vpack.c.b16 %v2408, %v2407
        %v2420 = vpack.c.b16 %v2410, %v2409
        %v2421 = vpack.c.b16 %v2412, %v2411
        %v2422 = vpack.c.b16 %v2414, %v2413
        %2431 = vmatprep.subr.bf16.mxu0 0
        %2432 = vmatpush1.bf16.msra.mxu0 %v2415
        %2433 = vmatprep.subr.bf16.mxu0 0
        %2434 = vmatpush1.bf16.msra.mxu0 %v2416
        %2435 = vmatprep.subr.bf16.mxu0 0
        %2436 = vmatpush1.bf16.msra.mxu0 %v2417
        %2437 = vmatprep.subr.bf16.mxu0 0
        %2438 = vmatpush1.bf16.msra.mxu0 %v2418
        %2439 = vmatprep.subr.bf16.mxu0 0
        %2440 = vmatpush1.bf16.msra.mxu0 %v2419
        %2441 = vmatprep.subr.bf16.mxu0 0
        %2442 = vmatpush1.bf16.msra.mxu0 %v2420
        %2443 = vmatprep.subr.bf16.mxu0 0
        %2444 = vmatpush1.bf16.msra.mxu0 %v2421
        %2445 = vmatprep.subr.bf16.mxu0 0
        %2446 = vmatpush1.bf16.msra.mxu0 %v2422
        %2447 = vmatprep.subr.bf16.mxu0 0
        %2448 = vmatpush1.bf16.msra.mxu0 0
        %2449 = vmatprep.subr.bf16.mxu0 0
        %2450 = vmatpush1.bf16.msra.mxu0 0
        %2451 = vmatprep.subr.bf16.mxu0 0
        %2452 = vmatpush1.bf16.msra.mxu0 0
        %2453 = vmatprep.subr.bf16.mxu0 0
        %2454 = vmatpush1.bf16.msra.mxu0 0
        %2455 = vmatprep.subr.bf16.mxu0 0
        %2456 = vmatpush1.bf16.msra.mxu0 0
        %2457 = vmatprep.subr.bf16.mxu0 0
        %2458 = vmatpush1.bf16.msra.mxu0 0
        %2459 = vmatprep.subr.bf16.mxu0 0
        %2460 = vmatpush1.bf16.msra.mxu0 0
        %2461 = vmatprep.subr.bf16.mxu0 0
        %2462 = vmatpush1.bf16.msra.mxu0 0
        %2463 = vmatprep.mubr.bf16.mxu0 0
        %2464 = vmatmul.mubr.bf16.gmra.mrb[0].mxu0 %v380
        %v2465 = vpop.f32.mrb[0].mxu0
        %v2466 = vadd.f32 0.0, %v2465
        %v2467 = vpop.f32.mrb[0].mxu0
        %v2468 = vpop.f32.mrb[0].mxu0
        %v2469 = vadd.f32 0.0, %v2468
        %v2470 = vpop.f32.mrb[0].mxu0
        %2471 = vdwg.mxu0
        %v2488 = vunpack.c.l.b16 %v2125
        %v2489 = vunpack.c.l.b16 %v2126
        %v2490 = vunpack.c.l.b16 %v2127
        %v2491 = vunpack.c.l.b16 %v2128
        %v2492 = vunpack.c.l.b16 %v2129
        %v2493 = vunpack.c.l.b16 %v2130
        %v2494 = vunpack.c.l.b16 %v2131
        %v2495 = vunpack.c.l.b16 %v2132
        %v2496 = vunpack.c.l.b16 %v2133
        %v2497 = vunpack.c.l.b16 %v2134
        %v2498 = vunpack.c.l.b16 %v2135
        %v2499 = vunpack.c.l.b16 %v2136
        %v2500 = vunpack.c.l.b16 %v2137
        %v2501 = vunpack.c.l.b16 %v2138
        %v2502 = vunpack.c.l.b16 %v2139
        %v2503 = vunpack.c.l.b16 %v2140
        %v2504 = vpack.c.b16 %v2489, %v2488
        %v2505 = vpack.c.b16 %v2491, %v2490
        %v2506 = vpack.c.b16 %v2493, %v2492
        %v2507 = vpack.c.b16 %v2495, %v2494
        %v2508 = vpack.c.b16 %v2497, %v2496
        %v2509 = vpack.c.b16 %v2499, %v2498
        %v2510 = vpack.c.b16 %v2501, %v2500
        %v2511 = vpack.c.b16 %v2503, %v2502
        %2520 = vmatprep.subr.bf16.mxu0 0
        %2521 = vmatpush1.bf16.msra.mxu0 %v2504
        %2522 = vmatprep.subr.bf16.mxu0 0
        %2523 = vmatpush1.bf16.msra.mxu0 %v2505
        %2524 = vmatprep.subr.bf16.mxu0 0
        %2525 = vmatpush1.bf16.msra.mxu0 %v2506
        %2526 = vmatprep.subr.bf16.mxu0 0
        %2527 = vmatpush1.bf16.msra.mxu0 %v2507
        %2528 = vmatprep.subr.bf16.mxu0 0
        %2529 = vmatpush1.bf16.msra.mxu0 %v2508
        %2530 = vmatprep.subr.bf16.mxu0 0
        %2531 = vmatpush1.bf16.msra.mxu0 %v2509
        %2532 = vmatprep.subr.bf16.mxu0 0
        %2533 = vmatpush1.bf16.msra.mxu0 %v2510
        %2534 = vmatprep.subr.bf16.mxu0 0
        %2535 = vmatpush1.bf16.msra.mxu0 %v2511
        %2536 = vmatprep.subr.bf16.mxu0 0
        %2537 = vmatpush1.bf16.msra.mxu0 0
        %2538 = vmatprep.subr.bf16.mxu0 0
        %2539 = vmatpush1.bf16.msra.mxu0 0
        %2540 = vmatprep.subr.bf16.mxu0 0
        %2541 = vmatpush1.bf16.msra.mxu0 0
        %2542 = vmatprep.subr.bf16.mxu0 0
        %2543 = vmatpush1.bf16.msra.mxu0 0
        %2544 = vmatprep.subr.bf16.mxu0 0
        %2545 = vmatpush1.bf16.msra.mxu0 0
        %2546 = vmatprep.subr.bf16.mxu0 0
        %2547 = vmatpush1.bf16.msra.mxu0 0
        %2548 = vmatprep.subr.bf16.mxu0 0
        %2549 = vmatpush1.bf16.msra.mxu0 0
        %2550 = vmatprep.subr.bf16.mxu0 0
        %2551 = vmatpush1.bf16.msra.mxu0 0
        %2552 = vmatprep.mubr.bf16.mxu0 0
        %2553 = vmatmul.mubr.bf16.gmra.mrb[0].mxu0 %v380
        %v2554 = vpop.f32.mrb[0].mxu0
        %v2555 = vadd.f32 0.0, %v2554
        %v2556 = vpop.f32.mrb[0].mxu0
        %v2557 = vpop.f32.mrb[0].mxu0
        %v2558 = vadd.f32 0.0, %v2557
        %v2559 = vpop.f32.mrb[0].mxu0
        %2560 = vdwg.mxu0
        %v2577 = vunpack.c.l.b16 %v2141
        %v2578 = vunpack.c.l.b16 %v2142
        %v2579 = vunpack.c.l.b16 %v2143
        %v2580 = vunpack.c.l.b16 %v2144
        %v2581 = vunpack.c.l.b16 %v2145
        %v2582 = vunpack.c.l.b16 %v2146
        %v2583 = vunpack.c.l.b16 %v2147
        %v2584 = vunpack.c.l.b16 %v2148
        %v2585 = vunpack.c.l.b16 %v2149
        %v2586 = vunpack.c.l.b16 %v2150
        %v2587 = vunpack.c.l.b16 %v2151
        %v2588 = vunpack.c.l.b16 %v2152
        %v2589 = vunpack.c.l.b16 %v2153
        %v2590 = vunpack.c.l.b16 %v2154
        %v2591 = vunpack.c.l.b16 %v2155
        %v2592 = vunpack.c.l.b16 %v2156
        %v2593 = vpack.c.b16 %v2578, %v2577
        %v2594 = vpack.c.b16 %v2580, %v2579
        %v2595 = vpack.c.b16 %v2582, %v2581
        %v2596 = vpack.c.b16 %v2584, %v2583
        %v2597 = vpack.c.b16 %v2586, %v2585
        %v2598 = vpack.c.b16 %v2588, %v2587
        %v2599 = vpack.c.b16 %v2590, %v2589
        %v2600 = vpack.c.b16 %v2592, %v2591
        %2609 = vmatprep.subr.bf16.mxu0 0
        %2610 = vmatpush1.bf16.msra.mxu0 %v2593
        %2611 = vmatprep.subr.bf16.mxu0 0
        %2612 = vmatpush1.bf16.msra.mxu0 %v2594
        %2613 = vmatprep.subr.bf16.mxu0 0
        %2614 = vmatpush1.bf16.msra.mxu0 %v2595
        %2615 = vmatprep.subr.bf16.mxu0 0
        %2616 = vmatpush1.bf16.msra.mxu0 %v2596
        %2617 = vmatprep.subr.bf16.mxu0 0
        %2618 = vmatpush1.bf16.msra.mxu0 %v2597
        %2619 = vmatprep.subr.bf16.mxu0 0
        %2620 = vmatpush1.bf16.msra.mxu0 %v2598
        %2621 = vmatprep.subr.bf16.mxu0 0
        %2622 = vmatpush1.bf16.msra.mxu0 %v2599
        %2623 = vmatprep.subr.bf16.mxu0 0
        %2624 = vmatpush1.bf16.msra.mxu0 %v2600
        %2625 = vmatprep.subr.bf16.mxu0 0
        %2626 = vmatpush1.bf16.msra.mxu0 0
        %2627 = vmatprep.subr.bf16.mxu0 0
        %2628 = vmatpush1.bf16.msra.mxu0 0
        %2629 = vmatprep.subr.bf16.mxu0 0
        %2630 = vmatpush1.bf16.msra.mxu0 0
        %2631 = vmatprep.subr.bf16.mxu0 0
        %2632 = vmatpush1.bf16.msra.mxu0 0
        %2633 = vmatprep.subr.bf16.mxu0 0
        %2634 = vmatpush1.bf16.msra.mxu0 0
        %2635 = vmatprep.subr.bf16.mxu0 0
        %2636 = vmatpush1.bf16.msra.mxu0 0
        %2637 = vmatprep.subr.bf16.mxu0 0
        %2638 = vmatpush1.bf16.msra.mxu0 0
        %2639 = vmatprep.subr.bf16.mxu0 0
        %2640 = vmatpush1.bf16.msra.mxu0 0
        %2641 = vmatprep.mubr.bf16.mxu0 0
        %2642 = vmatmul.mubr.bf16.gmra.mrb[0].mxu0 %v380
        %v2643 = vpop.f32.mrb[0].mxu0
        %v2644 = vadd.f32 0.0, %v2643
        %v2645 = vpop.f32.mrb[0].mxu0
        %v2646 = vpop.f32.mrb[0].mxu0
        %v2647 = vadd.f32 0.0, %v2646
        %v2648 = vpop.f32.mrb[0].mxu0
        %2649 = vdwg.mxu0
        %v2666 = vunpack.c.l.b16 %v2157
        %v2667 = vunpack.c.l.b16 %v2158
        %v2668 = vunpack.c.l.b16 %v2159
        %v2669 = vunpack.c.l.b16 %v2160
        %v2670 = vunpack.c.l.b16 %v2161
        %v2671 = vunpack.c.l.b16 %v2162
        %v2672 = vunpack.c.l.b16 %v2163
        %v2673 = vunpack.c.l.b16 %v2164
        %v2674 = vunpack.c.l.b16 %v2165
        %v2675 = vunpack.c.l.b16 %v2166
        %v2676 = vunpack.c.l.b16 %v2167
        %v2677 = vunpack.c.l.b16 %v2168
        %v2678 = vunpack.c.l.b16 %v2169
        %v2679 = vunpack.c.l.b16 %v2170
        %v2680 = vunpack.c.l.b16 %v2171
        %v2681 = vunpack.c.l.b16 %v2172
        %v2682 = vpack.c.b16 %v2667, %v2666
        %v2683 = vpack.c.b16 %v2669, %v2668
        %v2684 = vpack.c.b16 %v2671, %v2670
        %v2685 = vpack.c.b16 %v2673, %v2672
        %v2686 = vpack.c.b16 %v2675, %v2674
        %v2687 = vpack.c.b16 %v2677, %v2676
        %v2688 = vpack.c.b16 %v2679, %v2678
        %v2689 = vpack.c.b16 %v2681, %v2680
        %2698 = vmatprep.subr.bf16.mxu0 0
        %2699 = vmatpush1.bf16.msra.mxu0 %v2682
        %2700 = vmatprep.subr.bf16.mxu0 0
        %2701 = vmatpush1.bf16.msra.mxu0 %v2683
        %2702 = vmatprep.subr.bf16.mxu0 0
        %2703 = vmatpush1.bf16.msra.mxu0 %v2684
        %2704 = vmatprep.subr.bf16.mxu0 0
        %2705 = vmatpush1.bf16.msra.mxu0 %v2685
        %2706 = vmatprep.subr.bf16.mxu0 0
        %2707 = vmatpush1.bf16.msra.mxu0 %v2686
        %2708 = vmatprep.subr.bf16.mxu0 0
        %2709 = vmatpush1.bf16.msra.mxu0 %v2687
        %2710 = vmatprep.subr.bf16.mxu0 0
        %2711 = vmatpush1.bf16.msra.mxu0 %v2688
        %2712 = vmatprep.subr.bf16.mxu0 0
        %2713 = vmatpush1.bf16.msra.mxu0 %v2689
        %2714 = vmatprep.subr.bf16.mxu0 0
        %2715 = vmatpush1.bf16.msra.mxu0 0
        %2716 = vmatprep.subr.bf16.mxu0 0
        %2717 = vmatpush1.bf16.msra.mxu0 0
        %2718 = vmatprep.subr.bf16.mxu0 0
        %2719 = vmatpush1.bf16.msra.mxu0 0
        %2720 = vmatprep.subr.bf16.mxu0 0
        %2721 = vmatpush1.bf16.msra.mxu0 0
        %2722 = vmatprep.subr.bf16.mxu0 0
        %2723 = vmatpush1.bf16.msra.mxu0 0
        %2724 = vmatprep.subr.bf16.mxu0 0
        %2725 = vmatpush1.bf16.msra.mxu0 0
        %2726 = vmatprep.subr.bf16.mxu0 0
        %2727 = vmatpush1.bf16.msra.mxu0 0
        %2728 = vmatprep.subr.bf16.mxu0 0
        %2729 = vmatpush1.bf16.msra.mxu0 0
        %2730 = vmatprep.mubr.bf16.mxu0 0
        %2731 = vmatmul.mubr.bf16.gmra.mrb[0].mxu0 %v380
        %v2732 = vpop.f32.mrb[0].mxu0
        %v2733 = vadd.f32 0.0, %v2732
        %v2734 = vpop.f32.mrb[0].mxu0
        %v2735 = vpop.f32.mrb[0].mxu0
        %v2736 = vadd.f32 0.0, %v2735
        %v2737 = vpop.f32.mrb[0].mxu0
        %2738 = vdwg.mxu0
        %v2755 = vunpack.c.l.b16 %v2173
        %v2756 = vunpack.c.l.b16 %v2174
        %v2757 = vunpack.c.l.b16 %v2175
        %v2758 = vunpack.c.l.b16 %v2176
        %v2759 = vunpack.c.l.b16 %v2177
        %v2760 = vunpack.c.l.b16 %v2178
        %v2761 = vunpack.c.l.b16 %v2179
        %v2762 = vunpack.c.l.b16 %v2180
        %v2763 = vunpack.c.l.b16 %v2181
        %v2764 = vunpack.c.l.b16 %v2182
        %v2765 = vunpack.c.l.b16 %v2183
        %v2766 = vunpack.c.l.b16 %v2184
        %v2767 = vunpack.c.l.b16 %v2185
        %v2768 = vunpack.c.l.b16 %v2186
        %v2769 = vunpack.c.l.b16 %v2187
        %v2770 = vunpack.c.l.b16 %v2188
        %v2771 = vpack.c.b16 %v2756, %v2755
        %v2772 = vpack.c.b16 %v2758, %v2757
        %v2773 = vpack.c.b16 %v2760, %v2759
        %v2774 = vpack.c.b16 %v2762, %v2761
        %v2775 = vpack.c.b16 %v2764, %v2763
        %v2776 = vpack.c.b16 %v2766, %v2765
        %v2777 = vpack.c.b16 %v2768, %v2767
        %v2778 = vpack.c.b16 %v2770, %v2769
        %2787 = vmatprep.subr.bf16.mxu0 0
        %2788 = vmatpush1.bf16.msra.mxu0 %v2771
        %2789 = vmatprep.subr.bf16.mxu0 0
        %2790 = vmatpush1.bf16.msra.mxu0 %v2772
        %2791 = vmatprep.subr.bf16.mxu0 0
        %2792 = vmatpush1.bf16.msra.mxu0 %v2773
        %2793 = vmatprep.subr.bf16.mxu0 0
        %2794 = vmatpush1.bf16.msra.mxu0 %v2774
        %2795 = vmatprep.subr.bf16.mxu0 0
        %2796 = vmatpush1.bf16.msra.mxu0 %v2775
        %2797 = vmatprep.subr.bf16.mxu0 0
        %2798 = vmatpush1.bf16.msra.mxu0 %v2776
        %2799 = vmatprep.subr.bf16.mxu0 0
        %2800 = vmatpush1.bf16.msra.mxu0 %v2777
        %2801 = vmatprep.subr.bf16.mxu0 0
        %2802 = vmatpush1.bf16.msra.mxu0 %v2778
        %2803 = vmatprep.subr.bf16.mxu0 0
        %2804 = vmatpush1.bf16.msra.mxu0 0
        %2805 = vmatprep.subr.bf16.mxu0 0
        %2806 = vmatpush1.bf16.msra.mxu0 0
        %2807 = vmatprep.subr.bf16.mxu0 0
        %2808 = vmatpush1.bf16.msra.mxu0 0
        %2809 = vmatprep.subr.bf16.mxu0 0
        %2810 = vmatpush1.bf16.msra.mxu0 0
        %2811 = vmatprep.subr.bf16.mxu0 0
        %2812 = vmatpush1.bf16.msra.mxu0 0
        %2813 = vmatprep.subr.bf16.mxu0 0
        %2814 = vmatpush1.bf16.msra.mxu0 0
        %2815 = vmatprep.subr.bf16.mxu0 0
        %2816 = vmatpush1.bf16.msra.mxu0 0
        %2817 = vmatprep.subr.bf16.mxu0 0
        %2818 = vmatpush1.bf16.msra.mxu0 0
        %2819 = vmatprep.mubr.bf16.mxu0 0
        %2820 = vmatmul.mubr.bf16.gmra.mrb[0].mxu0 %v380
        %v2821 = vpop.f32.mrb[0].mxu0
        %v2822 = vadd.f32 0.0, %v2821
        %v2823 = vpop.f32.mrb[0].mxu0
        %v2824 = vpop.f32.mrb[0].mxu0
        %v2825 = vadd.f32 0.0, %v2824
        %v2826 = vpop.f32.mrb[0].mxu0
        %2827 = vdwg.mxu0
        %v2844 = vunpack.c.l.b16 %v2189
        %v2845 = vunpack.c.l.b16 %v2190
        %v2846 = vunpack.c.l.b16 %v2191
        %v2847 = vunpack.c.l.b16 %v2192
        %v2848 = vunpack.c.l.b16 %v2193
        %v2849 = vunpack.c.l.b16 %v2194
        %v2850 = vunpack.c.l.b16 %v2195
        %v2851 = vunpack.c.l.b16 %v2196
        %v2852 = vunpack.c.l.b16 %v2197
        %v2853 = vunpack.c.l.b16 %v2198
        %v2854 = vunpack.c.l.b16 %v2199
        %v2855 = vunpack.c.l.b16 %v2200
        %v2856 = vunpack.c.l.b16 %v2201
        %v2857 = vunpack.c.l.b16 %v2202
        %v2858 = vunpack.c.l.b16 %v2203
        %v2859 = vunpack.c.l.b16 %v2204
        %v2860 = vpack.c.b16 %v2845, %v2844
        %v2861 = vpack.c.b16 %v2847, %v2846
        %v2862 = vpack.c.b16 %v2849, %v2848
        %v2863 = vpack.c.b16 %v2851, %v2850
        %v2864 = vpack.c.b16 %v2853, %v2852
        %v2865 = vpack.c.b16 %v2855, %v2854
        %v2866 = vpack.c.b16 %v2857, %v2856
        %v2867 = vpack.c.b16 %v2859, %v2858
        %2876 = vmatprep.subr.bf16.mxu0 0
        %2877 = vmatpush1.bf16.msra.mxu0 %v2860
        %2878 = vmatprep.subr.bf16.mxu0 0
        %2879 = vmatpush1.bf16.msra.mxu0 %v2861
        %2880 = vmatprep.subr.bf16.mxu0 0
        %2881 = vmatpush1.bf16.msra.mxu0 %v2862
        %2882 = vmatprep.subr.bf16.mxu0 0
        %2883 = vmatpush1.bf16.msra.mxu0 %v2863
        %2884 = vmatprep.subr.bf16.mxu0 0
        %2885 = vmatpush1.bf16.msra.mxu0 %v2864
        %2886 = vmatprep.subr.bf16.mxu0 0
        %2887 = vmatpush1.bf16.msra.mxu0 %v2865
        %2888 = vmatprep.subr.bf16.mxu0 0
        %2889 = vmatpush1.bf16.msra.mxu0 %v2866
        %2890 = vmatprep.subr.bf16.mxu0 0
        %2891 = vmatpush1.bf16.msra.mxu0 %v2867
        %2892 = vmatprep.subr.bf16.mxu0 0
        %2893 = vmatpush1.bf16.msra.mxu0 0
        %2894 = vmatprep.subr.bf16.mxu0 0
        %2895 = vmatpush1.bf16.msra.mxu0 0
        %2896 = vmatprep.subr.bf16.mxu0 0
        %2897 = vmatpush1.bf16.msra.mxu0 0
        %2898 = vmatprep.subr.bf16.mxu0 0
        %2899 = vmatpush1.bf16.msra.mxu0 0
        %2900 = vmatprep.subr.bf16.mxu0 0
        %2901 = vmatpush1.bf16.msra.mxu0 0
        %2902 = vmatprep.subr.bf16.mxu0 0
        %2903 = vmatpush1.bf16.msra.mxu0 0
        %2904 = vmatprep.subr.bf16.mxu0 0
        %2905 = vmatpush1.bf16.msra.mxu0 0
        %2906 = vmatprep.subr.bf16.mxu0 0
        %2907 = vmatpush1.bf16.msra.mxu0 0
        %2908 = vmatprep.mubr.bf16.mxu0 0
        %2909 = vmatmul.mubr.bf16.gmra.mrb[0].mxu0 %v380
        %v2910 = vpop.f32.mrb[0].mxu0
        %v2911 = vadd.f32 0.0, %v2910
        %v2912 = vpop.f32.mrb[0].mxu0
        %v2913 = vpop.f32.mrb[0].mxu0
        %v2914 = vadd.f32 0.0, %v2913
        %v2915 = vpop.f32.mrb[0].mxu0
        %2916 = vdwg.mxu0
        %v2917 = vpack.c.bf16 %v2291, %v2288
        %v2918 = vpack.c.bf16 %v2380, %v2377
        %v2919 = vpack.c.bf16 %v2469, %v2466
        %v2920 = vpack.c.bf16 %v2558, %v2555
        %v2921 = vpack.c.bf16 %v2647, %v2644
        %v2922 = vpack.c.bf16 %v2736, %v2733
        %v2923 = vpack.c.bf16 %v2825, %v2822
        %v2924 = vpack.c.bf16 %v2914, %v2911
        %vm2925 = vcmask 130048
        %v2927 = vsel %vm2925, %v1221, 0
        %v2930 = vsel %vm2925, %v2069, 0
        %2932 = vmatprep.subr.bf16.mxu0 0
        %2933 = vmatpush1.bf16.xpose.msra.mxu0 %v2930
        %2934 = vmatprep.subr.bf16.mxu0 0
        %2935 = vmatpush1.bf16.xpose.msra.mxu0 0
        %2936 = vmatprep.subr.bf16.mxu0 0
        %2937 = vmatpush1.bf16.xpose.msra.mxu0 0
        %2938 = vmatprep.subr.bf16.mxu0 0
        %2939 = vmatpush1.bf16.xpose.msra.mxu0 0
        %2940 = vmatprep.subr.bf16.mxu0 0
        %2941 = vmatpush1.bf16.xpose.msra.mxu0 0
        %2942 = vmatprep.subr.bf16.mxu0 0
        %2943 = vmatpush1.bf16.xpose.msra.mxu0 0
        %2944 = vmatprep.subr.bf16.mxu0 0
        %2945 = vmatpush1.bf16.xpose.msra.mxu0 0
        %2946 = vmatprep.subr.bf16.mxu0 0
        %2947 = vmatpush1.bf16.xpose.msra.mxu0 0
        %2948 = vmatprep.subr.bf16.mxu0 0
        %2949 = vmatpush1.bf16.xpose.msra.mxu0 0
        %2950 = vmatprep.subr.bf16.mxu0 0
        %2951 = vmatpush1.bf16.xpose.msra.mxu0 0
        %2952 = vmatprep.subr.bf16.mxu0 0
        %2953 = vmatpush1.bf16.xpose.msra.mxu0 0
        %2954 = vmatprep.subr.bf16.mxu0 0
        %2955 = vmatpush1.bf16.xpose.msra.mxu0 0
        %2956 = vmatprep.subr.bf16.mxu0 0
        %2957 = vmatpush1.bf16.xpose.msra.mxu0 0
        %2958 = vmatprep.subr.bf16.mxu0 0
        %2959 = vmatpush1.bf16.xpose.msra.mxu0 0
        %2960 = vmatprep.subr.bf16.mxu0 0
        %2961 = vmatpush1.bf16.xpose.msra.mxu0 0
        %2962 = vmatprep.subr.bf16.mxu0 0
        %2963 = vmatpush1.bf16.xpose.msra.mxu0 0
        %2964 = vmatprep.mubr.bf16.mxu0 0
        %2965 = vmatmul.mubr.bf16.gmra.mrb[0].mxu0 %v2927
        %v2966 = vpop.f32.mrb[0].mxu0
        %v2967 = vadd.f32 0.0, %v2966
        %v2968 = vpop.f32.mrb[0].mxu0
        %v2969 = vpop.f32.mrb[0].mxu0
        %v2970 = vadd.f32 0.0, %v2969
        %v2971 = vpop.f32.mrb[0].mxu0
        %2972 = vdwg.mxu0
        %v2974 = vsel %vm2925, %v1222, 0
        %v2977 = vsel %vm2925, %v2070, 0
        %2979 = vmatprep.subr.bf16.mxu0 0
        %2980 = vmatpush1.bf16.xpose.msra.mxu0 %v2977
        %2981 = vmatprep.subr.bf16.mxu0 0
        %2982 = vmatpush1.bf16.xpose.msra.mxu0 0
        %2983 = vmatprep.subr.bf16.mxu0 0
        %2984 = vmatpush1.bf16.xpose.msra.mxu0 0
        %2985 = vmatprep.subr.bf16.mxu0 0
        %2986 = vmatpush1.bf16.xpose.msra.mxu0 0
        %2987 = vmatprep.subr.bf16.mxu0 0
        %2988 = vmatpush1.bf16.xpose.msra.mxu0 0
        %2989 = vmatprep.subr.bf16.mxu0 0
        %2990 = vmatpush1.bf16.xpose.msra.mxu0 0
        %2991 = vmatprep.subr.bf16.mxu0 0
        %2992 = vmatpush1.bf16.xpose.msra.mxu0 0
        %2993 = vmatprep.subr.bf16.mxu0 0
        %2994 = vmatpush1.bf16.xpose.msra.mxu0 0
        %2995 = vmatprep.subr.bf16.mxu0 0
        %2996 = vmatpush1.bf16.xpose.msra.mxu0 0
        %2997 = vmatprep.subr.bf16.mxu0 0
        %2998 = vmatpush1.bf16.xpose.msra.mxu0 0
        %2999 = vmatprep.subr.bf16.mxu0 0
        %3000 = vmatpush1.bf16.xpose.msra.mxu0 0
        %3001 = vmatprep.subr.bf16.mxu0 0
        %3002 = vmatpush1.bf16.xpose.msra.mxu0 0
        %3003 = vmatprep.subr.bf16.mxu0 0
        %3004 = vmatpush1.bf16.xpose.msra.mxu0 0
        %3005 = vmatprep.subr.bf16.mxu0 0
        %3006 = vmatpush1.bf16.xpose.msra.mxu0 0
        %3007 = vmatprep.subr.bf16.mxu0 0
        %3008 = vmatpush1.bf16.xpose.msra.mxu0 0
        %3009 = vmatprep.subr.bf16.mxu0 0
        %3010 = vmatpush1.bf16.xpose.msra.mxu0 0
        %3011 = vmatprep.mubr.bf16.mxu0 0
        %3012 = vmatmul.mubr.bf16.gmra.mrb[0].mxu0 %v2974
        %v3013 = vpop.f32.mrb[0].mxu0
        %v3014 = vadd.f32 0.0, %v3013
        %v3015 = vpop.f32.mrb[0].mxu0
        %v3016 = vpop.f32.mrb[0].mxu0
        %v3017 = vadd.f32 0.0, %v3016
        %v3018 = vpop.f32.mrb[0].mxu0
        %3019 = vdwg.mxu0
        %v3021 = vsel %vm2925, %v1223, 0
        %v3024 = vsel %vm2925, %v2071, 0
        %3026 = vmatprep.subr.bf16.mxu0 0
        %3027 = vmatpush1.bf16.xpose.msra.mxu0 %v3024
        %3028 = vmatprep.subr.bf16.mxu0 0
        %3029 = vmatpush1.bf16.xpose.msra.mxu0 0
        %3030 = vmatprep.subr.bf16.mxu0 0
        %3031 = vmatpush1.bf16.xpose.msra.mxu0 0
        %3032 = vmatprep.subr.bf16.mxu0 0
        %3033 = vmatpush1.bf16.xpose.msra.mxu0 0
        %3034 = vmatprep.subr.bf16.mxu0 0
        %3035 = vmatpush1.bf16.xpose.msra.mxu0 0
        %3036 = vmatprep.subr.bf16.mxu0 0
        %3037 = vmatpush1.bf16.xpose.msra.mxu0 0
        %3038 = vmatprep.subr.bf16.mxu0 0
        %3039 = vmatpush1.bf16.xpose.msra.mxu0 0
        %3040 = vmatprep.subr.bf16.mxu0 0
        %3041 = vmatpush1.bf16.xpose.msra.mxu0 0
        %3042 = vmatprep.subr.bf16.mxu0 0
        %3043 = vmatpush1.bf16.xpose.msra.mxu0 0
        %3044 = vmatprep.subr.bf16.mxu0 0
        %3045 = vmatpush1.bf16.xpose.msra.mxu0 0
        %3046 = vmatprep.subr.bf16.mxu0 0
        %3047 = vmatpush1.bf16.xpose.msra.mxu0 0
        %3048 = vmatprep.subr.bf16.mxu0 0
        %3049 = vmatpush1.bf16.xpose.msra.mxu0 0
        %3050 = vmatprep.subr.bf16.mxu0 0
        %3051 = vmatpush1.bf16.xpose.msra.mxu0 0
        %3052 = vmatprep.subr.bf16.mxu0 0
        %3053 = vmatpush1.bf16.xpose.msra.mxu0 0
        %3054 = vmatprep.subr.bf16.mxu0 0
        %3055 = vmatpush1.bf16.xpose.msra.mxu0 0
        %3056 = vmatprep.subr.bf16.mxu0 0
        %3057 = vmatpush1.bf16.xpose.msra.mxu0 0
        %3058 = vmatprep.mubr.bf16.mxu0 0
        %3059 = vmatmul.mubr.bf16.gmra.mrb[0].mxu0 %v3021
        %v3060 = vpop.f32.mrb[0].mxu0
        %v3061 = vadd.f32 0.0, %v3060
        %v3062 = vpop.f32.mrb[0].mxu0
        %v3063 = vpop.f32.mrb[0].mxu0
        %v3064 = vadd.f32 0.0, %v3063
        %v3065 = vpop.f32.mrb[0].mxu0
        %3066 = vdwg.mxu0
        %v3068 = vsel %vm2925, %v1224, 0
        %v3071 = vsel %vm2925, %v2072, 0
        %3073 = vmatprep.subr.bf16.mxu0 0
        %3074 = vmatpush1.bf16.xpose.msra.mxu0 %v3071
        %3075 = vmatprep.subr.bf16.mxu0 0
        %3076 = vmatpush1.bf16.xpose.msra.mxu0 0
        %3077 = vmatprep.subr.bf16.mxu0 0
        %3078 = vmatpush1.bf16.xpose.msra.mxu0 0
        %3079 = vmatprep.subr.bf16.mxu0 0
        %3080 = vmatpush1.bf16.xpose.msra.mxu0 0
        %3081 = vmatprep.subr.bf16.mxu0 0
        %3082 = vmatpush1.bf16.xpose.msra.mxu0 0
        %3083 = vmatprep.subr.bf16.mxu0 0
        %3084 = vmatpush1.bf16.xpose.msra.mxu0 0
        %3085 = vmatprep.subr.bf16.mxu0 0
        %3086 = vmatpush1.bf16.xpose.msra.mxu0 0
        %3087 = vmatprep.subr.bf16.mxu0 0
        %3088 = vmatpush1.bf16.xpose.msra.mxu0 0
        %3089 = vmatprep.subr.bf16.mxu0 0
        %3090 = vmatpush1.bf16.xpose.msra.mxu0 0
        %3091 = vmatprep.subr.bf16.mxu0 0
        %3092 = vmatpush1.bf16.xpose.msra.mxu0 0
        %3093 = vmatprep.subr.bf16.mxu0 0
        %3094 = vmatpush1.bf16.xpose.msra.mxu0 0
        %3095 = vmatprep.subr.bf16.mxu0 0
        %3096 = vmatpush1.bf16.xpose.msra.mxu0 0
        %3097 = vmatprep.subr.bf16.mxu0 0
        %3098 = vmatpush1.bf16.xpose.msra.mxu0 0
        %3099 = vmatprep.subr.bf16.mxu0 0
        %3100 = vmatpush1.bf16.xpose.msra.mxu0 0
        %3101 = vmatprep.subr.bf16.mxu0 0
        %3102 = vmatpush1.bf16.xpose.msra.mxu0 0
        %3103 = vmatprep.subr.bf16.mxu0 0
        %3104 = vmatpush1.bf16.xpose.msra.mxu0 0
        %3105 = vmatprep.mubr.bf16.mxu0 0
        %3106 = vmatmul.mubr.bf16.gmra.mrb[0].mxu0 %v3068
        %v3107 = vpop.f32.mrb[0].mxu0
        %v3108 = vadd.f32 0.0, %v3107
        %v3109 = vpop.f32.mrb[0].mxu0
        %v3110 = vpop.f32.mrb[0].mxu0
        %v3111 = vadd.f32 0.0, %v3110
        %v3112 = vpop.f32.mrb[0].mxu0
        %3113 = vdwg.mxu0
        %v3115 = vsel %vm2925, %v1225, 0
        %v3118 = vsel %vm2925, %v2073, 0
        %3120 = vmatprep.subr.bf16.mxu0 0
        %3121 = vmatpush1.bf16.xpose.msra.mxu0 %v3118
        %3122 = vmatprep.subr.bf16.mxu0 0
        %3123 = vmatpush1.bf16.xpose.msra.mxu0 0
        %3124 = vmatprep.subr.bf16.mxu0 0
        %3125 = vmatpush1.bf16.xpose.msra.mxu0 0
        %3126 = vmatprep.subr.bf16.mxu0 0
        %3127 = vmatpush1.bf16.xpose.msra.mxu0 0
        %3128 = vmatprep.subr.bf16.mxu0 0
        %3129 = vmatpush1.bf16.xpose.msra.mxu0 0
        %3130 = vmatprep.subr.bf16.mxu0 0
        %3131 = vmatpush1.bf16.xpose.msra.mxu0 0
        %3132 = vmatprep.subr.bf16.mxu0 0
        %3133 = vmatpush1.bf16.xpose.msra.mxu0 0
        %3134 = vmatprep.subr.bf16.mxu0 0
        %3135 = vmatpush1.bf16.xpose.msra.mxu0 0
        %3136 = vmatprep.subr.bf16.mxu0 0
        %3137 = vmatpush1.bf16.xpose.msra.mxu0 0
        %3138 = vmatprep.subr.bf16.mxu0 0
        %3139 = vmatpush1.bf16.xpose.msra.mxu0 0
        %3140 = vmatprep.subr.bf16.mxu0 0
        %3141 = vmatpush1.bf16.xpose.msra.mxu0 0
        %3142 = vmatprep.subr.bf16.mxu0 0
        %3143 = vmatpush1.bf16.xpose.msra.mxu0 0
        %3144 = vmatprep.subr.bf16.mxu0 0
        %3145 = vmatpush1.bf16.xpose.msra.mxu0 0
        %3146 = vmatprep.subr.bf16.mxu0 0
        %3147 = vmatpush1.bf16.xpose.msra.mxu0 0
        %3148 = vmatprep.subr.bf16.mxu0 0
        %3149 = vmatpush1.bf16.xpose.msra.mxu0 0
        %3150 = vmatprep.subr.bf16.mxu0 0
        %3151 = vmatpush1.bf16.xpose.msra.mxu0 0
        %3152 = vmatprep.mubr.bf16.mxu0 0
        %3153 = vmatmul.mubr.bf16.gmra.mrb[0].mxu0 %v3115
        %v3154 = vpop.f32.mrb[0].mxu0
        %v3155 = vadd.f32 0.0, %v3154
        %v3156 = vpop.f32.mrb[0].mxu0
        %v3157 = vpop.f32.mrb[0].mxu0
        %v3158 = vadd.f32 0.0, %v3157
        %v3159 = vpop.f32.mrb[0].mxu0
        %3160 = vdwg.mxu0
        %v3162 = vsel %vm2925, %v1226, 0
        %v3165 = vsel %vm2925, %v2074, 0
        %3167 = vmatprep.subr.bf16.mxu0 0
        %3168 = vmatpush1.bf16.xpose.msra.mxu0 %v3165
        %3169 = vmatprep.subr.bf16.mxu0 0
        %3170 = vmatpush1.bf16.xpose.msra.mxu0 0
        %3171 = vmatprep.subr.bf16.mxu0 0
        %3172 = vmatpush1.bf16.xpose.msra.mxu0 0
        %3173 = vmatprep.subr.bf16.mxu0 0
        %3174 = vmatpush1.bf16.xpose.msra.mxu0 0
        %3175 = vmatprep.subr.bf16.mxu0 0
        %3176 = vmatpush1.bf16.xpose.msra.mxu0 0
        %3177 = vmatprep.subr.bf16.mxu0 0
        %3178 = vmatpush1.bf16.xpose.msra.mxu0 0
        %3179 = vmatprep.subr.bf16.mxu0 0
        %3180 = vmatpush1.bf16.xpose.msra.mxu0 0
        %3181 = vmatprep.subr.bf16.mxu0 0
        %3182 = vmatpush1.bf16.xpose.msra.mxu0 0
        %3183 = vmatprep.subr.bf16.mxu0 0
        %3184 = vmatpush1.bf16.xpose.msra.mxu0 0
        %3185 = vmatprep.subr.bf16.mxu0 0
        %3186 = vmatpush1.bf16.xpose.msra.mxu0 0
        %3187 = vmatprep.subr.bf16.mxu0 0
        %3188 = vmatpush1.bf16.xpose.msra.mxu0 0
        %3189 = vmatprep.subr.bf16.mxu0 0
        %3190 = vmatpush1.bf16.xpose.msra.mxu0 0
        %3191 = vmatprep.subr.bf16.mxu0 0
        %3192 = vmatpush1.bf16.xpose.msra.mxu0 0
        %3193 = vmatprep.subr.bf16.mxu0 0
        %3194 = vmatpush1.bf16.xpose.msra.mxu0 0
        %3195 = vmatprep.subr.bf16.mxu0 0
        %3196 = vmatpush1.bf16.xpose.msra.mxu0 0
        %3197 = vmatprep.subr.bf16.mxu0 0
        %3198 = vmatpush1.bf16.xpose.msra.mxu0 0
        %3199 = vmatprep.mubr.bf16.mxu0 0
        %3200 = vmatmul.mubr.bf16.gmra.mrb[0].mxu0 %v3162
        %v3201 = vpop.f32.mrb[0].mxu0
        %v3202 = vadd.f32 0.0, %v3201
        %v3203 = vpop.f32.mrb[0].mxu0
        %v3204 = vpop.f32.mrb[0].mxu0
        %v3205 = vadd.f32 0.0, %v3204
        %v3206 = vpop.f32.mrb[0].mxu0
        %3207 = vdwg.mxu0
        %v3209 = vsel %vm2925, %v1227, 0
        %v3212 = vsel %vm2925, %v2075, 0
        %3214 = vmatprep.subr.bf16.mxu0 0
        %3215 = vmatpush1.bf16.xpose.msra.mxu0 %v3212
        %3216 = vmatprep.subr.bf16.mxu0 0
        %3217 = vmatpush1.bf16.xpose.msra.mxu0 0
        %3218 = vmatprep.subr.bf16.mxu0 0
        %3219 = vmatpush1.bf16.xpose.msra.mxu0 0
        %3220 = vmatprep.subr.bf16.mxu0 0
        %3221 = vmatpush1.bf16.xpose.msra.mxu0 0
        %3222 = vmatprep.subr.bf16.mxu0 0
        %3223 = vmatpush1.bf16.xpose.msra.mxu0 0
        %3224 = vmatprep.subr.bf16.mxu0 0
        %3225 = vmatpush1.bf16.xpose.msra.mxu0 0
        %3226 = vmatprep.subr.bf16.mxu0 0
        %3227 = vmatpush1.bf16.xpose.msra.mxu0 0
        %3228 = vmatprep.subr.bf16.mxu0 0
        %3229 = vmatpush1.bf16.xpose.msra.mxu0 0
        %3230 = vmatprep.subr.bf16.mxu0 0
        %3231 = vmatpush1.bf16.xpose.msra.mxu0 0
        %3232 = vmatprep.subr.bf16.mxu0 0
        %3233 = vmatpush1.bf16.xpose.msra.mxu0 0
        %3234 = vmatprep.subr.bf16.mxu0 0
        %3235 = vmatpush1.bf16.xpose.msra.mxu0 0
        %3236 = vmatprep.subr.bf16.mxu0 0
        %3237 = vmatpush1.bf16.xpose.msra.mxu0 0
        %3238 = vmatprep.subr.bf16.mxu0 0
        %3239 = vmatpush1.bf16.xpose.msra.mxu0 0
        %3240 = vmatprep.subr.bf16.mxu0 0
        %3241 = vmatpush1.bf16.xpose.msra.mxu0 0
        %3242 = vmatprep.subr.bf16.mxu0 0
        %3243 = vmatpush1.bf16.xpose.msra.mxu0 0
        %3244 = vmatprep.subr.bf16.mxu0 0
        %3245 = vmatpush1.bf16.xpose.msra.mxu0 0
        %3246 = vmatprep.mubr.bf16.mxu0 0
        %3247 = vmatmul.mubr.bf16.gmra.mrb[0].mxu0 %v3209
        %v3248 = vpop.f32.mrb[0].mxu0
        %v3249 = vadd.f32 0.0, %v3248
        %v3250 = vpop.f32.mrb[0].mxu0
        %v3251 = vpop.f32.mrb[0].mxu0
        %v3252 = vadd.f32 0.0, %v3251
        %v3253 = vpop.f32.mrb[0].mxu0
        %3254 = vdwg.mxu0
        %v3256 = vsel %vm2925, %v1228, 0
        %v3259 = vsel %vm2925, %v2076, 0
        %3261 = vmatprep.subr.bf16.mxu0 0
        %3262 = vmatpush1.bf16.xpose.msra.mxu0 %v3259
        %3263 = vmatprep.subr.bf16.mxu0 0
        %3264 = vmatpush1.bf16.xpose.msra.mxu0 0
        %3265 = vmatprep.subr.bf16.mxu0 0
        %3266 = vmatpush1.bf16.xpose.msra.mxu0 0
        %3267 = vmatprep.subr.bf16.mxu0 0
        %3268 = vmatpush1.bf16.xpose.msra.mxu0 0
        %3269 = vmatprep.subr.bf16.mxu0 0
        %3270 = vmatpush1.bf16.xpose.msra.mxu0 0
        %3271 = vmatprep.subr.bf16.mxu0 0
        %3272 = vmatpush1.bf16.xpose.msra.mxu0 0
        %3273 = vmatprep.subr.bf16.mxu0 0
        %3274 = vmatpush1.bf16.xpose.msra.mxu0 0
        %3275 = vmatprep.subr.bf16.mxu0 0
        %3276 = vmatpush1.bf16.xpose.msra.mxu0 0
        %3277 = vmatprep.subr.bf16.mxu0 0
        %3278 = vmatpush1.bf16.xpose.msra.mxu0 0
        %3279 = vmatprep.subr.bf16.mxu0 0
        %3280 = vmatpush1.bf16.xpose.msra.mxu0 0
        %3281 = vmatprep.subr.bf16.mxu0 0
        %3282 = vmatpush1.bf16.xpose.msra.mxu0 0
        %3283 = vmatprep.subr.bf16.mxu0 0
        %3284 = vmatpush1.bf16.xpose.msra.mxu0 0
        %3285 = vmatprep.subr.bf16.mxu0 0
        %3286 = vmatpush1.bf16.xpose.msra.mxu0 0
        %3287 = vmatprep.subr.bf16.mxu0 0
        %3288 = vmatpush1.bf16.xpose.msra.mxu0 0
        %3289 = vmatprep.subr.bf16.mxu0 0
        %3290 = vmatpush1.bf16.xpose.msra.mxu0 0
        %3291 = vmatprep.subr.bf16.mxu0 0
        %3292 = vmatpush1.bf16.xpose.msra.mxu0 0
        %3293 = vmatprep.mubr.bf16.mxu0 0
        %3294 = vmatmul.mubr.bf16.gmra.mrb[0].mxu0 %v3256
        %v3295 = vpop.f32.mrb[0].mxu0
        %v3296 = vadd.f32 0.0, %v3295
        %v3297 = vpop.f32.mrb[0].mxu0
        %v3298 = vpop.f32.mrb[0].mxu0
        %v3299 = vadd.f32 0.0, %v3298
        %v3300 = vpop.f32.mrb[0].mxu0
        %3301 = vdwg.mxu0
        %v3302 = vsel %vm2925, %v2967, -inf
        %3303 = vmax.xlane.f32.xlu0 %v3302
        %v3304 = vpop.xlane.xlu0 %3303
        %v3305 = vsel %vm2925, %v2970, -inf
        %3306 = vmax.xlane.f32.xlu0 %v3305
        %v3307 = vpop.xlane.xlu0 %3306
        %v3308 = vsel %vm2925, %v3014, -inf
        %3309 = vmax.xlane.f32.xlu0 %v3308
        %v3310 = vpop.xlane.xlu0 %3309
        %v3311 = vsel %vm2925, %v3017, -inf
        %3312 = vmax.xlane.f32.xlu0 %v3311
        %v3313 = vpop.xlane.xlu0 %3312
        %v3314 = vsel %vm2925, %v3061, -inf
        %3315 = vmax.xlane.f32.xlu0 %v3314
        %v3316 = vpop.xlane.xlu0 %3315
        %v3317 = vsel %vm2925, %v3064, -inf
        %3318 = vmax.xlane.f32.xlu0 %v3317
        %v3319 = vpop.xlane.xlu0 %3318
        %v3320 = vsel %vm2925, %v3108, -inf
        %3321 = vmax.xlane.f32.xlu0 %v3320
        %v3322 = vpop.xlane.xlu0 %3321
        %v3323 = vsel %vm2925, %v3111, -inf
        %3324 = vmax.xlane.f32.xlu0 %v3323
        %v3325 = vpop.xlane.xlu0 %3324
        %v3326 = vsel %vm2925, %v3155, -inf
        %3327 = vmax.xlane.f32.xlu0 %v3326
        %v3328 = vpop.xlane.xlu0 %3327
        %v3329 = vsel %vm2925, %v3158, -inf
        %3330 = vmax.xlane.f32.xlu0 %v3329
        %v3331 = vpop.xlane.xlu0 %3330
        %v3332 = vsel %vm2925, %v3202, -inf
        %3333 = vmax.xlane.f32.xlu0 %v3332
        %v3334 = vpop.xlane.xlu0 %3333
        %v3335 = vsel %vm2925, %v3205, -inf
        %3336 = vmax.xlane.f32.xlu0 %v3335
        %v3337 = vpop.xlane.xlu0 %3336
        %v3338 = vsel %vm2925, %v3249, -inf
        %3339 = vmax.xlane.f32.xlu0 %v3338
        %v3340 = vpop.xlane.xlu0 %3339
        %v3341 = vsel %vm2925, %v3252, -inf
        %3342 = vmax.xlane.f32.xlu0 %v3341
        %v3343 = vpop.xlane.xlu0 %3342
        %v3344 = vsel %vm2925, %v3296, -inf
        %3345 = vmax.xlane.f32.xlu0 %v3344
        %v3346 = vpop.xlane.xlu0 %3345
        %v3347 = vsel %vm2925, %v3299, -inf
        %3348 = vmax.xlane.f32.xlu0 %v3347
        %v3349 = vpop.xlane.xlu0 %3348
        %v3350 = vsub.f32 %v2967, %v3304
        %v3351 = vsub.f32 %v2970, %v3307
        %v3352 = vsub.f32 %v3014, %v3310
        %v3353 = vsub.f32 %v3017, %v3313
        %v3354 = vsub.f32 %v3061, %v3316
        %v3355 = vsub.f32 %v3064, %v3319
        %v3356 = vsub.f32 %v3108, %v3322
        %v3357 = vsub.f32 %v3111, %v3325
        %v3358 = vsub.f32 %v3155, %v3328
        %v3359 = vsub.f32 %v3158, %v3331
        %v3360 = vsub.f32 %v3202, %v3334
        %v3361 = vsub.f32 %v3205, %v3337
        %v3362 = vsub.f32 %v3249, %v3340
        %v3363 = vsub.f32 %v3252, %v3343
        %v3364 = vsub.f32 %v3296, %v3346
        %v3365 = vsub.f32 %v3299, %v3349
        %v3366 = vmul.f32 %v3350, 1.442695
        %v3367 = vpow.pop %v3366
        %v3368 = vmul.f32 %v3351, 1.442695
        %v3369 = vpow.pop %v3368
        %v3370 = vmul.f32 %v3352, 1.442695
        %v3371 = vpow.pop %v3370
        %v3372 = vmul.f32 %v3353, 1.442695
        %v3373 = vpow.pop %v3372
        %v3374 = vmul.f32 %v3354, 1.442695
        %v3375 = vpow.pop %v3374
        %v3376 = vmul.f32 %v3355, 1.442695
        %v3377 = vpow.pop %v3376
        %v3378 = vmul.f32 %v3356, 1.442695
        %v3379 = vpow.pop %v3378
        %v3380 = vmul.f32 %v3357, 1.442695
        %v3381 = vpow.pop %v3380
        %v3382 = vmul.f32 %v3358, 1.442695
        %v3383 = vpow.pop %v3382
        %v3384 = vmul.f32 %v3359, 1.442695
        %v3385 = vpow.pop %v3384
        %v3386 = vmul.f32 %v3360, 1.442695
        %v3387 = vpow.pop %v3386
        %v3388 = vmul.f32 %v3361, 1.442695
        %v3389 = vpow.pop %v3388
        %v3390 = vmul.f32 %v3362, 1.442695
        %v3391 = vpow.pop %v3390
        %v3392 = vmul.f32 %v3363, 1.442695
        %v3393 = vpow.pop %v3392
        %v3394 = vmul.f32 %v3364, 1.442695
        %v3395 = vpow.pop %v3394
        %v3396 = vmul.f32 %v3365, 1.442695
        %v3397 = vpow.pop %v3396
        %v3398 = vsel %vm2925, %v3367, 0.0
        %3399 = vadd.xlane.f32.xlu0 %v3398
        %v3400 = vpop.xlane.xlu0 %3399
        %v3401 = vsel %vm2925, %v3369, 0.0
        %3402 = vadd.xlane.f32.xlu0 %v3401
        %v3403 = vpop.xlane.xlu0 %3402
        %v3404 = vsel %vm2925, %v3371, 0.0
        %3405 = vadd.xlane.f32.xlu0 %v3404
        %v3406 = vpop.xlane.xlu0 %3405
        %v3407 = vsel %vm2925, %v3373, 0.0
        %3408 = vadd.xlane.f32.xlu0 %v3407
        %v3409 = vpop.xlane.xlu0 %3408
        %v3410 = vsel %vm2925, %v3375, 0.0
        %3411 = vadd.xlane.f32.xlu0 %v3410
        %v3412 = vpop.xlane.xlu0 %3411
        %v3413 = vsel %vm2925, %v3377, 0.0
        %3414 = vadd.xlane.f32.xlu0 %v3413
        %v3415 = vpop.xlane.xlu0 %3414
        %v3416 = vsel %vm2925, %v3379, 0.0
        %3417 = vadd.xlane.f32.xlu0 %v3416
        %v3418 = vpop.xlane.xlu0 %3417
        %v3419 = vsel %vm2925, %v3381, 0.0
        %3420 = vadd.xlane.f32.xlu0 %v3419
        %v3421 = vpop.xlane.xlu0 %3420
        %v3422 = vsel %vm2925, %v3383, 0.0
        %3423 = vadd.xlane.f32.xlu0 %v3422
        %v3424 = vpop.xlane.xlu0 %3423
        %v3425 = vsel %vm2925, %v3385, 0.0
        %3426 = vadd.xlane.f32.xlu0 %v3425
        %v3427 = vpop.xlane.xlu0 %3426
        %v3428 = vsel %vm2925, %v3387, 0.0
        %3429 = vadd.xlane.f32.xlu0 %v3428
        %v3430 = vpop.xlane.xlu0 %3429
        %v3431 = vsel %vm2925, %v3389, 0.0
        %3432 = vadd.xlane.f32.xlu0 %v3431
        %v3433 = vpop.xlane.xlu0 %3432
        %v3434 = vsel %vm2925, %v3391, 0.0
        %3435 = vadd.xlane.f32.xlu0 %v3434
        %v3436 = vpop.xlane.xlu0 %3435
        %v3437 = vsel %vm2925, %v3393, 0.0
        %3438 = vadd.xlane.f32.xlu0 %v3437
        %v3439 = vpop.xlane.xlu0 %3438
        %v3440 = vsel %vm2925, %v3395, 0.0
        %3441 = vadd.xlane.f32.xlu0 %v3440
        %v3442 = vpop.xlane.xlu0 %3441
        %v3443 = vsel %vm2925, %v3397, 0.0
        %3444 = vadd.xlane.f32.xlu0 %v3443
        %v3445 = vpop.xlane.xlu0 %3444
        %v3446 = vrcp.pop %v3400
        %v3447 = vrcp.pop %v3403
        %v3448 = vrcp.pop %v3406
        %v3449 = vrcp.pop %v3409
        %v3450 = vrcp.pop %v3412
        %v3451 = vrcp.pop %v3415
        %v3452 = vrcp.pop %v3418
        %v3453 = vrcp.pop %v3421
        %v3454 = vrcp.pop %v3424
        %v3455 = vrcp.pop %v3427
        %v3456 = vrcp.pop %v3430
        %v3457 = vrcp.pop %v3433
        %v3458 = vrcp.pop %v3436
        %v3459 = vrcp.pop %v3439
        %v3460 = vrcp.pop %v3442
        %v3461 = vrcp.pop %v3445
        %v3462 = vpack.c.bf16 %v3369, %v3367
        %v3463 = vpack.c.bf16 %v3373, %v3371
        %v3464 = vpack.c.bf16 %v3377, %v3375
        %v3465 = vpack.c.bf16 %v3381, %v3379
        %v3466 = vpack.c.bf16 %v3385, %v3383
        %v3467 = vpack.c.bf16 %v3389, %v3387
        %v3468 = vpack.c.bf16 %v3393, %v3391
        %v3469 = vpack.c.bf16 %v3397, %v3395
        %v3471 = vsel %vm2925, %v3462, 0
        %3473 = vmatprep.subr.bf16.mxu0 0
        %3474 = vmatpush1.bf16.msra.mxu0 %v2917
        %3475 = vmatprep.subr.bf16.mxu0 0
        %3476 = vmatpush1.bf16.msra.mxu0 0
        %3477 = vmatprep.subr.bf16.mxu0 0
        %3478 = vmatpush1.bf16.msra.mxu0 0
        %3479 = vmatprep.subr.bf16.mxu0 0
        %3480 = vmatpush1.bf16.msra.mxu0 0
        %3481 = vmatprep.subr.bf16.mxu0 0
        %3482 = vmatpush1.bf16.msra.mxu0 0
        %3483 = vmatprep.subr.bf16.mxu0 0
        %3484 = vmatpush1.bf16.msra.mxu0 0
        %3485 = vmatprep.subr.bf16.mxu0 0
        %3486 = vmatpush1.bf16.msra.mxu0 0
        %3487 = vmatprep.subr.bf16.mxu0 0
        %3488 = vmatpush1.bf16.msra.mxu0 0
        %3489 = vmatprep.subr.bf16.mxu0 0
        %3490 = vmatpush1.bf16.msra.mxu0 0
        %3491 = vmatprep.subr.bf16.mxu0 0
        %3492 = vmatpush1.bf16.msra.mxu0 0
        %3493 = vmatprep.subr.bf16.mxu0 0
        %3494 = vmatpush1.bf16.msra.mxu0 0
        %3495 = vmatprep.subr.bf16.mxu0 0
        %3496 = vmatpush1.bf16.msra.mxu0 0
        %3497 = vmatprep.subr.bf16.mxu0 0
        %3498 = vmatpush1.bf16.msra.mxu0 0
        %3499 = vmatprep.subr.bf16.mxu0 0
        %3500 = vmatpush1.bf16.msra.mxu0 0
        %3501 = vmatprep.subr.bf16.mxu0 0
        %3502 = vmatpush1.bf16.msra.mxu0 0
        %3503 = vmatprep.subr.bf16.mxu0 0
        %3504 = vmatpush1.bf16.msra.mxu0 0
        %3505 = vmatprep.mubr.bf16.mxu0 0
        %3506 = vmatmul.mubr.bf16.gmra.mrb[0].mxu0 %v3471
        %v3507 = vpop.f32.mrb[0].mxu0
        %v3508 = vadd.f32 0.0, %v3507
        %v3509 = vpop.f32.mrb[0].mxu0
        %v3510 = vpop.f32.mrb[0].mxu0
        %v3511 = vadd.f32 0.0, %v3510
        %v3512 = vpop.f32.mrb[0].mxu0
        %3513 = vdwg.mxu0
        %v3515 = vsel %vm2925, %v3463, 0
        %3517 = vmatprep.subr.bf16.mxu0 0
        %3518 = vmatpush1.bf16.msra.mxu0 %v2918
        %3519 = vmatprep.subr.bf16.mxu0 0
        %3520 = vmatpush1.bf16.msra.mxu0 0
        %3521 = vmatprep.subr.bf16.mxu0 0
        %3522 = vmatpush1.bf16.msra.mxu0 0
        %3523 = vmatprep.subr.bf16.mxu0 0
        %3524 = vmatpush1.bf16.msra.mxu0 0
        %3525 = vmatprep.subr.bf16.mxu0 0
        %3526 = vmatpush1.bf16.msra.mxu0 0
        %3527 = vmatprep.subr.bf16.mxu0 0
        %3528 = vmatpush1.bf16.msra.mxu0 0
        %3529 = vmatprep.subr.bf16.mxu0 0
        %3530 = vmatpush1.bf16.msra.mxu0 0
        %3531 = vmatprep.subr.bf16.mxu0 0
        %3532 = vmatpush1.bf16.msra.mxu0 0
        %3533 = vmatprep.subr.bf16.mxu0 0
        %3534 = vmatpush1.bf16.msra.mxu0 0
        %3535 = vmatprep.subr.bf16.mxu0 0
        %3536 = vmatpush1.bf16.msra.mxu0 0
        %3537 = vmatprep.subr.bf16.mxu0 0
        %3538 = vmatpush1.bf16.msra.mxu0 0
        %3539 = vmatprep.subr.bf16.mxu0 0
        %3540 = vmatpush1.bf16.msra.mxu0 0
        %3541 = vmatprep.subr.bf16.mxu0 0
        %3542 = vmatpush1.bf16.msra.mxu0 0
        %3543 = vmatprep.subr.bf16.mxu0 0
        %3544 = vmatpush1.bf16.msra.mxu0 0
        %3545 = vmatprep.subr.bf16.mxu0 0
        %3546 = vmatpush1.bf16.msra.mxu0 0
        %3547 = vmatprep.subr.bf16.mxu0 0
        %3548 = vmatpush1.bf16.msra.mxu0 0
        %3549 = vmatprep.mubr.bf16.mxu0 0
        %3550 = vmatmul.mubr.bf16.gmra.mrb[0].mxu0 %v3515
        %v3551 = vpop.f32.mrb[0].mxu0
        %v3552 = vadd.f32 0.0, %v3551
        %v3553 = vpop.f32.mrb[0].mxu0
        %v3554 = vpop.f32.mrb[0].mxu0
        %v3555 = vadd.f32 0.0, %v3554
        %v3556 = vpop.f32.mrb[0].mxu0
        %3557 = vdwg.mxu0
        %v3559 = vsel %vm2925, %v3464, 0
        %3561 = vmatprep.subr.bf16.mxu0 0
        %3562 = vmatpush1.bf16.msra.mxu0 %v2919
        %3563 = vmatprep.subr.bf16.mxu0 0
        %3564 = vmatpush1.bf16.msra.mxu0 0
        %3565 = vmatprep.subr.bf16.mxu0 0
        %3566 = vmatpush1.bf16.msra.mxu0 0
        %3567 = vmatprep.subr.bf16.mxu0 0
        %3568 = vmatpush1.bf16.msra.mxu0 0
        %3569 = vmatprep.subr.bf16.mxu0 0
        %3570 = vmatpush1.bf16.msra.mxu0 0
        %3571 = vmatprep.subr.bf16.mxu0 0
        %3572 = vmatpush1.bf16.msra.mxu0 0
        %3573 = vmatprep.subr.bf16.mxu0 0
        %3574 = vmatpush1.bf16.msra.mxu0 0
        %3575 = vmatprep.subr.bf16.mxu0 0
        %3576 = vmatpush1.bf16.msra.mxu0 0
        %3577 = vmatprep.subr.bf16.mxu0 0
        %3578 = vmatpush1.bf16.msra.mxu0 0
        %3579 = vmatprep.subr.bf16.mxu0 0
        %3580 = vmatpush1.bf16.msra.mxu0 0
        %3581 = vmatprep.subr.bf16.mxu0 0
        %3582 = vmatpush1.bf16.msra.mxu0 0
        %3583 = vmatprep.subr.bf16.mxu0 0
        %3584 = vmatpush1.bf16.msra.mxu0 0
        %3585 = vmatprep.subr.bf16.mxu0 0
        %3586 = vmatpush1.bf16.msra.mxu0 0
        %3587 = vmatprep.subr.bf16.mxu0 0
        %3588 = vmatpush1.bf16.msra.mxu0 0
        %3589 = vmatprep.subr.bf16.mxu0 0
        %3590 = vmatpush1.bf16.msra.mxu0 0
        %3591 = vmatprep.subr.bf16.mxu0 0
        %3592 = vmatpush1.bf16.msra.mxu0 0
        %3593 = vmatprep.mubr.bf16.mxu0 0
        %3594 = vmatmul.mubr.bf16.gmra.mrb[0].mxu0 %v3559
        %v3595 = vpop.f32.mrb[0].mxu0
        %v3596 = vadd.f32 0.0, %v3595
        %v3597 = vpop.f32.mrb[0].mxu0
        %v3598 = vpop.f32.mrb[0].mxu0
        %v3599 = vadd.f32 0.0, %v3598
        %v3600 = vpop.f32.mrb[0].mxu0
        %3601 = vdwg.mxu0
        %v3603 = vsel %vm2925, %v3465, 0
        %3605 = vmatprep.subr.bf16.mxu0 0
        %3606 = vmatpush1.bf16.msra.mxu0 %v2920
        %3607 = vmatprep.subr.bf16.mxu0 0
        %3608 = vmatpush1.bf16.msra.mxu0 0
        %3609 = vmatprep.subr.bf16.mxu0 0
        %3610 = vmatpush1.bf16.msra.mxu0 0
        %3611 = vmatprep.subr.bf16.mxu0 0
        %3612 = vmatpush1.bf16.msra.mxu0 0
        %3613 = vmatprep.subr.bf16.mxu0 0
        %3614 = vmatpush1.bf16.msra.mxu0 0
        %3615 = vmatprep.subr.bf16.mxu0 0
        %3616 = vmatpush1.bf16.msra.mxu0 0
        %3617 = vmatprep.subr.bf16.mxu0 0
        %3618 = vmatpush1.bf16.msra.mxu0 0
        %3619 = vmatprep.subr.bf16.mxu0 0
        %3620 = vmatpush1.bf16.msra.mxu0 0
        %3621 = vmatprep.subr.bf16.mxu0 0
        %3622 = vmatpush1.bf16.msra.mxu0 0
        %3623 = vmatprep.subr.bf16.mxu0 0
        %3624 = vmatpush1.bf16.msra.mxu0 0
        %3625 = vmatprep.subr.bf16.mxu0 0
        %3626 = vmatpush1.bf16.msra.mxu0 0
        %3627 = vmatprep.subr.bf16.mxu0 0
        %3628 = vmatpush1.bf16.msra.mxu0 0
        %3629 = vmatprep.subr.bf16.mxu0 0
        %3630 = vmatpush1.bf16.msra.mxu0 0
        %3631 = vmatprep.subr.bf16.mxu0 0
        %3632 = vmatpush1.bf16.msra.mxu0 0
        %3633 = vmatprep.subr.bf16.mxu0 0
        %3634 = vmatpush1.bf16.msra.mxu0 0
        %3635 = vmatprep.subr.bf16.mxu0 0
        %3636 = vmatpush1.bf16.msra.mxu0 0
        %3637 = vmatprep.mubr.bf16.mxu0 0
        %3638 = vmatmul.mubr.bf16.gmra.mrb[0].mxu0 %v3603
        %v3639 = vpop.f32.mrb[0].mxu0
        %v3640 = vadd.f32 0.0, %v3639
        %v3641 = vpop.f32.mrb[0].mxu0
        %v3642 = vpop.f32.mrb[0].mxu0
        %v3643 = vadd.f32 0.0, %v3642
        %v3644 = vpop.f32.mrb[0].mxu0
        %3645 = vdwg.mxu0
        %v3647 = vsel %vm2925, %v3466, 0
        %3649 = vmatprep.subr.bf16.mxu0 0
        %3650 = vmatpush1.bf16.msra.mxu0 %v2921
        %3651 = vmatprep.subr.bf16.mxu0 0
        %3652 = vmatpush1.bf16.msra.mxu0 0
        %3653 = vmatprep.subr.bf16.mxu0 0
        %3654 = vmatpush1.bf16.msra.mxu0 0
        %3655 = vmatprep.subr.bf16.mxu0 0
        %3656 = vmatpush1.bf16.msra.mxu0 0
        %3657 = vmatprep.subr.bf16.mxu0 0
        %3658 = vmatpush1.bf16.msra.mxu0 0
        %3659 = vmatprep.subr.bf16.mxu0 0
        %3660 = vmatpush1.bf16.msra.mxu0 0
        %3661 = vmatprep.subr.bf16.mxu0 0
        %3662 = vmatpush1.bf16.msra.mxu0 0
        %3663 = vmatprep.subr.bf16.mxu0 0
        %3664 = vmatpush1.bf16.msra.mxu0 0
        %3665 = vmatprep.subr.bf16.mxu0 0
        %3666 = vmatpush1.bf16.msra.mxu0 0
        %3667 = vmatprep.subr.bf16.mxu0 0
        %3668 = vmatpush1.bf16.msra.mxu0 0
        %3669 = vmatprep.subr.bf16.mxu0 0
        %3670 = vmatpush1.bf16.msra.mxu0 0
        %3671 = vmatprep.subr.bf16.mxu0 0
        %3672 = vmatpush1.bf16.msra.mxu0 0
        %3673 = vmatprep.subr.bf16.mxu0 0
        %3674 = vmatpush1.bf16.msra.mxu0 0
        %3675 = vmatprep.subr.bf16.mxu0 0
        %3676 = vmatpush1.bf16.msra.mxu0 0
        %3677 = vmatprep.subr.bf16.mxu0 0
        %3678 = vmatpush1.bf16.msra.mxu0 0
        %3679 = vmatprep.subr.bf16.mxu0 0
        %3680 = vmatpush1.bf16.msra.mxu0 0
        %3681 = vmatprep.mubr.bf16.mxu0 0
        %3682 = vmatmul.mubr.bf16.gmra.mrb[0].mxu0 %v3647
        %v3683 = vpop.f32.mrb[0].mxu0
        %v3684 = vadd.f32 0.0, %v3683
        %v3685 = vpop.f32.mrb[0].mxu0
        %v3686 = vpop.f32.mrb[0].mxu0
        %v3687 = vadd.f32 0.0, %v3686
        %v3688 = vpop.f32.mrb[0].mxu0
        %3689 = vdwg.mxu0
        %v3691 = vsel %vm2925, %v3467, 0
        %3693 = vmatprep.subr.bf16.mxu0 0
        %3694 = vmatpush1.bf16.msra.mxu0 %v2922
        %3695 = vmatprep.subr.bf16.mxu0 0
        %3696 = vmatpush1.bf16.msra.mxu0 0
        %3697 = vmatprep.subr.bf16.mxu0 0
        %3698 = vmatpush1.bf16.msra.mxu0 0
        %3699 = vmatprep.subr.bf16.mxu0 0
        %3700 = vmatpush1.bf16.msra.mxu0 0
        %3701 = vmatprep.subr.bf16.mxu0 0
        %3702 = vmatpush1.bf16.msra.mxu0 0
        %3703 = vmatprep.subr.bf16.mxu0 0
        %3704 = vmatpush1.bf16.msra.mxu0 0
        %3705 = vmatprep.subr.bf16.mxu0 0
        %3706 = vmatpush1.bf16.msra.mxu0 0
        %3707 = vmatprep.subr.bf16.mxu0 0
        %3708 = vmatpush1.bf16.msra.mxu0 0
        %3709 = vmatprep.subr.bf16.mxu0 0
        %3710 = vmatpush1.bf16.msra.mxu0 0
        %3711 = vmatprep.subr.bf16.mxu0 0
        %3712 = vmatpush1.bf16.msra.mxu0 0
        %3713 = vmatprep.subr.bf16.mxu0 0
        %3714 = vmatpush1.bf16.msra.mxu0 0
        %3715 = vmatprep.subr.bf16.mxu0 0
        %3716 = vmatpush1.bf16.msra.mxu0 0
        %3717 = vmatprep.subr.bf16.mxu0 0
        %3718 = vmatpush1.bf16.msra.mxu0 0
        %3719 = vmatprep.subr.bf16.mxu0 0
        %3720 = vmatpush1.bf16.msra.mxu0 0
        %3721 = vmatprep.subr.bf16.mxu0 0
        %3722 = vmatpush1.bf16.msra.mxu0 0
        %3723 = vmatprep.subr.bf16.mxu0 0
        %3724 = vmatpush1.bf16.msra.mxu0 0
        %3725 = vmatprep.mubr.bf16.mxu0 0
        %3726 = vmatmul.mubr.bf16.gmra.mrb[0].mxu0 %v3691
        %v3727 = vpop.f32.mrb[0].mxu0
        %v3728 = vadd.f32 0.0, %v3727
        %v3729 = vpop.f32.mrb[0].mxu0
        %v3730 = vpop.f32.mrb[0].mxu0
        %v3731 = vadd.f32 0.0, %v3730
        %v3732 = vpop.f32.mrb[0].mxu0
        %3733 = vdwg.mxu0
        %v3735 = vsel %vm2925, %v3468, 0
        %3737 = vmatprep.subr.bf16.mxu0 0
        %3738 = vmatpush1.bf16.msra.mxu0 %v2923
        %3739 = vmatprep.subr.bf16.mxu0 0
        %3740 = vmatpush1.bf16.msra.mxu0 0
        %3741 = vmatprep.subr.bf16.mxu0 0
        %3742 = vmatpush1.bf16.msra.mxu0 0
        %3743 = vmatprep.subr.bf16.mxu0 0
        %3744 = vmatpush1.bf16.msra.mxu0 0
        %3745 = vmatprep.subr.bf16.mxu0 0
        %3746 = vmatpush1.bf16.msra.mxu0 0
        %3747 = vmatprep.subr.bf16.mxu0 0
        %3748 = vmatpush1.bf16.msra.mxu0 0
        %3749 = vmatprep.subr.bf16.mxu0 0
        %3750 = vmatpush1.bf16.msra.mxu0 0
        %3751 = vmatprep.subr.bf16.mxu0 0
        %3752 = vmatpush1.bf16.msra.mxu0 0
        %3753 = vmatprep.subr.bf16.mxu0 0
        %3754 = vmatpush1.bf16.msra.mxu0 0
        %3755 = vmatprep.subr.bf16.mxu0 0
        %3756 = vmatpush1.bf16.msra.mxu0 0
        %3757 = vmatprep.subr.bf16.mxu0 0
        %3758 = vmatpush1.bf16.msra.mxu0 0
        %3759 = vmatprep.subr.bf16.mxu0 0
        %3760 = vmatpush1.bf16.msra.mxu0 0
        %3761 = vmatprep.subr.bf16.mxu0 0
        %3762 = vmatpush1.bf16.msra.mxu0 0
        %3763 = vmatprep.subr.bf16.mxu0 0
        %3764 = vmatpush1.bf16.msra.mxu0 0
        %3765 = vmatprep.subr.bf16.mxu0 0
        %3766 = vmatpush1.bf16.msra.mxu0 0
        %3767 = vmatprep.subr.bf16.mxu0 0
        %3768 = vmatpush1.bf16.msra.mxu0 0
        %3769 = vmatprep.mubr.bf16.mxu0 0
        %3770 = vmatmul.mubr.bf16.gmra.mrb[0].mxu0 %v3735
        %v3771 = vpop.f32.mrb[0].mxu0
        %v3772 = vadd.f32 0.0, %v3771
        %v3773 = vpop.f32.mrb[0].mxu0
        %v3774 = vpop.f32.mrb[0].mxu0
        %v3775 = vadd.f32 0.0, %v3774
        %v3776 = vpop.f32.mrb[0].mxu0
        %3777 = vdwg.mxu0
        %v3779 = vsel %vm2925, %v3469, 0
        %3781 = vmatprep.subr.bf16.mxu0 0
        %3782 = vmatpush1.bf16.msra.mxu0 %v2924
        %3783 = vmatprep.subr.bf16.mxu0 0
        %3784 = vmatpush1.bf16.msra.mxu0 0
        %3785 = vmatprep.subr.bf16.mxu0 0
        %3786 = vmatpush1.bf16.msra.mxu0 0
        %3787 = vmatprep.subr.bf16.mxu0 0
        %3788 = vmatpush1.bf16.msra.mxu0 0
        %3789 = vmatprep.subr.bf16.mxu0 0
        %3790 = vmatpush1.bf16.msra.mxu0 0
        %3791 = vmatprep.subr.bf16.mxu0 0
        %3792 = vmatpush1.bf16.msra.mxu0 0
        %3793 = vmatprep.subr.bf16.mxu0 0
        %3794 = vmatpush1.bf16.msra.mxu0 0
        %3795 = vmatprep.subr.bf16.mxu0 0
        %3796 = vmatpush1.bf16.msra.mxu0 0
        %3797 = vmatprep.subr.bf16.mxu0 0
        %3798 = vmatpush1.bf16.msra.mxu0 0
        %3799 = vmatprep.subr.bf16.mxu0 0
        %3800 = vmatpush1.bf16.msra.mxu0 0
        %3801 = vmatprep.subr.bf16.mxu0 0
        %3802 = vmatpush1.bf16.msra.mxu0 0
        %3803 = vmatprep.subr.bf16.mxu0 0
        %3804 = vmatpush1.bf16.msra.mxu0 0
        %3805 = vmatprep.subr.bf16.mxu0 0
        %3806 = vmatpush1.bf16.msra.mxu0 0
        %3807 = vmatprep.subr.bf16.mxu0 0
        %3808 = vmatpush1.bf16.msra.mxu0 0
        %3809 = vmatprep.subr.bf16.mxu0 0
        %3810 = vmatpush1.bf16.msra.mxu0 0
        %3811 = vmatprep.subr.bf16.mxu0 0
        %3812 = vmatpush1.bf16.msra.mxu0 0
        %3813 = vmatprep.mubr.bf16.mxu0 0
        %3814 = vmatmul.mubr.bf16.gmra.mrb[0].mxu0 %v3779
        %v3815 = vpop.f32.mrb[0].mxu0
        %v3816 = vadd.f32 0.0, %v3815
        %v3817 = vpop.f32.mrb[0].mxu0
        %v3818 = vpop.f32.mrb[0].mxu0
        %v3819 = vadd.f32 0.0, %v3818
        %v3820 = vpop.f32.mrb[0].mxu0
        %3821 = vdwg.mxu0
        %v3822 = vmul.f32 %v3508, %v3446
        %v3823 = vmul.f32 %v3511, %v3447
        %v3824 = vmul.f32 %v3552, %v3448
        %v3825 = vmul.f32 %v3555, %v3449
        %v3826 = vmul.f32 %v3596, %v3450
        %v3827 = vmul.f32 %v3599, %v3451
        %v3828 = vmul.f32 %v3640, %v3452
        %v3829 = vmul.f32 %v3643, %v3453
        %v3830 = vmul.f32 %v3684, %v3454
        %v3831 = vmul.f32 %v3687, %v3455
        %v3832 = vmul.f32 %v3728, %v3456
        %v3833 = vmul.f32 %v3731, %v3457
        %v3834 = vmul.f32 %v3772, %v3458
        %v3835 = vmul.f32 %v3775, %v3459
        %v3836 = vmul.f32 %v3816, %v3460
        %v3837 = vmul.f32 %v3819, %v3461
        %v3838 = vpack.c.bf16 %v3823, %v3822
        %v3839 = vpack.c.bf16 %v3825, %v3824
        %v3840 = vpack.c.bf16 %v3827, %v3826
        %v3841 = vpack.c.bf16 %v3829, %v3828
        %v3842 = vpack.c.bf16 %v3831, %v3830
        %v3843 = vpack.c.bf16 %v3833, %v3832
        %v3844 = vpack.c.bf16 %v3835, %v3834
        %v3845 = vpack.c.bf16 %v3837, %v3836
        %v3846 = vld [vmem:[%s6] sm:$0xf]
        %v3847 = vld [vmem:[%s6 + $0x4] sm:$0xf]
        %v3848 = vld [vmem:[%s6 + $0x8] sm:$0xf]
        %v3849 = vld [vmem:[%s6 + $0xc] sm:$0xf]
        %v3850 = vld [vmem:[%s6 + $0x10] sm:$0xf]
        %v3851 = vld [vmem:[%s6 + $0x14] sm:$0xf]
        %v3852 = vld [vmem:[%s6 + $0x18] sm:$0xf]
        %v3853 = vld [vmem:[%s6 + $0x1c] sm:$0xf]
        %v3854 = vld [vmem:[%s6 + $0x20] sm:$0xf]
        %v3855 = vld [vmem:[%s6 + $0x24] sm:$0xf]
        %v3856 = vld [vmem:[%s6 + $0x28] sm:$0xf]
        %v3857 = vld [vmem:[%s6 + $0x2c] sm:$0xf]
        %v3858 = vld [vmem:[%s6 + $0x30] sm:$0xf]
        %v3859 = vld [vmem:[%s6 + $0x34] sm:$0xf]
        %v3860 = vld [vmem:[%s6 + $0x38] sm:$0xf]
        %v3861 = vld [vmem:[%s6 + $0x3c] sm:$0xf]
        %v3864 = vunpack.c.l.b16 %v3846
        %v3865 = vunpack.c.l.b16 %v3847
        %v3866 = vpack.c.b16 %v3865, %v3864
        %v3869 = vsel %vm2925, %v3838, 0
        %3871 = vmatprep.subr.bf16.mxu0 0
        %3872 = vmatpush1.bf16.msra.mxu0 %v3866
        %3873 = vmatprep.subr.bf16.mxu0 0
        %3874 = vmatpush1.bf16.msra.mxu0 0
        %3875 = vmatprep.subr.bf16.mxu0 0
        %3876 = vmatpush1.bf16.msra.mxu0 0
        %3877 = vmatprep.subr.bf16.mxu0 0
        %3878 = vmatpush1.bf16.msra.mxu0 0
        %3879 = vmatprep.subr.bf16.mxu0 0
        %3880 = vmatpush1.bf16.msra.mxu0 0
        %3881 = vmatprep.subr.bf16.mxu0 0
        %3882 = vmatpush1.bf16.msra.mxu0 0
        %3883 = vmatprep.subr.bf16.mxu0 0
        %3884 = vmatpush1.bf16.msra.mxu0 0
        %3885 = vmatprep.subr.bf16.mxu0 0
        %3886 = vmatpush1.bf16.msra.mxu0 0
        %3887 = vmatprep.subr.bf16.mxu0 0
        %3888 = vmatpush1.bf16.msra.mxu0 0
        %3889 = vmatprep.subr.bf16.mxu0 0
        %3890 = vmatpush1.bf16.msra.mxu0 0
        %3891 = vmatprep.subr.bf16.mxu0 0
        %3892 = vmatpush1.bf16.msra.mxu0 0
        %3893 = vmatprep.subr.bf16.mxu0 0
        %3894 = vmatpush1.bf16.msra.mxu0 0
        %3895 = vmatprep.subr.bf16.mxu0 0
        %3896 = vmatpush1.bf16.msra.mxu0 0
        %3897 = vmatprep.subr.bf16.mxu0 0
        %3898 = vmatpush1.bf16.msra.mxu0 0
        %3899 = vmatprep.subr.bf16.mxu0 0
        %3900 = vmatpush1.bf16.msra.mxu0 0
        %3901 = vmatprep.subr.bf16.mxu0 0
        %3902 = vmatpush1.bf16.msra.mxu0 0
        %3903 = vmatprep.mubr.bf16.mxu0 0
        %3904 = vmatmul.mubr.bf16.gmra.mrb[0].mxu0 %v3869
        %v3905 = vpop.f32.mrb[0].mxu0
        %v3906 = vadd.f32 0.0, %v3905
        %v3907 = vpop.f32.mrb[0].mxu0
        %v3908 = vpop.f32.mrb[0].mxu0
        %v3909 = vadd.f32 0.0, %v3908
        %v3910 = vpop.f32.mrb[0].mxu0
        %3911 = vdwg.mxu0
        %v3914 = vunpack.c.l.b16 %v3848
        %v3915 = vunpack.c.l.b16 %v3849
        %v3916 = vpack.c.b16 %v3915, %v3914
        %v3919 = vsel %vm2925, %v3839, 0
        %3921 = vmatprep.subr.bf16.mxu0 0
        %3922 = vmatpush1.bf16.msra.mxu0 %v3916
        %3923 = vmatprep.subr.bf16.mxu0 0
        %3924 = vmatpush1.bf16.msra.mxu0 0
        %3925 = vmatprep.subr.bf16.mxu0 0
        %3926 = vmatpush1.bf16.msra.mxu0 0
        %3927 = vmatprep.subr.bf16.mxu0 0
        %3928 = vmatpush1.bf16.msra.mxu0 0
        %3929 = vmatprep.subr.bf16.mxu0 0
        %3930 = vmatpush1.bf16.msra.mxu0 0
        %3931 = vmatprep.subr.bf16.mxu0 0
        %3932 = vmatpush1.bf16.msra.mxu0 0
        %3933 = vmatprep.subr.bf16.mxu0 0
        %3934 = vmatpush1.bf16.msra.mxu0 0
        %3935 = vmatprep.subr.bf16.mxu0 0
        %3936 = vmatpush1.bf16.msra.mxu0 0
        %3937 = vmatprep.subr.bf16.mxu0 0
        %3938 = vmatpush1.bf16.msra.mxu0 0
        %3939 = vmatprep.subr.bf16.mxu0 0
        %3940 = vmatpush1.bf16.msra.mxu0 0
        %3941 = vmatprep.subr.bf16.mxu0 0
        %3942 = vmatpush1.bf16.msra.mxu0 0
        %3943 = vmatprep.subr.bf16.mxu0 0
        %3944 = vmatpush1.bf16.msra.mxu0 0
        %3945 = vmatprep.subr.bf16.mxu0 0
        %3946 = vmatpush1.bf16.msra.mxu0 0
        %3947 = vmatprep.subr.bf16.mxu0 0
        %3948 = vmatpush1.bf16.msra.mxu0 0
        %3949 = vmatprep.subr.bf16.mxu0 0
        %3950 = vmatpush1.bf16.msra.mxu0 0
        %3951 = vmatprep.subr.bf16.mxu0 0
        %3952 = vmatpush1.bf16.msra.mxu0 0
        %3953 = vmatprep.mubr.bf16.mxu0 0
        %3954 = vmatmul.mubr.bf16.gmra.mrb[0].mxu0 %v3919
        %v3955 = vpop.f32.mrb[0].mxu0
        %v3956 = vadd.f32 0.0, %v3955
        %v3957 = vpop.f32.mrb[0].mxu0
        %v3958 = vpop.f32.mrb[0].mxu0
        %v3959 = vadd.f32 0.0, %v3958
        %v3960 = vpop.f32.mrb[0].mxu0
        %3961 = vdwg.mxu0
        %v3964 = vunpack.c.l.b16 %v3850
        %v3965 = vunpack.c.l.b16 %v3851
        %v3966 = vpack.c.b16 %v3965, %v3964
        %v3969 = vsel %vm2925, %v3840, 0
        %3971 = vmatprep.subr.bf16.mxu0 0
        %3972 = vmatpush1.bf16.msra.mxu0 %v3966
        %3973 = vmatprep.subr.bf16.mxu0 0
        %3974 = vmatpush1.bf16.msra.mxu0 0
        %3975 = vmatprep.subr.bf16.mxu0 0
        %3976 = vmatpush1.bf16.msra.mxu0 0
        %3977 = vmatprep.subr.bf16.mxu0 0
        %3978 = vmatpush1.bf16.msra.mxu0 0
        %3979 = vmatprep.subr.bf16.mxu0 0
        %3980 = vmatpush1.bf16.msra.mxu0 0
        %3981 = vmatprep.subr.bf16.mxu0 0
        %3982 = vmatpush1.bf16.msra.mxu0 0
        %3983 = vmatprep.subr.bf16.mxu0 0
        %3984 = vmatpush1.bf16.msra.mxu0 0
        %3985 = vmatprep.subr.bf16.mxu0 0
        %3986 = vmatpush1.bf16.msra.mxu0 0
        %3987 = vmatprep.subr.bf16.mxu0 0
        %3988 = vmatpush1.bf16.msra.mxu0 0
        %3989 = vmatprep.subr.bf16.mxu0 0
        %3990 = vmatpush1.bf16.msra.mxu0 0
        %3991 = vmatprep.subr.bf16.mxu0 0
        %3992 = vmatpush1.bf16.msra.mxu0 0
        %3993 = vmatprep.subr.bf16.mxu0 0
        %3994 = vmatpush1.bf16.msra.mxu0 0
        %3995 = vmatprep.subr.bf16.mxu0 0
        %3996 = vmatpush1.bf16.msra.mxu0 0
        %3997 = vmatprep.subr.bf16.mxu0 0
        %3998 = vmatpush1.bf16.msra.mxu0 0
        %3999 = vmatprep.subr.bf16.mxu0 0
        %4000 = vmatpush1.bf16.msra.mxu0 0
        %4001 = vmatprep.subr.bf16.mxu0 0
        %4002 = vmatpush1.bf16.msra.mxu0 0
        %4003 = vmatprep.mubr.bf16.mxu0 0
        %4004 = vmatmul.mubr.bf16.gmra.mrb[0].mxu0 %v3969
        %v4005 = vpop.f32.mrb[0].mxu0
        %v4006 = vadd.f32 0.0, %v4005
        %v4007 = vpop.f32.mrb[0].mxu0
        %v4008 = vpop.f32.mrb[0].mxu0
        %v4009 = vadd.f32 0.0, %v4008
        %v4010 = vpop.f32.mrb[0].mxu0
        %4011 = vdwg.mxu0
        %v4014 = vunpack.c.l.b16 %v3852
        %v4015 = vunpack.c.l.b16 %v3853
        %v4016 = vpack.c.b16 %v4015, %v4014
        %v4019 = vsel %vm2925, %v3841, 0
        %4021 = vmatprep.subr.bf16.mxu0 0
        %4022 = vmatpush1.bf16.msra.mxu0 %v4016
        %4023 = vmatprep.subr.bf16.mxu0 0
        %4024 = vmatpush1.bf16.msra.mxu0 0
        %4025 = vmatprep.subr.bf16.mxu0 0
        %4026 = vmatpush1.bf16.msra.mxu0 0
        %4027 = vmatprep.subr.bf16.mxu0 0
        %4028 = vmatpush1.bf16.msra.mxu0 0
        %4029 = vmatprep.subr.bf16.mxu0 0
        %4030 = vmatpush1.bf16.msra.mxu0 0
        %4031 = vmatprep.subr.bf16.mxu0 0
        %4032 = vmatpush1.bf16.msra.mxu0 0
        %4033 = vmatprep.subr.bf16.mxu0 0
        %4034 = vmatpush1.bf16.msra.mxu0 0
        %4035 = vmatprep.subr.bf16.mxu0 0
        %4036 = vmatpush1.bf16.msra.mxu0 0
        %4037 = vmatprep.subr.bf16.mxu0 0
        %4038 = vmatpush1.bf16.msra.mxu0 0
        %4039 = vmatprep.subr.bf16.mxu0 0
        %4040 = vmatpush1.bf16.msra.mxu0 0
        %4041 = vmatprep.subr.bf16.mxu0 0
        %4042 = vmatpush1.bf16.msra.mxu0 0
        %4043 = vmatprep.subr.bf16.mxu0 0
        %4044 = vmatpush1.bf16.msra.mxu0 0
        %4045 = vmatprep.subr.bf16.mxu0 0
        %4046 = vmatpush1.bf16.msra.mxu0 0
        %4047 = vmatprep.subr.bf16.mxu0 0
        %4048 = vmatpush1.bf16.msra.mxu0 0
        %4049 = vmatprep.subr.bf16.mxu0 0
        %4050 = vmatpush1.bf16.msra.mxu0 0
        %4051 = vmatprep.subr.bf16.mxu0 0
        %4052 = vmatpush1.bf16.msra.mxu0 0
        %4053 = vmatprep.mubr.bf16.mxu0 0
        %4054 = vmatmul.mubr.bf16.gmra.mrb[0].mxu0 %v4019
        %v4055 = vpop.f32.mrb[0].mxu0
        %v4056 = vadd.f32 0.0, %v4055
        %v4057 = vpop.f32.mrb[0].mxu0
        %v4058 = vpop.f32.mrb[0].mxu0
        %v4059 = vadd.f32 0.0, %v4058
        %v4060 = vpop.f32.mrb[0].mxu0
        %4061 = vdwg.mxu0
        %v4064 = vunpack.c.l.b16 %v3854
        %v4065 = vunpack.c.l.b16 %v3855
        %v4066 = vpack.c.b16 %v4065, %v4064
        %v4069 = vsel %vm2925, %v3842, 0
        %4071 = vmatprep.subr.bf16.mxu0 0
        %4072 = vmatpush1.bf16.msra.mxu0 %v4066
        %4073 = vmatprep.subr.bf16.mxu0 0
        %4074 = vmatpush1.bf16.msra.mxu0 0
        %4075 = vmatprep.subr.bf16.mxu0 0
        %4076 = vmatpush1.bf16.msra.mxu0 0
        %4077 = vmatprep.subr.bf16.mxu0 0
        %4078 = vmatpush1.bf16.msra.mxu0 0
        %4079 = vmatprep.subr.bf16.mxu0 0
        %4080 = vmatpush1.bf16.msra.mxu0 0
        %4081 = vmatprep.subr.bf16.mxu0 0
        %4082 = vmatpush1.bf16.msra.mxu0 0
        %4083 = vmatprep.subr.bf16.mxu0 0
        %4084 = vmatpush1.bf16.msra.mxu0 0
        %4085 = vmatprep.subr.bf16.mxu0 0
        %4086 = vmatpush1.bf16.msra.mxu0 0
        %4087 = vmatprep.subr.bf16.mxu0 0
        %4088 = vmatpush1.bf16.msra.mxu0 0
        %4089 = vmatprep.subr.bf16.mxu0 0
        %4090 = vmatpush1.bf16.msra.mxu0 0
        %4091 = vmatprep.subr.bf16.mxu0 0
        %4092 = vmatpush1.bf16.msra.mxu0 0
        %4093 = vmatprep.subr.bf16.mxu0 0
        %4094 = vmatpush1.bf16.msra.mxu0 0
        %4095 = vmatprep.subr.bf16.mxu0 0
        %4096 = vmatpush1.bf16.msra.mxu0 0
        %4097 = vmatprep.subr.bf16.mxu0 0
        %4098 = vmatpush1.bf16.msra.mxu0 0
        %4099 = vmatprep.subr.bf16.mxu0 0
        %4100 = vmatpush1.bf16.msra.mxu0 0
        %4101 = vmatprep.subr.bf16.mxu0 0
        %4102 = vmatpush1.bf16.msra.mxu0 0
        %4103 = vmatprep.mubr.bf16.mxu0 0
        %4104 = vmatmul.mubr.bf16.gmra.mrb[0].mxu0 %v4069
        %v4105 = vpop.f32.mrb[0].mxu0
        %v4106 = vadd.f32 0.0, %v4105
        %v4107 = vpop.f32.mrb[0].mxu0
        %v4108 = vpop.f32.mrb[0].mxu0
        %v4109 = vadd.f32 0.0, %v4108
        %v4110 = vpop.f32.mrb[0].mxu0
        %4111 = vdwg.mxu0
        %v4114 = vunpack.c.l.b16 %v3856
        %v4115 = vunpack.c.l.b16 %v3857
        %v4116 = vpack.c.b16 %v4115, %v4114
        %v4119 = vsel %vm2925, %v3843, 0
        %4121 = vmatprep.subr.bf16.mxu0 0
        %4122 = vmatpush1.bf16.msra.mxu0 %v4116
        %4123 = vmatprep.subr.bf16.mxu0 0
        %4124 = vmatpush1.bf16.msra.mxu0 0
        %4125 = vmatprep.subr.bf16.mxu0 0
        %4126 = vmatpush1.bf16.msra.mxu0 0
        %4127 = vmatprep.subr.bf16.mxu0 0
        %4128 = vmatpush1.bf16.msra.mxu0 0
        %4129 = vmatprep.subr.bf16.mxu0 0
        %4130 = vmatpush1.bf16.msra.mxu0 0
        %4131 = vmatprep.subr.bf16.mxu0 0
        %4132 = vmatpush1.bf16.msra.mxu0 0
        %4133 = vmatprep.subr.bf16.mxu0 0
        %4134 = vmatpush1.bf16.msra.mxu0 0
        %4135 = vmatprep.subr.bf16.mxu0 0
        %4136 = vmatpush1.bf16.msra.mxu0 0
        %4137 = vmatprep.subr.bf16.mxu0 0
        %4138 = vmatpush1.bf16.msra.mxu0 0
        %4139 = vmatprep.subr.bf16.mxu0 0
        %4140 = vmatpush1.bf16.msra.mxu0 0
        %4141 = vmatprep.subr.bf16.mxu0 0
        %4142 = vmatpush1.bf16.msra.mxu0 0
        %4143 = vmatprep.subr.bf16.mxu0 0
        %4144 = vmatpush1.bf16.msra.mxu0 0
        %4145 = vmatprep.subr.bf16.mxu0 0
        %4146 = vmatpush1.bf16.msra.mxu0 0
        %4147 = vmatprep.subr.bf16.mxu0 0
        %4148 = vmatpush1.bf16.msra.mxu0 0
        %4149 = vmatprep.subr.bf16.mxu0 0
        %4150 = vmatpush1.bf16.msra.mxu0 0
        %4151 = vmatprep.subr.bf16.mxu0 0
        %4152 = vmatpush1.bf16.msra.mxu0 0
        %4153 = vmatprep.mubr.bf16.mxu0 0
        %4154 = vmatmul.mubr.bf16.gmra.mrb[0].mxu0 %v4119
        %v4155 = vpop.f32.mrb[0].mxu0
        %v4156 = vadd.f32 0.0, %v4155
        %v4157 = vpop.f32.mrb[0].mxu0
        %v4158 = vpop.f32.mrb[0].mxu0
        %v4159 = vadd.f32 0.0, %v4158
        %v4160 = vpop.f32.mrb[0].mxu0
        %4161 = vdwg.mxu0
        %v4164 = vunpack.c.l.b16 %v3858
        %v4165 = vunpack.c.l.b16 %v3859
        %v4166 = vpack.c.b16 %v4165, %v4164
        %v4169 = vsel %vm2925, %v3844, 0
        %4171 = vmatprep.subr.bf16.mxu0 0
        %4172 = vmatpush1.bf16.msra.mxu0 %v4166
        %4173 = vmatprep.subr.bf16.mxu0 0
        %4174 = vmatpush1.bf16.msra.mxu0 0
        %4175 = vmatprep.subr.bf16.mxu0 0
        %4176 = vmatpush1.bf16.msra.mxu0 0
        %4177 = vmatprep.subr.bf16.mxu0 0
        %4178 = vmatpush1.bf16.msra.mxu0 0
        %4179 = vmatprep.subr.bf16.mxu0 0
        %4180 = vmatpush1.bf16.msra.mxu0 0
        %4181 = vmatprep.subr.bf16.mxu0 0
        %4182 = vmatpush1.bf16.msra.mxu0 0
        %4183 = vmatprep.subr.bf16.mxu0 0
        %4184 = vmatpush1.bf16.msra.mxu0 0
        %4185 = vmatprep.subr.bf16.mxu0 0
        %4186 = vmatpush1.bf16.msra.mxu0 0
        %4187 = vmatprep.subr.bf16.mxu0 0
        %4188 = vmatpush1.bf16.msra.mxu0 0
        %4189 = vmatprep.subr.bf16.mxu0 0
        %4190 = vmatpush1.bf16.msra.mxu0 0
        %4191 = vmatprep.subr.bf16.mxu0 0
        %4192 = vmatpush1.bf16.msra.mxu0 0
        %4193 = vmatprep.subr.bf16.mxu0 0
        %4194 = vmatpush1.bf16.msra.mxu0 0
        %4195 = vmatprep.subr.bf16.mxu0 0
        %4196 = vmatpush1.bf16.msra.mxu0 0
        %4197 = vmatprep.subr.bf16.mxu0 0
        %4198 = vmatpush1.bf16.msra.mxu0 0
        %4199 = vmatprep.subr.bf16.mxu0 0
        %4200 = vmatpush1.bf16.msra.mxu0 0
        %4201 = vmatprep.subr.bf16.mxu0 0
        %4202 = vmatpush1.bf16.msra.mxu0 0
        %4203 = vmatprep.mubr.bf16.mxu0 0
        %4204 = vmatmul.mubr.bf16.gmra.mrb[0].mxu0 %v4169
        %v4205 = vpop.f32.mrb[0].mxu0
        %v4206 = vadd.f32 0.0, %v4205
        %v4207 = vpop.f32.mrb[0].mxu0
        %v4208 = vpop.f32.mrb[0].mxu0
        %v4209 = vadd.f32 0.0, %v4208
        %v4210 = vpop.f32.mrb[0].mxu0
        %4211 = vdwg.mxu0
        %v4214 = vunpack.c.l.b16 %v3860
        %v4215 = vunpack.c.l.b16 %v3861
        %v4216 = vpack.c.b16 %v4215, %v4214
        %v4219 = vsel %vm2925, %v3845, 0
        %4221 = vmatprep.subr.bf16.mxu0 0
        %4222 = vmatpush1.bf16.msra.mxu0 %v4216
        %4223 = vmatprep.subr.bf16.mxu0 0
        %4224 = vmatpush1.bf16.msra.mxu0 0
        %4225 = vmatprep.subr.bf16.mxu0 0
        %4226 = vmatpush1.bf16.msra.mxu0 0
        %4227 = vmatprep.subr.bf16.mxu0 0
        %4228 = vmatpush1.bf16.msra.mxu0 0
        %4229 = vmatprep.subr.bf16.mxu0 0
        %4230 = vmatpush1.bf16.msra.mxu0 0
        %4231 = vmatprep.subr.bf16.mxu0 0
        %4232 = vmatpush1.bf16.msra.mxu0 0
        %4233 = vmatprep.subr.bf16.mxu0 0
        %4234 = vmatpush1.bf16.msra.mxu0 0
        %4235 = vmatprep.subr.bf16.mxu0 0
        %4236 = vmatpush1.bf16.msra.mxu0 0
        %4237 = vmatprep.subr.bf16.mxu0 0
        %4238 = vmatpush1.bf16.msra.mxu0 0
        %4239 = vmatprep.subr.bf16.mxu0 0
        %4240 = vmatpush1.bf16.msra.mxu0 0
        %4241 = vmatprep.subr.bf16.mxu0 0
        %4242 = vmatpush1.bf16.msra.mxu0 0
        %4243 = vmatprep.subr.bf16.mxu0 0
        %4244 = vmatpush1.bf16.msra.mxu0 0
        %4245 = vmatprep.subr.bf16.mxu0 0
        %4246 = vmatpush1.bf16.msra.mxu0 0
        %4247 = vmatprep.subr.bf16.mxu0 0
        %4248 = vmatpush1.bf16.msra.mxu0 0
        %4249 = vmatprep.subr.bf16.mxu0 0
        %4250 = vmatpush1.bf16.msra.mxu0 0
        %4251 = vmatprep.subr.bf16.mxu0 0
        %4252 = vmatpush1.bf16.msra.mxu0 0
        %4253 = vmatprep.mubr.bf16.mxu0 0
        %4254 = vmatmul.mubr.bf16.gmra.mrb[0].mxu0 %v4219
        %v4255 = vpop.f32.mrb[0].mxu0
        %v4256 = vadd.f32 0.0, %v4255
        %v4257 = vpop.f32.mrb[0].mxu0
        %v4258 = vpop.f32.mrb[0].mxu0
        %v4259 = vadd.f32 0.0, %v4258
        %v4260 = vpop.f32.mrb[0].mxu0
        %4261 = vdwg.mxu0
        %v4262 = vadd.f32 %v3906, %v3956
        %v4263 = vadd.f32 %v4262, %v4006
        %v4264 = vadd.f32 %v4263, %v4056
        %v4265 = vadd.f32 %v4264, %v4106
        %v4266 = vadd.f32 %v4265, %v4156
        %v4267 = vadd.f32 %v4266, %v4206
        %v4268 = vadd.f32 %v4267, %v4256
        %v4269 = vadd.f32 %v3909, %v3959
        %v4270 = vadd.f32 %v4269, %v4009
        %v4271 = vadd.f32 %v4270, %v4059
        %v4272 = vadd.f32 %v4271, %v4109
        %v4273 = vadd.f32 %v4272, %v4159
        %v4274 = vadd.f32 %v4273, %v4209
        %v4275 = vadd.f32 %v4274, %v4259
        %v4276 = vadd.f32 %v372, %v4268
        %v4277 = vadd.f32 %v373, %v4275
        %4278 = vadd.xlane.f32.xlu0 %v4276
        %v4279 = vpop.xlane.xlu0 %4278
        %4280 = vadd.xlane.f32.xlu0 %v4277
        %v4281 = vpop.xlane.xlu0 %4280
        %v4282 = vrcp.pop 128.0
        %v4283 = vmul.f32 %v4279, %v4282
        %v4284 = vmul.f32 %v4281, %v4282
        %v4285 = vsub.f32 %v4276, %v4283
        %v4286 = vsub.f32 %v4277, %v4284
        %v4287 = vmul.f32 %v4285, %v4285
        %v4288 = vmul.f32 %v4286, %v4286
        %4289 = vadd.xlane.f32.xlu0 %v4287
        %v4290 = vpop.xlane.xlu0 %4289
        %4291 = vadd.xlane.f32.xlu0 %v4288
        %v4292 = vpop.xlane.xlu0 %4291
        %v4293 = vmul.f32 %v4290, %v4282
        %v4294 = vmul.f32 %v4292, %v4282
        %v4295 = vadd.f32 %v4293, 1e-05
        %v4296 = vadd.f32 %v4294, 1e-05
        %v4297 = vrsqrt.pop %v4295
        %v4298 = vrsqrt.pop %v4296
        %v4299 = vmul.f32 %v4285, %v4297
        %v4300 = vmul.f32 %v4286, %v4298
        %v4301 = vld [vmem:[%s7] sm:$0x1]
        %v4303 = vlaneseq
        %v4304 = vshrl.u32 %v4303, 7
        %v4305 = vsub.s32 0, %v4304
        %v4306 = vrot.slane %v4301, %v4305
        %v4308 = vmul.f32 %v4299, %v4306
        %v4309 = vmul.f32 %v4300, %v4306
        %v4310 = vld [vmem:[%s8] sm:$0x1]
        %v4312 = vlaneseq
        %v4313 = vshrl.u32 %v4312, 7
        %v4314 = vsub.s32 0, %v4313
        %v4315 = vrot.slane %v4310, %v4314
        %v4317 = vadd.f32 %v4308, %v4315
        %v4318 = vadd.f32 %v4309, %v4315
        %4319 = vst [vmem:[%s355] sm:$0xff] %v4317
        %4320 = vst [vmem:[%s355 + $0x8] sm:$0xff] %v4318
        %s4321 = sand.u32 %s235, 1
        %s4322 = scalar_lea.sflag [#allocation3], %s4321
        %s4323 = sand.u32 %s235, 1
        %s4324 = smul.addr %s4323, 16
        %s4325 = scalar_lea.vmem [#allocation2], %s4324
        // Predicated region
        $region57: #{tpu_custom_call.1} parent=55 // pred_check
          %p4326 = pneg %p245
        $region58: #{tpu_custom_call.1} parent=55 // pred_check_branch
          %4328 = sbr.rel (%p4326) target = $region60
        $region59: #{tpu_custom_call.1} parent=55 // pred_region
          %s4330 = ssub.s32 256, 256
          %4331 = vsyncadd %s4322, %s4330
          %s4332 = smul.addr %s23, 2
          %s4333 = smul.addr %s4332, 128
          %s4334 = scalar_lea.hbm %s9, %s4333
          %s4335 = sshll.u32 %s4325, 4
          %s4336 = int_to_ptr.vmem [resolvable:$true] %s4335
          %4341 = dma.vmem_to_hbm [thread:$0]  %s4336, 256, %s4334, %s4322, 128, 128, 8
        $region60: #{tpu_custom_call.1} parent=55 // pred_fallthru
          _
      $region56: #{tpu_custom_call.1} parent=5 // pred_fallthru
        _
      %p4342 = scmp.le.s32.totalorder 2, %s18
      // Predicated region
      $region61: #{tpu_custom_call.1} parent=5 // pred_check
        %p4343 = pneg %p4342
      $region62: #{tpu_custom_call.1} parent=5 // pred_check_branch
        %4345 = sbr.rel (%p4343) target = $region64
      $region63: #{tpu_custom_call.1} parent=5 // pred_region
        %s4346 = ssub.s32 %s18, 2
        // Predicated region
        $region65: #{tpu_custom_call.1} parent=63 // pred_check
          %p4347 = pneg %p251
        $region66: #{tpu_custom_call.1} parent=63 // pred_check_branch
          %4349 = sbr.rel (%p4347) target = $region68
        $region67: #{tpu_custom_call.1} parent=63 // pred_region
          %s4350 = sand.u32 %s236, 1
          %s4351 = scalar_lea.sflag [#allocation3], %s4350
          %s4352 = sand.u32 %s236, 1
          %s4353 = smul.addr %s4352, 16
          %s4354 = scalar_lea.vmem [#allocation2], %s4353
          %4355 = dma.done %s4351, 256
        $region68: #{tpu_custom_call.1} parent=63 // pred_fallthru
          _
      $region64: #{tpu_custom_call.1} parent=5 // pred_fallthru
        _
    $region6: #{tpu_custom_call.1} parent=1 // loop_footer
      %s22 = sadd.s32 1, %s18
    $region7: #{tpu_custom_call.1} parent=1 // loop_footer_branch
      %17 = sbr.rel target = $region3
    $region8: #{tpu_custom_call.1} parent=1 // loop_exit
      _
    %4356 = vsyncpa [#allocation3], 1
    %s4357 = scalar_lea.sflag [#allocation3], 1
    %4358 = vsyncpa %s4357, 1

</llo_original>
